<compile_context>
chip_gen: v6e
topology: v6e:2x2x1
jax: 0.10.0
libtpu: 0.0.40
codegen_flags: <defaults>
</compile_context>

<pallas_src>
import math

import jax
import jax.numpy as jnp
from jax.experimental import pallas as pl
from jax.experimental.pallas import tpu as pltpu

D_MODEL = 32
N_HEADS = 4
D_HEAD = D_MODEL // N_HEADS
D_FF = 64
N_LAYERS = 2
LN_EPS = 1e-5          # nn.LayerNorm default
NEG_INF = -1e9


# ----------------------------- kernel --------------------------------------

def _layer_norm(x, gamma, beta):
    mu = jnp.mean(x, axis=-1, keepdims=True)
    var = jnp.mean((x - mu) ** 2, axis=-1, keepdims=True)
    return (x - mu) * jax.lax.rsqrt(var + LN_EPS) * gamma + beta


def make_encoder_kernel(B, S):
    BS = B * S
    D = D_MODEL
    scale = 1.0 / math.sqrt(D_HEAD)

    def kernel(feat_ref, pos_ref, lng_ref, lnb_ref, mkey_ref, keep_ref,
               wqkv_ref, bqkv_ref, wo_ref, bo_ref, g1_ref, be1_ref,
               w1_ref, b1_ref, w2_ref, b2_ref, g2_ref, be2_ref, o_ref):
        l = pl.program_id(0)

        # --- out = LayerNorm(features) + pos_embedding  (only once, before layer 0) ---
        @pl.when(l == 0)
        def _init():
            o_ref[...] = _layer_norm(feat_ref[...], lng_ref[...], lnb_ref[...]) + pos_ref[...]

        x = o_ref[...]                                   # [B*S, D], resident across layer steps
        mkey = mkey_ref[...]                             # [B, 1, S] additive -inf on padded keys

        # --- multi-head self-attention (fused QKV projection) ---
        qkv = jnp.dot(x, wqkv_ref[0], preferred_element_type=jnp.float32) + bqkv_ref[0]
        q = qkv[:, 0 * D:1 * D].reshape(B, S, D)
        k = qkv[:, 1 * D:2 * D].reshape(B, S, D)
        v = qkv[:, 2 * D:3 * D].reshape(B, S, D)

        wo = wo_ref[0]                                   # [D, D]
        att = jnp.zeros((BS, D), jnp.float32)
        for h in range(N_HEADS):
            sl = slice(h * D_HEAD, (h + 1) * D_HEAD)
            qh, kh, vh = q[:, :, sl], k[:, :, sl], v[:, :, sl]        # [B, S, dk]
            logits = jnp.einsum('bqd,bkd->bqk', qh, kh,
                                preferred_element_type=jnp.float32) * scale
            logits = logits + mkey                                    # key padding mask
            m = jnp.max(logits, axis=-1, keepdims=True)
            p = jnp.exp(logits - m)
            p = p * pl.reciprocal(jnp.sum(p, axis=-1, keepdims=True), approx=True)
            ctx = jnp.einsum('bqk,bkd->bqd', p, vh,
                             preferred_element_type=jnp.float32)      # [B, S, dk]
            # concat-over-heads followed by Wo == sum_h ctx_h @ Wo[h*dk:(h+1)*dk, :]
            att = att + jnp.dot(ctx.reshape(BS, D_HEAD), wo[sl, :],
                                preferred_element_type=jnp.float32)
        att = att + bo_ref[0]

        x1 = _layer_norm(x + att, g1_ref[0], be1_ref[0])              # post-norm residual

        # --- position-wise feed-forward ---
        hmid = jnp.maximum(
            jnp.dot(x1, w1_ref[0], preferred_element_type=jnp.float32) + b1_ref[0], 0.0)
        ff = jnp.dot(hmid, w2_ref[0], preferred_element_type=jnp.float32) + b2_ref[0]
        x2 = _layer_norm(x1 + ff, g2_ref[0], be2_ref[0])

        # masked_fill(padded rows, 0) — written back into the resident activation
        o_ref[...] = x2 * keep_ref[...]

    return kernel


# ----------------------------- wrapper --------------------------------------

def sinusoid_positional_embedding(S, D):
    pos = jnp.arange(S, dtype=jnp.float32)[:, None]
    i = jnp.arange(D // 2, dtype=jnp.float32)[None, :]
    ang = pos / jnp.power(10000.0, 2.0 * i / D)
    return jnp.stack([jnp.sin(ang), jnp.cos(ang)], axis=-1).reshape(S, D)


def encoder_forward(features, padding_mask, params):
    B, S, D = features.shape
    L = N_LAYERS
    F = D_FF

    pad = padding_mask[:, 0, 0, :].astype(jnp.float32)              # [B, S], 1.0 == padded
    mkey_bias = (pad * NEG_INF)[:, None, :]                          # [B, 1, S]
    keep_row = (1.0 - pad).reshape(B * S, 1)                         # [B*S, 1]
    pos = jnp.tile(sinusoid_positional_embedding(S, D), (B, 1))      # [B*S, D]
    feats = features.reshape(B * S, D).astype(jnp.float32)

    lp = params["layers"]

    def const2(shape):
        return pl.BlockSpec(shape, lambda l: (0, 0))

    def per_layer(shape_tail):
        return pl.BlockSpec((1,) + shape_tail, lambda l: (l, 0, 0))

    in_specs = [
        const2((B * S, D)),                    # features (flattened)
        const2((B * S, D)),                    # positional embedding
        const2((1, D)),                        # ln gamma
        const2((1, D)),                        # ln beta
        pl.BlockSpec((B, 1, S), lambda l: (0, 0, 0)),   # key-pad additive bias
        const2((B * S, 1)),                    # row keep mask
        per_layer((D, 3 * D)), per_layer((1, 3 * D)),   # wqkv, bqkv
        per_layer((D, D)), per_layer((1, D)),           # wo, bo
        per_layer((1, D)), per_layer((1, D)),           # g1, be1
        per_layer((D, F)), per_layer((1, F)),           # w1, b1
        per_layer((F, D)), per_layer((1, D)),           # w2, b2
        per_layer((1, D)), per_layer((1, D)),           # g2, be2
    ]

    out_flat = pl.pallas_call(
        make_encoder_kernel(B, S),
        out_shape=jax.ShapeDtypeStruct((B * S, D), jnp.float32),
        grid_spec=pltpu.PrefetchScalarGridSpec(
            num_scalar_prefetch=0,
            grid=(L,),
            in_specs=in_specs,
            # constant block index across the layer axis => output stays VMEM-resident and acts
            # as the layer-to-layer activation carry (written back to HBM once at the end).
            out_specs=pl.BlockSpec((B * S, D), lambda l: (0, 0))),
        compiler_params=pltpu.CompilerParams(dimension_semantics=("arbitrary",)),
    )(feats, pos, params["ln_g"], params["ln_b"], mkey_bias, keep_row,
      lp["wqkv"], lp["bqkv"], lp["wo"], lp["bo"], lp["g1"], lp["be1"],
      lp["w1"], lp["b1"], lp["w2"], lp["b2"], lp["g2"], lp["be2"])

    return out_flat.reshape(B, S, D)


# ----------------------------- params ---------------------------------------

def init_params(key):
    L, D, F = N_LAYERS, D_MODEL, D_FF
    ks = jax.random.split(key, 4 * L)
    s = 0.02

    def w(kk, shape):
        return (jax.random.normal(kk, shape) * s).astype(jnp.float32)

    zeros = lambda shape: jnp.zeros(shape, jnp.float32)
    ones = lambda shape: jnp.ones(shape, jnp.float32)

    layers = dict(
        wqkv=jnp.stack([w(ks[4 * i + 0], (D, 3 * D)) for i in range(L)]),   # [L, D, 3D]
        bqkv=zeros((L, 1, 3 * D)),
        wo=jnp.stack([w(ks[4 * i + 1], (D, D)) for i in range(L)]),
        bo=zeros((L, 1, D)),
        g1=ones((L, 1, D)), be1=zeros((L, 1, D)),
        w1=jnp.stack([w(ks[4 * i + 2], (D, F)) for i in range(L)]),
        b1=zeros((L, 1, F)),
        w2=jnp.stack([w(ks[4 * i + 3], (F, D)) for i in range(L)]),
        b2=zeros((L, 1, D)),
        g2=ones((L, 1, D)), be2=zeros((L, 1, D)),
    )
    return dict(ln_g=ones((1, D)), ln_b=zeros((1, D)), layers=layers)


# ----------------------------- demo ------------------------------------------

if __name__ == "__main__":
    B, S = 2, 8
    key = jax.random.PRNGKey(0)
    kf, kp = jax.random.split(key, 2)

    features = jax.random.normal(kf, (B, S, D_MODEL), dtype=jnp.float32)

    # padding mask [B, 1, 1, S] bool, True == padded (last 2 positions of batch element 1)
    pad = jnp.zeros((B, S), dtype=bool).at[1, -2:].set(True)
    padding_mask = pad[:, None, None, :]

    params = init_params(kp)
    out = encoder_forward(features, padding_mask, params)
    jax.block_until_ready(out)

    assert out.shape == (B, S, D_MODEL)
    assert bool(jnp.all(jnp.isfinite(out)))
    # padded rows must be zeroed by the final masked_fill
    assert bool(jnp.all(out[1, -2:, :] == 0.0))
    print("KERNEL_OK")
</pallas_src>

<mosaic_0001>
module attributes {stable_mosaic.version = 11 : i64} {
  func.func @kernel(%arg0: i32, %arg1: memref<16x32xf32, #tpu.memory_space<vmem>>, %arg2: memref<16x32xf32, #tpu.memory_space<vmem>>, %arg3: memref<1x32xf32, #tpu.memory_space<vmem>>, %arg4: memref<1x32xf32, #tpu.memory_space<vmem>>, %arg5: memref<2x1x8xf32, #tpu.memory_space<vmem>>, %arg6: memref<16x1xf32, #tpu.memory_space<vmem>>, %arg7: memref<1x32x96xf32, #tpu.memory_space<vmem>>, %arg8: memref<1x1x96xf32, #tpu.memory_space<vmem>>, %arg9: memref<1x32x32xf32, #tpu.memory_space<vmem>>, %arg10: memref<1x1x32xf32, #tpu.memory_space<vmem>>, %arg11: memref<1x1x32xf32, #tpu.memory_space<vmem>>, %arg12: memref<1x1x32xf32, #tpu.memory_space<vmem>>, %arg13: memref<1x32x64xf32, #tpu.memory_space<vmem>>, %arg14: memref<1x1x64xf32, #tpu.memory_space<vmem>>, %arg15: memref<1x64x32xf32, #tpu.memory_space<vmem>>, %arg16: memref<1x1x32xf32, #tpu.memory_space<vmem>>, %arg17: memref<1x1x32xf32, #tpu.memory_space<vmem>>, %arg18: memref<1x1x32xf32, #tpu.memory_space<vmem>>, %arg19: memref<16x32xf32, #tpu.memory_space<vmem>>) attributes {dimension_semantics = [#tpu.dimension_semantics<arbitrary>], iteration_bounds = array<i64: 2>, scalar_prefetch = 0 : i64, scratch_operands = 0 : i64, tpu.core_type = #tpu.core_type<tc>, window_params = [{pipeline_mode = #tpu.pipeline_mode<synchronous>, transform_indices = @transform_0, window_bounds = array<i64: 16, 32>}, {pipeline_mode = #tpu.pipeline_mode<synchronous>, transform_indices = @transform_1, window_bounds = array<i64: 16, 32>}, {pipeline_mode = #tpu.pipeline_mode<synchronous>, transform_indices = @transform_2, window_bounds = array<i64: 1, 32>}, {pipeline_mode = #tpu.pipeline_mode<synchronous>, transform_indices = @transform_3, window_bounds = array<i64: 1, 32>}, {pipeline_mode = #tpu.pipeline_mode<synchronous>, transform_indices = @transform_4, window_bounds = array<i64: 2, 1, 8>}, {pipeline_mode = #tpu.pipeline_mode<synchronous>, transform_indices = @transform_5, window_bounds = array<i64: 16, 1>}, {transform_indices = @transform_6, window_bounds = array<i64: 1, 32, 96>}, {transform_indices = @transform_7, window_bounds = array<i64: 1, 1, 96>}, {transform_indices = @transform_8, window_bounds = array<i64: 1, 32, 32>}, {transform_indices = @transform_9, window_bounds = array<i64: 1, 1, 32>}, {transform_indices = @transform_10, window_bounds = array<i64: 1, 1, 32>}, {transform_indices = @transform_11, window_bounds = array<i64: 1, 1, 32>}, {transform_indices = @transform_12, window_bounds = array<i64: 1, 32, 64>}, {transform_indices = @transform_13, window_bounds = array<i64: 1, 1, 64>}, {transform_indices = @transform_14, window_bounds = array<i64: 1, 64, 32>}, {transform_indices = @transform_15, window_bounds = array<i64: 1, 1, 32>}, {transform_indices = @transform_16, window_bounds = array<i64: 1, 1, 32>}, {transform_indices = @transform_17, window_bounds = array<i64: 1, 1, 32>}, {pipeline_mode = #tpu.pipeline_mode<synchronous>, transform_indices = @transform_18, window_bounds = array<i64: 16, 32>}]} {
    %c0_i32 = arith.constant 0 : i32
    %0 = arith.cmpi eq, %arg0, %c0_i32 : i32
    %1 = arith.extui %0 : i1 to i32
    %c0_i32_0 = arith.constant 0 : i32
    %2 = arith.cmpi ne, %1, %c0_i32_0 : i32
    scf.if %2 {
      %c0_83 = arith.constant 0 : index
      %c0_84 = arith.constant 0 : index
      %191 = vector.load %arg1[%c0_83, %c0_84] : memref<16x32xf32, #tpu.memory_space<vmem>>, vector<16x32xf32>
      %c0_85 = arith.constant 0 : index
      %c0_86 = arith.constant 0 : index
      %192 = vector.load %arg3[%c0_85, %c0_86] : memref<1x32xf32, #tpu.memory_space<vmem>>, vector<1x32xf32>
      %c0_87 = arith.constant 0 : index
      %c0_88 = arith.constant 0 : index
      %193 = vector.load %arg4[%c0_87, %c0_88] : memref<1x32xf32, #tpu.memory_space<vmem>>, vector<1x32xf32>
      %cst_89 = arith.constant dense<0.000000e+00> : vector<16xf32>
      %194 = vector.multi_reduction <add>, %191, %cst_89 [1] : vector<16x32xf32> to vector<16xf32>
      %195 = vector.shape_cast %194 : vector<16xf32> to vector<16x1xf32>
      %cst_90 = arith.constant 3.200000e+01 : f32
      %196 = vector.broadcast %cst_90 : f32 to vector<16x1xf32>
      %197 = arith.divf %195, %196 : vector<16x1xf32>
      %198 = vector.broadcast %197 : vector<16x1xf32> to vector<16x32xf32>
      %199 = arith.subf %191, %198 : vector<16x32xf32>
      %200 = arith.mulf %199, %199 : vector<16x32xf32>
      %cst_91 = arith.constant dense<0.000000e+00> : vector<16xf32>
      %201 = vector.multi_reduction <add>, %200, %cst_91 [1] : vector<16x32xf32> to vector<16xf32>
      %202 = vector.shape_cast %201 : vector<16xf32> to vector<16x1xf32>
      %cst_92 = arith.constant 3.200000e+01 : f32
      %203 = vector.broadcast %cst_92 : f32 to vector<16x1xf32>
      %204 = arith.divf %202, %203 : vector<16x1xf32>
      %205 = vector.broadcast %197 : vector<16x1xf32> to vector<16x32xf32>
      %206 = arith.subf %191, %205 : vector<16x32xf32>
      %cst_93 = arith.constant 9.99999974E-6 : f32
      %207 = vector.broadcast %cst_93 : f32 to vector<16x1xf32>
      %208 = arith.addf %204, %207 : vector<16x1xf32>
      %209 = math.rsqrt %208 : vector<16x1xf32>
      %210 = vector.broadcast %209 : vector<16x1xf32> to vector<16x32xf32>
      %211 = arith.mulf %206, %210 : vector<16x32xf32>
      %212 = vector.broadcast %192 : vector<1x32xf32> to vector<16x32xf32>
      %213 = arith.mulf %211, %212 : vector<16x32xf32>
      %214 = vector.broadcast %193 : vector<1x32xf32> to vector<16x32xf32>
      %215 = arith.addf %213, %214 : vector<16x32xf32>
      %c0_94 = arith.constant 0 : index
      %c0_95 = arith.constant 0 : index
      %216 = vector.load %arg2[%c0_94, %c0_95] : memref<16x32xf32, #tpu.memory_space<vmem>>, vector<16x32xf32>
      %217 = arith.addf %215, %216 : vector<16x32xf32>
      %c0_96 = arith.constant 0 : index
      %c0_97 = arith.constant 0 : index
      %218 = vector.load %arg19[%c0_96, %c0_97] : memref<16x32xf32, #tpu.memory_space<vmem>>, vector<16x32xf32>
      tpu.vector_store %arg19[%c0_96, %c0_97], %217 {strides = array<i32>} : memref<16x32xf32, #tpu.memory_space<vmem>>, vector<16x32xf32>,
    } else {
    }
    %c0 = arith.constant 0 : index
    %c0_1 = arith.constant 0 : index
    %3 = vector.load %arg19[%c0, %c0_1] : memref<16x32xf32, #tpu.memory_space<vmem>>, vector<16x32xf32>
    %c0_2 = arith.constant 0 : index
    %c0_3 = arith.constant 0 : index
    %c0_4 = arith.constant 0 : index
    %4 = vector.load %arg5[%c0_2, %c0_3, %c0_4] : memref<2x1x8xf32, #tpu.memory_space<vmem>>, vector<2x1x8xf32>
    %c0_5 = arith.constant 0 : index
    %c0_6 = arith.constant 0 : index
    %c0_7 = arith.constant 0 : index
    %5 = vector.load %arg7[%c0_5, %c0_6, %c0_7] : memref<1x32x96xf32, #tpu.memory_space<vmem>>, vector<1x32x96xf32>
    %6 = vector.shape_cast %5 : vector<1x32x96xf32> to vector<32x96xf32>
    %cst = arith.constant dense<0.000000e+00> : vector<16x96xf32>
    %7 = tpu.matmul %3, %6, %cst {dimension_numbers = #tpu.dot_dimension_numbers<[1], [0], [0], [1], [0, 0, 1, 1], [], []>} : vector<16x32xf32>, vector<32x96xf32>, vector<16x96xf32> -> vector<16x96xf32>
    %c0_8 = arith.constant 0 : index
    %c0_9 = arith.constant 0 : index
    %c0_10 = arith.constant 0 : index
    %8 = vector.load %arg8[%c0_8, %c0_9, %c0_10] : memref<1x1x96xf32, #tpu.memory_space<vmem>>, vector<1x1x96xf32>
    %9 = vector.shape_cast %8 : vector<1x1x96xf32> to vector<1x96xf32>
    %10 = vector.broadcast %9 : vector<1x96xf32> to vector<16x96xf32>
    %11 = arith.addf %7, %10 : vector<16x96xf32>
    %12 = vector.extract_strided_slice %11 {offsets = [0, 0], sizes = [16, 32], strides = [1, 1]} : vector<16x96xf32> to vector<16x32xf32>
    %13 = vector.shape_cast %12 : vector<16x32xf32> to vector<2x8x32xf32>
    %14 = vector.extract_strided_slice %11 {offsets = [0, 32], sizes = [16, 32], strides = [1, 1]} : vector<16x96xf32> to vector<16x32xf32>
    %15 = vector.shape_cast %14 : vector<16x32xf32> to vector<2x8x32xf32>
    %16 = vector.extract_strided_slice %11 {offsets = [0, 64], sizes = [16, 32], strides = [1, 1]} : vector<16x96xf32> to vector<16x32xf32>
    %17 = vector.shape_cast %16 : vector<16x32xf32> to vector<2x8x32xf32>
    %c0_11 = arith.constant 0 : index
    %c0_12 = arith.constant 0 : index
    %c0_13 = arith.constant 0 : index
    %18 = vector.load %arg9[%c0_11, %c0_12, %c0_13] : memref<1x32x32xf32, #tpu.memory_space<vmem>>, vector<1x32x32xf32>
    %19 = vector.shape_cast %18 : vector<1x32x32xf32> to vector<32x32xf32>
    %cst_14 = arith.constant 0.000000e+00 : f32
    %20 = vector.broadcast %cst_14 : f32 to vector<16x32xf32>
    %21 = vector.extract_strided_slice %13 {offsets = [0, 0, 0], sizes = [2, 8, 8], strides = [1, 1, 1]} : vector<2x8x32xf32> to vector<2x8x8xf32>
    %22 = vector.extract_strided_slice %15 {offsets = [0, 0, 0], sizes = [2, 8, 8], strides = [1, 1, 1]} : vector<2x8x32xf32> to vector<2x8x8xf32>
    %23 = vector.extract_strided_slice %17 {offsets = [0, 0, 0], sizes = [2, 8, 8], strides = [1, 1, 1]} : vector<2x8x32xf32> to vector<2x8x8xf32>
    "tpu.trace_start"() <{level = 10 : i32, message = "bqd,bkd->bqk"}> : () -> ()
    %cst_15 = arith.constant dense<0.000000e+00> : vector<2x8x8xf32>
    %24 = tpu.matmul %21, %22, %cst_15 {dimension_numbers = #tpu.dot_dimension_numbers<[2], [2], [1], [1], [0, 0, 0, 1, 1, 1], [0], [0]>} : vector<2x8x8xf32>, vector<2x8x8xf32>, vector<2x8x8xf32> -> vector<2x8x8xf32>
    "tpu.trace_stop"() : () -> ()
    %cst_16 = arith.constant 0.353553385 : f32
    %25 = vector.broadcast %cst_16 : f32 to vector<2x8x8xf32>
    %26 = arith.mulf %24, %25 : vector<2x8x8xf32>
    %27 = vector.broadcast %4 : vector<2x1x8xf32> to vector<2x8x8xf32>
    %28 = arith.addf %26, %27 : vector<2x8x8xf32>
    %cst_17 = arith.constant dense<0xFF800000> : vector<2x8xf32>
    %29 = vector.multi_reduction <maximumf>, %28, %cst_17 [2] : vector<2x8x8xf32> to vector<2x8xf32>
    %30 = vector.shape_cast %29 : vector<2x8xf32> to vector<2x8x1xf32>
    %31 = vector.broadcast %30 : vector<2x8x1xf32> to vector<2x8x8xf32>
    %32 = arith.subf %28, %31 : vector<2x8x8xf32>
    %33 = math.exp %32 : vector<2x8x8xf32>
    %cst_18 = arith.constant dense<0.000000e+00> : vector<2x8xf32>
    %34 = vector.multi_reduction <add>, %33, %cst_18 [2] : vector<2x8x8xf32> to vector<2x8xf32>
    %35 = vector.shape_cast %34 : vector<2x8xf32> to vector<2x8x1xf32>
    %36 = tpu.reciprocal %35 {approx = true} : vector<2x8x1xf32> -> vector<2x8x1xf32>
    %37 = vector.broadcast %36 : vector<2x8x1xf32> to vector<2x8x8xf32>
    %38 = arith.mulf %33, %37 : vector<2x8x8xf32>
    "tpu.trace_start"() <{level = 10 : i32, message = "bqk,bkd->bqd"}> : () -> ()
    %cst_19 = arith.constant dense<0.000000e+00> : vector<2x8x8xf32>
    %39 = tpu.matmul %38, %23, %cst_19 {dimension_numbers = #tpu.dot_dimension_numbers<[2], [1], [1], [2], [0, 0, 0, 1, 1, 2], [0], [0]>} : vector<2x8x8xf32>, vector<2x8x8xf32>, vector<2x8x8xf32> -> vector<2x8x8xf32>
    "tpu.trace_stop"() : () -> ()
    %40 = vector.shape_cast %39 : vector<2x8x8xf32> to vector<16x8xf32>
    %41 = vector.extract_strided_slice %19 {offsets = [0, 0], sizes = [8, 32], strides = [1, 1]} : vector<32x32xf32> to vector<8x32xf32>
    %cst_20 = arith.constant dense<0.000000e+00> : vector<16x32xf32>
    %42 = tpu.matmul %40, %41, %cst_20 {dimension_numbers = #tpu.dot_dimension_numbers<[1], [0], [0], [1], [0, 0, 1, 1], [], []>} : vector<16x8xf32>, vector<8x32xf32>, vector<16x32xf32> -> vector<16x32xf32>
    %43 = arith.addf %20, %42 : vector<16x32xf32>
    %44 = vector.extract_strided_slice %13 {offsets = [0, 0, 8], sizes = [2, 8, 8], strides = [1, 1, 1]} : vector<2x8x32xf32> to vector<2x8x8xf32>
    %45 = vector.extract_strided_slice %15 {offsets = [0, 0, 8], sizes = [2, 8, 8], strides = [1, 1, 1]} : vector<2x8x32xf32> to vector<2x8x8xf32>
    %46 = vector.extract_strided_slice %17 {offsets = [0, 0, 8], sizes = [2, 8, 8], strides = [1, 1, 1]} : vector<2x8x32xf32> to vector<2x8x8xf32>
    "tpu.trace_start"() <{level = 10 : i32, message = "bqd,bkd->bqk"}> : () -> ()
    %cst_21 = arith.constant dense<0.000000e+00> : vector<2x8x8xf32>
    %47 = tpu.matmul %44, %45, %cst_21 {dimension_numbers = #tpu.dot_dimension_numbers<[2], [2], [1], [1], [0, 0, 0, 1, 1, 1], [0], [0]>} : vector<2x8x8xf32>, vector<2x8x8xf32>, vector<2x8x8xf32> -> vector<2x8x8xf32>
    "tpu.trace_stop"() : () -> ()
    %cst_22 = arith.constant 0.353553385 : f32
    %48 = vector.broadcast %cst_22 : f32 to vector<2x8x8xf32>
    %49 = arith.mulf %47, %48 : vector<2x8x8xf32>
    %50 = vector.broadcast %4 : vector<2x1x8xf32> to vector<2x8x8xf32>
    %51 = arith.addf %49, %50 : vector<2x8x8xf32>
    %cst_23 = arith.constant dense<0xFF800000> : vector<2x8xf32>
    %52 = vector.multi_reduction <maximumf>, %51, %cst_23 [2] : vector<2x8x8xf32> to vector<2x8xf32>
    %53 = vector.shape_cast %52 : vector<2x8xf32> to vector<2x8x1xf32>
    %54 = vector.broadcast %53 : vector<2x8x1xf32> to vector<2x8x8xf32>
    %55 = arith.subf %51, %54 : vector<2x8x8xf32>
    %56 = math.exp %55 : vector<2x8x8xf32>
    %cst_24 = arith.constant dense<0.000000e+00> : vector<2x8xf32>
    %57 = vector.multi_reduction <add>, %56, %cst_24 [2] : vector<2x8x8xf32> to vector<2x8xf32>
    %58 = vector.shape_cast %57 : vector<2x8xf32> to vector<2x8x1xf32>
    %59 = tpu.reciprocal %58 {approx = true} : vector<2x8x1xf32> -> vector<2x8x1xf32>
    %60 = vector.broadcast %59 : vector<2x8x1xf32> to vector<2x8x8xf32>
    %61 = arith.mulf %56, %60 : vector<2x8x8xf32>
    "tpu.trace_start"() <{level = 10 : i32, message = "bqk,bkd->bqd"}> : () -> ()
    %cst_25 = arith.constant dense<0.000000e+00> : vector<2x8x8xf32>
    %62 = tpu.matmul %61, %46, %cst_25 {dimension_numbers = #tpu.dot_dimension_numbers<[2], [1], [1], [2], [0, 0, 0, 1, 1, 2], [0], [0]>} : vector<2x8x8xf32>, vector<2x8x8xf32>, vector<2x8x8xf32> -> vector<2x8x8xf32>
    "tpu.trace_stop"() : () -> ()
    %63 = vector.shape_cast %62 : vector<2x8x8xf32> to vector<16x8xf32>
    %64 = vector.extract_strided_slice %19 {offsets = [8, 0], sizes = [8, 32], strides = [1, 1]} : vector<32x32xf32> to vector<8x32xf32>
    %cst_26 = arith.constant dense<0.000000e+00> : vector<16x32xf32>
    %65 = tpu.matmul %63, %64, %cst_26 {dimension_numbers = #tpu.dot_dimension_numbers<[1], [0], [0], [1], [0, 0, 1, 1], [], []>} : vector<16x8xf32>, vector<8x32xf32>, vector<16x32xf32> -> vector<16x32xf32>
    %66 = arith.addf %43, %65 : vector<16x32xf32>
    %67 = vector.extract_strided_slice %13 {offsets = [0, 0, 16], sizes = [2, 8, 8], strides = [1, 1, 1]} : vector<2x8x32xf32> to vector<2x8x8xf32>
    %68 = vector.extract_strided_slice %15 {offsets = [0, 0, 16], sizes = [2, 8, 8], strides = [1, 1, 1]} : vector<2x8x32xf32> to vector<2x8x8xf32>
    %69 = vector.extract_strided_slice %17 {offsets = [0, 0, 16], sizes = [2, 8, 8], strides = [1, 1, 1]} : vector<2x8x32xf32> to vector<2x8x8xf32>
    "tpu.trace_start"() <{level = 10 : i32, message = "bqd,bkd->bqk"}> : () -> ()
    %cst_27 = arith.constant dense<0.000000e+00> : vector<2x8x8xf32>
    %70 = tpu.matmul %67, %68, %cst_27 {dimension_numbers = #tpu.dot_dimension_numbers<[2], [2], [1], [1], [0, 0, 0, 1, 1, 1], [0], [0]>} : vector<2x8x8xf32>, vector<2x8x8xf32>, vector<2x8x8xf32> -> vector<2x8x8xf32>
    "tpu.trace_stop"() : () -> ()
    %cst_28 = arith.constant 0.353553385 : f32
    %71 = vector.broadcast %cst_28 : f32 to vector<2x8x8xf32>
    %72 = arith.mulf %70, %71 : vector<2x8x8xf32>
    %73 = vector.broadcast %4 : vector<2x1x8xf32> to vector<2x8x8xf32>
    %74 = arith.addf %72, %73 : vector<2x8x8xf32>
    %cst_29 = arith.constant dense<0xFF800000> : vector<2x8xf32>
    %75 = vector.multi_reduction <maximumf>, %74, %cst_29 [2] : vector<2x8x8xf32> to vector<2x8xf32>
    %76 = vector.shape_cast %75 : vector<2x8xf32> to vector<2x8x1xf32>
    %77 = vector.broadcast %76 : vector<2x8x1xf32> to vector<2x8x8xf32>
    %78 = arith.subf %74, %77 : vector<2x8x8xf32>
    %79 = math.exp %78 : vector<2x8x8xf32>
    %cst_30 = arith.constant dense<0.000000e+00> : vector<2x8xf32>
    %80 = vector.multi_reduction <add>, %79, %cst_30 [2] : vector<2x8x8xf32> to vector<2x8xf32>
    %81 = vector.shape_cast %80 : vector<2x8xf32> to vector<2x8x1xf32>
    %82 = tpu.reciprocal %81 {approx = true} : vector<2x8x1xf32> -> vector<2x8x1xf32>
    %83 = vector.broadcast %82 : vector<2x8x1xf32> to vector<2x8x8xf32>
    %84 = arith.mulf %79, %83 : vector<2x8x8xf32>
    "tpu.trace_start"() <{level = 10 : i32, message = "bqk,bkd->bqd"}> : () -> ()
    %cst_31 = arith.constant dense<0.000000e+00> : vector<2x8x8xf32>
    %85 = tpu.matmul %84, %69, %cst_31 {dimension_numbers = #tpu.dot_dimension_numbers<[2], [1], [1], [2], [0, 0, 0, 1, 1, 2], [0], [0]>} : vector<2x8x8xf32>, vector<2x8x8xf32>, vector<2x8x8xf32> -> vector<2x8x8xf32>
    "tpu.trace_stop"() : () -> ()
    %86 = vector.shape_cast %85 : vector<2x8x8xf32> to vector<16x8xf32>
    %87 = vector.extract_strided_slice %19 {offsets = [16, 0], sizes = [8, 32], strides = [1, 1]} : vector<32x32xf32> to vector<8x32xf32>
    %cst_32 = arith.constant dense<0.000000e+00> : vector<16x32xf32>
    %88 = tpu.matmul %86, %87, %cst_32 {dimension_numbers = #tpu.dot_dimension_numbers<[1], [0], [0], [1], [0, 0, 1, 1], [], []>} : vector<16x8xf32>, vector<8x32xf32>, vector<16x32xf32> -> vector<16x32xf32>
    %89 = arith.addf %66, %88 : vector<16x32xf32>
    %90 = vector.extract_strided_slice %13 {offsets = [0, 0, 24], sizes = [2, 8, 8], strides = [1, 1, 1]} : vector<2x8x32xf32> to vector<2x8x8xf32>
    %91 = vector.extract_strided_slice %15 {offsets = [0, 0, 24], sizes = [2, 8, 8], strides = [1, 1, 1]} : vector<2x8x32xf32> to vector<2x8x8xf32>
    %92 = vector.extract_strided_slice %17 {offsets = [0, 0, 24], sizes = [2, 8, 8], strides = [1, 1, 1]} : vector<2x8x32xf32> to vector<2x8x8xf32>
    "tpu.trace_start"() <{level = 10 : i32, message = "bqd,bkd->bqk"}> : () -> ()
    %cst_33 = arith.constant dense<0.000000e+00> : vector<2x8x8xf32>
    %93 = tpu.matmul %90, %91, %cst_33 {dimension_numbers = #tpu.dot_dimension_numbers<[2], [2], [1], [1], [0, 0, 0, 1, 1, 1], [0], [0]>} : vector<2x8x8xf32>, vector<2x8x8xf32>, vector<2x8x8xf32> -> vector<2x8x8xf32>
    "tpu.trace_stop"() : () -> ()
    %cst_34 = arith.constant 0.353553385 : f32
    %94 = vector.broadcast %cst_34 : f32 to vector<2x8x8xf32>
    %95 = arith.mulf %93, %94 : vector<2x8x8xf32>
    %96 = vector.broadcast %4 : vector<2x1x8xf32> to vector<2x8x8xf32>
    %97 = arith.addf %95, %96 : vector<2x8x8xf32>
    %cst_35 = arith.constant dense<0xFF800000> : vector<2x8xf32>
    %98 = vector.multi_reduction <maximumf>, %97, %cst_35 [2] : vector<2x8x8xf32> to vector<2x8xf32>
    %99 = vector.shape_cast %98 : vector<2x8xf32> to vector<2x8x1xf32>
    %100 = vector.broadcast %99 : vector<2x8x1xf32> to vector<2x8x8xf32>
    %101 = arith.subf %97, %100 : vector<2x8x8xf32>
    %102 = math.exp %101 : vector<2x8x8xf32>
    %cst_36 = arith.constant dense<0.000000e+00> : vector<2x8xf32>
    %103 = vector.multi_reduction <add>, %102, %cst_36 [2] : vector<2x8x8xf32> to vector<2x8xf32>
    %104 = vector.shape_cast %103 : vector<2x8xf32> to vector<2x8x1xf32>
    %105 = tpu.reciprocal %104 {approx = true} : vector<2x8x1xf32> -> vector<2x8x1xf32>
    %106 = vector.broadcast %105 : vector<2x8x1xf32> to vector<2x8x8xf32>
    %107 = arith.mulf %102, %106 : vector<2x8x8xf32>
    "tpu.trace_start"() <{level = 10 : i32, message = "bqk,bkd->bqd"}> : () -> ()
    %cst_37 = arith.constant dense<0.000000e+00> : vector<2x8x8xf32>
    %108 = tpu.matmul %107, %92, %cst_37 {dimension_numbers = #tpu.dot_dimension_numbers<[2], [1], [1], [2], [0, 0, 0, 1, 1, 2], [0], [0]>} : vector<2x8x8xf32>, vector<2x8x8xf32>, vector<2x8x8xf32> -> vector<2x8x8xf32>
    "tpu.trace_stop"() : () -> ()
    %109 = vector.shape_cast %108 : vector<2x8x8xf32> to vector<16x8xf32>
    %110 = vector.extract_strided_slice %19 {offsets = [24, 0], sizes = [8, 32], strides = [1, 1]} : vector<32x32xf32> to vector<8x32xf32>
    %cst_38 = arith.constant dense<0.000000e+00> : vector<16x32xf32>
    %111 = tpu.matmul %109, %110, %cst_38 {dimension_numbers = #tpu.dot_dimension_numbers<[1], [0], [0], [1], [0, 0, 1, 1], [], []>} : vector<16x8xf32>, vector<8x32xf32>, vector<16x32xf32> -> vector<16x32xf32>
    %112 = arith.addf %89, %111 : vector<16x32xf32>
    %c0_39 = arith.constant 0 : index
    %c0_40 = arith.constant 0 : index
    %c0_41 = arith.constant 0 : index
    %113 = vector.load %arg10[%c0_39, %c0_40, %c0_41] : memref<1x1x32xf32, #tpu.memory_space<vmem>>, vector<1x1x32xf32>
    %114 = vector.shape_cast %113 : vector<1x1x32xf32> to vector<1x32xf32>
    %115 = vector.broadcast %114 : vector<1x32xf32> to vector<16x32xf32>
    %116 = arith.addf %112, %115 : vector<16x32xf32>
    %117 = arith.addf %3, %116 : vector<16x32xf32>
    %c0_42 = arith.constant 0 : index
    %c0_43 = arith.constant 0 : index
    %c0_44 = arith.constant 0 : index
    %118 = vector.load %arg11[%c0_42, %c0_43, %c0_44] : memref<1x1x32xf32, #tpu.memory_space<vmem>>, vector<1x1x32xf32>
    %119 = vector.shape_cast %118 : vector<1x1x32xf32> to vector<1x32xf32>
    %c0_45 = arith.constant 0 : index
    %c0_46 = arith.constant 0 : index
    %c0_47 = arith.constant 0 : index
    %120 = vector.load %arg12[%c0_45, %c0_46, %c0_47] : memref<1x1x32xf32, #tpu.memory_space<vmem>>, vector<1x1x32xf32>
    %121 = vector.shape_cast %120 : vector<1x1x32xf32> to vector<1x32xf32>
    %cst_48 = arith.constant dense<0.000000e+00> : vector<16xf32>
    %122 = vector.multi_reduction <add>, %117, %cst_48 [1] : vector<16x32xf32> to vector<16xf32>
    %123 = vector.shape_cast %122 : vector<16xf32> to vector<16x1xf32>
    %cst_49 = arith.constant 3.200000e+01 : f32
    %124 = vector.broadcast %cst_49 : f32 to vector<16x1xf32>
    %125 = arith.divf %123, %124 : vector<16x1xf32>
    %126 = vector.broadcast %125 : vector<16x1xf32> to vector<16x32xf32>
    %127 = arith.subf %117, %126 : vector<16x32xf32>
    %128 = arith.mulf %127, %127 : vector<16x32xf32>
    %cst_50 = arith.constant dense<0.000000e+00> : vector<16xf32>
    %129 = vector.multi_reduction <add>, %128, %cst_50 [1] : vector<16x32xf32> to vector<16xf32>
    %130 = vector.shape_cast %129 : vector<16xf32> to vector<16x1xf32>
    %cst_51 = arith.constant 3.200000e+01 : f32
    %131 = vector.broadcast %cst_51 : f32 to vector<16x1xf32>
    %132 = arith.divf %130, %131 : vector<16x1xf32>
    %133 = vector.broadcast %125 : vector<16x1xf32> to vector<16x32xf32>
    %134 = arith.subf %117, %133 : vector<16x32xf32>
    %cst_52 = arith.constant 9.99999974E-6 : f32
    %135 = vector.broadcast %cst_52 : f32 to vector<16x1xf32>
    %136 = arith.addf %132, %135 : vector<16x1xf32>
    %137 = math.rsqrt %136 : vector<16x1xf32>
    %138 = vector.broadcast %137 : vector<16x1xf32> to vector<16x32xf32>
    %139 = arith.mulf %134, %138 : vector<16x32xf32>
    %140 = vector.broadcast %119 : vector<1x32xf32> to vector<16x32xf32>
    %141 = arith.mulf %139, %140 : vector<16x32xf32>
    %142 = vector.broadcast %121 : vector<1x32xf32> to vector<16x32xf32>
    %143 = arith.addf %141, %142 : vector<16x32xf32>
    %c0_53 = arith.constant 0 : index
    %c0_54 = arith.constant 0 : index
    %c0_55 = arith.constant 0 : index
    %144 = vector.load %arg13[%c0_53, %c0_54, %c0_55] : memref<1x32x64xf32, #tpu.memory_space<vmem>>, vector<1x32x64xf32>
    %145 = vector.shape_cast %144 : vector<1x32x64xf32> to vector<32x64xf32>
    %cst_56 = arith.constant dense<0.000000e+00> : vector<16x64xf32>
    %146 = tpu.matmul %143, %145, %cst_56 {dimension_numbers = #tpu.dot_dimension_numbers<[1], [0], [0], [1], [0, 0, 1, 1], [], []>} : vector<16x32xf32>, vector<32x64xf32>, vector<16x64xf32> -> vector<16x64xf32>
    %c0_57 = arith.constant 0 : index
    %c0_58 = arith.constant 0 : index
    %c0_59 = arith.constant 0 : index
    %147 = vector.load %arg14[%c0_57, %c0_58, %c0_59] : memref<1x1x64xf32, #tpu.memory_space<vmem>>, vector<1x1x64xf32>
    %148 = vector.shape_cast %147 : vector<1x1x64xf32> to vector<1x64xf32>
    %149 = vector.broadcast %148 : vector<1x64xf32> to vector<16x64xf32>
    %150 = arith.addf %146, %149 : vector<16x64xf32>
    %cst_60 = arith.constant 0.000000e+00 : f32
    %151 = vector.broadcast %cst_60 : f32 to vector<16x64xf32>
    %152 = arith.maximumf %150, %151 : vector<16x64xf32>
    %c0_61 = arith.constant 0 : index
    %c0_62 = arith.constant 0 : index
    %c0_63 = arith.constant 0 : index
    %153 = vector.load %arg15[%c0_61, %c0_62, %c0_63] : memref<1x64x32xf32, #tpu.memory_space<vmem>>, vector<1x64x32xf32>
    %154 = vector.shape_cast %153 : vector<1x64x32xf32> to vector<64x32xf32>
    %cst_64 = arith.constant dense<0.000000e+00> : vector<16x32xf32>
    %155 = tpu.matmul %152, %154, %cst_64 {dimension_numbers = #tpu.dot_dimension_numbers<[1], [0], [0], [1], [0, 0, 1, 1], [], []>} : vector<16x64xf32>, vector<64x32xf32>, vector<16x32xf32> -> vector<16x32xf32>
    %c0_65 = arith.constant 0 : index
    %c0_66 = arith.constant 0 : index
    %c0_67 = arith.constant 0 : index
    %156 = vector.load %arg16[%c0_65, %c0_66, %c0_67] : memref<1x1x32xf32, #tpu.memory_space<vmem>>, vector<1x1x32xf32>
    %157 = vector.shape_cast %156 : vector<1x1x32xf32> to vector<1x32xf32>
    %158 = vector.broadcast %157 : vector<1x32xf32> to vector<16x32xf32>
    %159 = arith.addf %155, %158 : vector<16x32xf32>
    %160 = arith.addf %143, %159 : vector<16x32xf32>
    %c0_68 = arith.constant 0 : index
    %c0_69 = arith.constant 0 : index
    %c0_70 = arith.constant 0 : index
    %161 = vector.load %arg17[%c0_68, %c0_69, %c0_70] : memref<1x1x32xf32, #tpu.memory_space<vmem>>, vector<1x1x32xf32>
    %162 = vector.shape_cast %161 : vector<1x1x32xf32> to vector<1x32xf32>
    %c0_71 = arith.constant 0 : index
    %c0_72 = arith.constant 0 : index
    %c0_73 = arith.constant 0 : index
    %163 = vector.load %arg18[%c0_71, %c0_72, %c0_73] : memref<1x1x32xf32, #tpu.memory_space<vmem>>, vector<1x1x32xf32>
    %164 = vector.shape_cast %163 : vector<1x1x32xf32> to vector<1x32xf32>
    %cst_74 = arith.constant dense<0.000000e+00> : vector<16xf32>
    %165 = vector.multi_reduction <add>, %160, %cst_74 [1] : vector<16x32xf32> to vector<16xf32>
    %166 = vector.shape_cast %165 : vector<16xf32> to vector<16x1xf32>
    %cst_75 = arith.constant 3.200000e+01 : f32
    %167 = vector.broadcast %cst_75 : f32 to vector<16x1xf32>
    %168 = arith.divf %166, %167 : vector<16x1xf32>
    %169 = vector.broadcast %168 : vector<16x1xf32> to vector<16x32xf32>
    %170 = arith.subf %160, %169 : vector<16x32xf32>
    %171 = arith.mulf %170, %170 : vector<16x32xf32>
    %cst_76 = arith.constant dense<0.000000e+00> : vector<16xf32>
    %172 = vector.multi_reduction <add>, %171, %cst_76 [1] : vector<16x32xf32> to vector<16xf32>
    %173 = vector.shape_cast %172 : vector<16xf32> to vector<16x1xf32>
    %cst_77 = arith.constant 3.200000e+01 : f32
    %174 = vector.broadcast %cst_77 : f32 to vector<16x1xf32>
    %175 = arith.divf %173, %174 : vector<16x1xf32>
    %176 = vector.broadcast %168 : vector<16x1xf32> to vector<16x32xf32>
    %177 = arith.subf %160, %176 : vector<16x32xf32>
    %cst_78 = arith.constant 9.99999974E-6 : f32
    %178 = vector.broadcast %cst_78 : f32 to vector<16x1xf32>
    %179 = arith.addf %175, %178 : vector<16x1xf32>
    %180 = math.rsqrt %179 : vector<16x1xf32>
    %181 = vector.broadcast %180 : vector<16x1xf32> to vector<16x32xf32>
    %182 = arith.mulf %177, %181 : vector<16x32xf32>
    %183 = vector.broadcast %162 : vector<1x32xf32> to vector<16x32xf32>
    %184 = arith.mulf %182, %183 : vector<16x32xf32>
    %185 = vector.broadcast %164 : vector<1x32xf32> to vector<16x32xf32>
    %186 = arith.addf %184, %185 : vector<16x32xf32>
    %c0_79 = arith.constant 0 : index
    %c0_80 = arith.constant 0 : index
    %187 = vector.load %arg6[%c0_79, %c0_80] : memref<16x1xf32, #tpu.memory_space<vmem>>, vector<16x1xf32>
    %188 = vector.broadcast %187 : vector<16x1xf32> to vector<16x32xf32>
    %189 = arith.mulf %186, %188 : vector<16x32xf32>
    %c0_81 = arith.constant 0 : index
    %c0_82 = arith.constant 0 : index
    %190 = vector.load %arg19[%c0_81, %c0_82] : memref<16x32xf32, #tpu.memory_space<vmem>>, vector<16x32xf32>
    tpu.vector_store %arg19[%c0_81, %c0_82], %189 {strides = array<i32>} : memref<16x32xf32, #tpu.memory_space<vmem>>, vector<16x32xf32>,
    return
  }
  func.func @transform_0(%arg0: i32) -> (i32, i32) {
    %c0_i32 = arith.constant 0 : i32
    %c0_i32_0 = arith.constant 0 : i32
    %c0_i32_1 = arith.constant 0 : i32
    return %c0_i32, %c0_i32_0 : i32, i32
  }
  func.func @transform_1(%arg0: i32) -> (i32, i32) {
    %c0_i32 = arith.constant 0 : i32
    %c0_i32_0 = arith.constant 0 : i32
    %c0_i32_1 = arith.constant 0 : i32
    return %c0_i32, %c0_i32_0 : i32, i32
  }
  func.func @transform_2(%arg0: i32) -> (i32, i32) {
    %c0_i32 = arith.constant 0 : i32
    %c0_i32_0 = arith.constant 0 : i32
    %c0_i32_1 = arith.constant 0 : i32
    return %c0_i32, %c0_i32_0 : i32, i32
  }
  func.func @transform_3(%arg0: i32) -> (i32, i32) {
    %c0_i32 = arith.constant 0 : i32
    %c0_i32_0 = arith.constant 0 : i32
    %c0_i32_1 = arith.constant 0 : i32
    return %c0_i32, %c0_i32_0 : i32, i32
  }
  func.func @transform_4(%arg0: i32) -> (i32, i32, i32) {
    %c0_i32 = arith.constant 0 : i32
    %c0_i32_0 = arith.constant 0 : i32
    %c0_i32_1 = arith.constant 0 : i32
    %c0_i32_2 = arith.constant 0 : i32
    return %c0_i32, %c0_i32_0, %c0_i32_1 : i32, i32, i32
  }
  func.func @transform_5(%arg0: i32) -> (i32, i32) {
    %c0_i32 = arith.constant 0 : i32
    %c0_i32_0 = arith.constant 0 : i32
    %c0_i32_1 = arith.constant 0 : i32
    return %c0_i32, %c0_i32_0 : i32, i32
  }
  func.func @transform_6(%arg0: i32) -> (i32, i32, i32) {
    %c0_i32 = arith.constant 0 : i32
    %c0_i32_0 = arith.constant 0 : i32
    %c0_i32_1 = arith.constant 0 : i32
    return %arg0, %c0_i32, %c0_i32_0 : i32, i32, i32
  }
  func.func @transform_7(%arg0: i32) -> (i32, i32, i32) {
    %c0_i32 = arith.constant 0 : i32
    %c0_i32_0 = arith.constant 0 : i32
    %c0_i32_1 = arith.constant 0 : i32
    return %arg0, %c0_i32, %c0_i32_0 : i32, i32, i32
  }
  func.func @transform_8(%arg0: i32) -> (i32, i32, i32) {
    %c0_i32 = arith.constant 0 : i32
    %c0_i32_0 = arith.constant 0 : i32
    %c0_i32_1 = arith.constant 0 : i32
    return %arg0, %c0_i32, %c0_i32_0 : i32, i32, i32
  }
  func.func @transform_9(%arg0: i32) -> (i32, i32, i32) {
    %c0_i32 = arith.constant 0 : i32
    %c0_i32_0 = arith.constant 0 : i32
    %c0_i32_1 = arith.constant 0 : i32
    return %arg0, %c0_i32, %c0_i32_0 : i32, i32, i32
  }
  func.func @transform_10(%arg0: i32) -> (i32, i32, i32) {
    %c0_i32 = arith.constant 0 : i32
    %c0_i32_0 = arith.constant 0 : i32
    %c0_i32_1 = arith.constant 0 : i32
    return %arg0, %c0_i32, %c0_i32_0 : i32, i32, i32
  }
  func.func @transform_11(%arg0: i32) -> (i32, i32, i32) {
    %c0_i32 = arith.constant 0 : i32
    %c0_i32_0 = arith.constant 0 : i32
    %c0_i32_1 = arith.constant 0 : i32
    return %arg0, %c0_i32, %c0_i32_0 : i32, i32, i32
  }
  func.func @transform_12(%arg0: i32) -> (i32, i32, i32) {
    %c0_i32 = arith.constant 0 : i32
    %c0_i32_0 = arith.constant 0 : i32
    %c0_i32_1 = arith.constant 0 : i32
    return %arg0, %c0_i32, %c0_i32_0 : i32, i32, i32
  }
  func.func @transform_13(%arg0: i32) -> (i32, i32, i32) {
    %c0_i32 = arith.constant 0 : i32
    %c0_i32_0 = arith.constant 0 : i32
    %c0_i32_1 = arith.constant 0 : i32
    return %arg0, %c0_i32, %c0_i32_0 : i32, i32, i32
  }
  func.func @transform_14(%arg0: i32) -> (i32, i32, i32) {
    %c0_i32 = arith.constant 0 : i32
    %c0_i32_0 = arith.constant 0 : i32
    %c0_i32_1 = arith.constant 0 : i32
    return %arg0, %c0_i32, %c0_i32_0 : i32, i32, i32
  }
  func.func @transform_15(%arg0: i32) -> (i32, i32, i32) {
    %c0_i32 = arith.constant 0 : i32
    %c0_i32_0 = arith.constant 0 : i32
    %c0_i32_1 = arith.constant 0 : i32
    return %arg0, %c0_i32, %c0_i32_0 : i32, i32, i32
  }
  func.func @transform_16(%arg0: i32) -> (i32, i32, i32) {
    %c0_i32 = arith.constant 0 : i32
    %c0_i32_0 = arith.constant 0 : i32
    %c0_i32_1 = arith.constant 0 : i32
    return %arg0, %c0_i32, %c0_i32_0 : i32, i32, i32
  }
  func.func @transform_17(%arg0: i32) -> (i32, i32, i32) {
    %c0_i32 = arith.constant 0 : i32
    %c0_i32_0 = arith.constant 0 : i32
    %c0_i32_1 = arith.constant 0 : i32
    return %arg0, %c0_i32, %c0_i32_0 : i32, i32, i32
  }
  func.func @transform_18(%arg0: i32) -> (i32, i32) {
    %c0_i32 = arith.constant 0 : i32
    %c0_i32_0 = arith.constant 0 : i32
    %c0_i32_1 = arith.constant 0 : i32
    return %c0_i32, %c0_i32_0 : i32, i32
  }
}

</mosaic_0001>

<llo_original>
// kernel: tpu_custom_call.1
$region0: #{tpu_custom_call.1}
  #allocation0 [shape = 'u32[]', space=smem, size = 0x4, offset = 0x4, fixed_abs, tag = 'smem constant byte address 0x4 - core index']
  #allocation1 [shape = 'u32[144,128]{1,0:T(1,128)}', space=vmem, size = 0x12000, scoped, tag = 'internal scratch']
  %s0 = inlined_call_operand.vmem [shape: f32[16,32], index: 0, kind: input, shape index: {}]
  %s1 = inlined_call_operand.hbm [shape: f32[16,32], index: 1, kind: input, shape index: {}]
  %s2 = inlined_call_operand.hbm [shape: f32[1,32], index: 2, kind: input, shape index: {}]
  %s3 = inlined_call_operand.hbm [shape: f32[1,32], index: 3, kind: input, shape index: {}]
  %s4 = inlined_call_operand.vmem [shape: f32[2,1,8], index: 4, kind: input, shape index: {}]
  %s5 = inlined_call_operand.vmem [shape: f32[16,1], index: 5, kind: input, shape index: {}]
  %s6 = inlined_call_operand.vmem [shape: f32[2,32,96], index: 6, kind: input, shape index: {}]
  %s7 = inlined_call_operand.vmem [shape: f32[2,1,96], index: 7, kind: input, shape index: {}]
  %s8 = inlined_call_operand.vmem [shape: f32[2,32,32], index: 8, kind: input, shape index: {}]
  %s9 = inlined_call_operand.vmem [shape: f32[2,1,32], index: 9, kind: input, shape index: {}]
  %s10 = inlined_call_operand.vmem [shape: f32[2,1,32], index: 10, kind: input, shape index: {}]
  %s11 = inlined_call_operand.vmem [shape: f32[2,1,32], index: 11, kind: input, shape index: {}]
  %s12 = inlined_call_operand.vmem [shape: f32[2,32,64], index: 12, kind: input, shape index: {}]
  %s13 = inlined_call_operand.vmem [shape: f32[2,1,64], index: 13, kind: input, shape index: {}]
  %s14 = inlined_call_operand.vmem [shape: f32[2,64,32], index: 14, kind: input, shape index: {}]
  %s15 = inlined_call_operand.vmem [shape: f32[2,1,32], index: 15, kind: input, shape index: {}]
  %s16 = inlined_call_operand.vmem [shape: f32[2,1,32], index: 16, kind: input, shape index: {}]
  %s17 = inlined_call_operand.vmem [shape: f32[2,1,32], index: 17, kind: input, shape index: {}]
  %s18 = inlined_call_operand.hbm [shape: f32[16,32], index: 18, kind: output, shape index: {}]
  %s19 = sld [smem:[#allocation0]]
  $region121: #{tpu_custom_call.1} parent=0
    _
  %s21 = ssub.s32 1, %s19
  %s22 = scalar_select 0, %s21, %s19
  $region1: #{tpu_custom_call.1} parent=0
    #allocation2 [shape = 'u8[8192]{0}', space=vmem, size = 0x2000, scoped, tag = 'input window, operand 1, single buffered']
    #allocation3 [shape = 's32[2]{0}', space=sflag, size = 0x8, scoped, tag = 'scoped memory for tpu_custom_call.1']
    #allocation4 [shape = 's32[2]{0}', space=sflag, size = 0x8, scoped, tag = 'scoped memory for tpu_custom_call.1']
    #allocation5 [shape = 'u8[512]{0}', space=vmem, size = 0x400, scoped, tag = 'input window, operand 2, single buffered']
    #allocation6 [shape = 's32[1]{0}', space=sflag, size = 0x4, scoped, tag = 'scoped memory for tpu_custom_call.1']
    #allocation7 [shape = 'u8[512]{0}', space=vmem, size = 0x400, scoped, tag = 'input window, operand 3, single buffered']
    #allocation8 [shape = 'u8[8192]{0}', space=vmem, size = 0x2000, scoped, tag = 'output window, operand 0, single buffered']
    %23 = vsyncpa [#allocation3], 0
    %24 = vsyncpa [#allocation6], 0
    %25 = vsyncpa [#allocation4], 0
    loop: start=0, step=1, limit=4
    $region2: #{tpu_custom_call.1} parent=1 // loop_pre_header
      _
    $region3: #{tpu_custom_call.1} parent=1 // loop_header
      %s27 = sphi 0, %s31
      %p28 = scmp.ge.s32.totalorder %s27, 4
      %s35 = sphi 0, %s35
      %s37 = sphi 0, %s35
      %s38 = sphi 0, %s37
      %s52 = sphi 0, %s38
      %s56 = sphi 0, %s56
      %s58 = sphi 0, %s56
      %s59 = sphi 0, %s58
      %s73 = sphi 0, %s59
      %s77 = sphi 0, %s77
      %s79 = sphi 0, %s77
      %s80 = sphi 0, %s79
      %s94 = sphi 0, %s80
      %s98 = sphi 0, %s98
      %s100 = sphi 0, %s98
      %s101 = sphi 0, %s100
      %s115 = sphi 0, %s101
      %s119 = sphi 0, %s119
      %s121 = sphi 0, %s119
      %s122 = sphi 0, %s121
      %s136 = sphi 0, %s122
      %s140 = sphi 0, %s140
      %s142 = sphi 0, %s140
      %s143 = sphi 0, %s142
      %s157 = sphi 0, %s143
      %s163 = sphi 0, %s165
      %s166 = sphi 0, %s163
      %s167 = sphi 0, %s166
      %s183 = sphi 0, %s167
      %s189 = sphi 0, %s191
      %s192 = sphi 0, %s189
      %s193 = sphi 0, %s192
      %s209 = sphi 0, %s193
      %s215 = sphi 0, %s217
      %s218 = sphi 0, %s215
      %s219 = sphi 0, %s218
      %s235 = sphi 0, %s219
      %s241 = sphi 0, %s243
      %s244 = sphi 0, %s241
      %s245 = sphi 0, %s244
      %s261 = sphi 0, %s245
      %s267 = sphi 0, %s269
      %s270 = sphi 0, %s267
      %s271 = sphi 0, %s270
      %s287 = sphi 0, %s271
      %s293 = sphi 0, %s295
      %s296 = sphi 0, %s293
      %s297 = sphi 0, %s296
      %s313 = sphi 0, %s297
      %s319 = sphi 0, %s321
      %s322 = sphi 0, %s319
      %s323 = sphi 0, %s322
      %s339 = sphi 0, %s323
      %s345 = sphi 0, %s347
      %s348 = sphi 0, %s345
      %s349 = sphi 0, %s348
      %s365 = sphi 0, %s349
      %s371 = sphi 0, %s373
      %s374 = sphi 0, %s371
      %s375 = sphi 0, %s374
      %s391 = sphi 0, %s375
      %s397 = sphi 0, %s399
      %s400 = sphi 0, %s397
      %s401 = sphi 0, %s400
      %s417 = sphi 0, %s401
      %s423 = sphi 0, %s425
      %s426 = sphi 0, %s423
      %s427 = sphi 0, %s426
      %s443 = sphi 0, %s427
      %s449 = sphi 0, %s451
      %s452 = sphi 0, %s449
      %s453 = sphi 0, %s452
      %s469 = sphi 0, %s453
      %s473 = sphi 0, %s473
      %s475 = sphi 0, %s473
      %s476 = sphi 0, %s475
      %s490 = sphi 0, %s476
    $region4: #{tpu_custom_call.1} parent=1 // loop_header_branch
      %30 = sbr.rel (%p28) target = $region8
    $region5: #{tpu_custom_call.1} parent=1 // loop_body
      %s32 = ssub.s32 %s27, 1
      %s33 = ssub.s32 %s27, 2
      %s34 = sadd.s32 %s27, 1
      %s36 = sadd.s32 %s35, 1
      %p39 = scmp.eq.s32.totalorder %s27, 1
      %p40 = scmp.ne.s32.totalorder %s35, %s37
      %p41 = scmp.eq.s32.totalorder %s27, 0
      %p42 = por %p40, %p41
      %p43 = scmp.ne.s32.totalorder %s35, %s37
      %p44 = scmp.eq.s32.totalorder %s32, 1
      %p45 = por %p43, %p44
      %p46 = scmp.ne.s32.totalorder %s37, %s38
      %p47 = scmp.eq.s32.totalorder %s32, 0
      %p48 = por %p46, %p47
      %p49 = scmp.ne.s32.totalorder %s37, %s38
      %p50 = scmp.eq.s32.totalorder %s33, 1
      %p51 = por %p49, %p50
      %p53 = scmp.ne.s32.totalorder %s38, %s52
      %p54 = scmp.eq.s32.totalorder %s33, 0
      %p55 = por %p53, %p54
      %s57 = sadd.s32 %s56, 1
      %p60 = scmp.eq.s32.totalorder %s27, 1
      %p61 = scmp.ne.s32.totalorder %s56, %s58
      %p62 = scmp.eq.s32.totalorder %s27, 0
      %p63 = por %p61, %p62
      %p64 = scmp.ne.s32.totalorder %s56, %s58
      %p65 = scmp.eq.s32.totalorder %s32, 1
      %p66 = por %p64, %p65
      %p67 = scmp.ne.s32.totalorder %s58, %s59
      %p68 = scmp.eq.s32.totalorder %s32, 0
      %p69 = por %p67, %p68
      %p70 = scmp.ne.s32.totalorder %s58, %s59
      %p71 = scmp.eq.s32.totalorder %s33, 1
      %p72 = por %p70, %p71
      %p74 = scmp.ne.s32.totalorder %s59, %s73
      %p75 = scmp.eq.s32.totalorder %s33, 0
      %p76 = por %p74, %p75
      %s78 = sadd.s32 %s77, 1
      %p81 = scmp.eq.s32.totalorder %s27, 1
      %p82 = scmp.ne.s32.totalorder %s77, %s79
      %p83 = scmp.eq.s32.totalorder %s27, 0
      %p84 = por %p82, %p83
      %p85 = scmp.ne.s32.totalorder %s77, %s79
      %p86 = scmp.eq.s32.totalorder %s32, 1
      %p87 = por %p85, %p86
      %p88 = scmp.ne.s32.totalorder %s79, %s80
      %p89 = scmp.eq.s32.totalorder %s32, 0
      %p90 = por %p88, %p89
      %p91 = scmp.ne.s32.totalorder %s79, %s80
      %p92 = scmp.eq.s32.totalorder %s33, 1
      %p93 = por %p91, %p92
      %p95 = scmp.ne.s32.totalorder %s80, %s94
      %p96 = scmp.eq.s32.totalorder %s33, 0
      %p97 = por %p95, %p96
      %s99 = sadd.s32 %s98, 1
      %p102 = scmp.eq.s32.totalorder %s27, 1
      %p103 = scmp.ne.s32.totalorder %s98, %s100
      %p104 = scmp.eq.s32.totalorder %s27, 0
      %p105 = por %p103, %p104
      %p106 = scmp.ne.s32.totalorder %s98, %s100
      %p107 = scmp.eq.s32.totalorder %s32, 1
      %p108 = por %p106, %p107
      %p109 = scmp.ne.s32.totalorder %s100, %s101
      %p110 = scmp.eq.s32.totalorder %s32, 0
      %p111 = por %p109, %p110
      %p112 = scmp.ne.s32.totalorder %s100, %s101
      %p113 = scmp.eq.s32.totalorder %s33, 1
      %p114 = por %p112, %p113
      %p116 = scmp.ne.s32.totalorder %s101, %s115
      %p117 = scmp.eq.s32.totalorder %s33, 0
      %p118 = por %p116, %p117
      %s120 = sadd.s32 %s119, 1
      %p123 = scmp.eq.s32.totalorder %s27, 1
      %p124 = scmp.ne.s32.totalorder %s119, %s121
      %p125 = scmp.eq.s32.totalorder %s27, 0
      %p126 = por %p124, %p125
      %p127 = scmp.ne.s32.totalorder %s119, %s121
      %p128 = scmp.eq.s32.totalorder %s32, 1
      %p129 = por %p127, %p128
      %p130 = scmp.ne.s32.totalorder %s121, %s122
      %p131 = scmp.eq.s32.totalorder %s32, 0
      %p132 = por %p130, %p131
      %p133 = scmp.ne.s32.totalorder %s121, %s122
      %p134 = scmp.eq.s32.totalorder %s33, 1
      %p135 = por %p133, %p134
      %p137 = scmp.ne.s32.totalorder %s122, %s136
      %p138 = scmp.eq.s32.totalorder %s33, 0
      %p139 = por %p137, %p138
      %s141 = sadd.s32 %s140, 1
      %p144 = scmp.eq.s32.totalorder %s27, 1
      %p145 = scmp.ne.s32.totalorder %s140, %s142
      %p146 = scmp.eq.s32.totalorder %s27, 0
      %p147 = por %p145, %p146
      %p148 = scmp.ne.s32.totalorder %s140, %s142
      %p149 = scmp.eq.s32.totalorder %s32, 1
      %p150 = por %p148, %p149
      %p151 = scmp.ne.s32.totalorder %s142, %s143
      %p152 = scmp.eq.s32.totalorder %s32, 0
      %p153 = por %p151, %p152
      %p154 = scmp.ne.s32.totalorder %s142, %s143
      %p155 = scmp.eq.s32.totalorder %s33, 1
      %p156 = por %p154, %p155
      %p158 = scmp.ne.s32.totalorder %s143, %s157
      %p159 = scmp.eq.s32.totalorder %s33, 0
      %p160 = por %p158, %p159
      %s161 = ssub.s32 %s27, %s34
      %p162 = scmp.eq.s32.totalorder %s161, 0
      %s164 = sadd.s32 %s163, 1
      %s165 = scalar_select %p162, %s163, %s164
      %p168 = pneg %p162
      %p169 = scmp.eq.s32.totalorder %s27, 1
      %p170 = por %p168, %p169
      %p171 = scmp.ne.s32.totalorder %s163, %s166
      %p172 = scmp.eq.s32.totalorder %s27, 0
      %p173 = por %p171, %p172
      %p174 = scmp.ne.s32.totalorder %s163, %s166
      %p175 = scmp.eq.s32.totalorder %s32, 1
      %p176 = por %p174, %p175
      %p177 = scmp.ne.s32.totalorder %s166, %s167
      %p178 = scmp.eq.s32.totalorder %s32, 0
      %p179 = por %p177, %p178
      %p180 = scmp.ne.s32.totalorder %s166, %s167
      %p181 = scmp.eq.s32.totalorder %s33, 1
      %p182 = por %p180, %p181
      %p184 = scmp.ne.s32.totalorder %s167, %s183
      %p185 = scmp.eq.s32.totalorder %s33, 0
      %p186 = por %p184, %p185
      %s187 = ssub.s32 %s27, %s34
      %p188 = scmp.eq.s32.totalorder %s187, 0
      %s190 = sadd.s32 %s189, 1
      %s191 = scalar_select %p188, %s189, %s190
      %p194 = pneg %p188
      %p195 = scmp.eq.s32.totalorder %s27, 1
      %p196 = por %p194, %p195
      %p197 = scmp.ne.s32.totalorder %s189, %s192
      %p198 = scmp.eq.s32.totalorder %s27, 0
      %p199 = por %p197, %p198
      %p200 = scmp.ne.s32.totalorder %s189, %s192
      %p201 = scmp.eq.s32.totalorder %s32, 1
      %p202 = por %p200, %p201
      %p203 = scmp.ne.s32.totalorder %s192, %s193
      %p204 = scmp.eq.s32.totalorder %s32, 0
      %p205 = por %p203, %p204
      %p206 = scmp.ne.s32.totalorder %s192, %s193
      %p207 = scmp.eq.s32.totalorder %s33, 1
      %p208 = por %p206, %p207
      %p210 = scmp.ne.s32.totalorder %s193, %s209
      %p211 = scmp.eq.s32.totalorder %s33, 0
      %p212 = por %p210, %p211
      %s213 = ssub.s32 %s27, %s34
      %p214 = scmp.eq.s32.totalorder %s213, 0
      %s216 = sadd.s32 %s215, 1
      %s217 = scalar_select %p214, %s215, %s216
      %p220 = pneg %p214
      %p221 = scmp.eq.s32.totalorder %s27, 1
      %p222 = por %p220, %p221
      %p223 = scmp.ne.s32.totalorder %s215, %s218
      %p224 = scmp.eq.s32.totalorder %s27, 0
      %p225 = por %p223, %p224
      %p226 = scmp.ne.s32.totalorder %s215, %s218
      %p227 = scmp.eq.s32.totalorder %s32, 1
      %p228 = por %p226, %p227
      %p229 = scmp.ne.s32.totalorder %s218, %s219
      %p230 = scmp.eq.s32.totalorder %s32, 0
      %p231 = por %p229, %p230
      %p232 = scmp.ne.s32.totalorder %s218, %s219
      %p233 = scmp.eq.s32.totalorder %s33, 1
      %p234 = por %p232, %p233
      %p236 = scmp.ne.s32.totalorder %s219, %s235
      %p237 = scmp.eq.s32.totalorder %s33, 0
      %p238 = por %p236, %p237
      %s239 = ssub.s32 %s27, %s34
      %p240 = scmp.eq.s32.totalorder %s239, 0
      %s242 = sadd.s32 %s241, 1
      %s243 = scalar_select %p240, %s241, %s242
      %p246 = pneg %p240
      %p247 = scmp.eq.s32.totalorder %s27, 1
      %p248 = por %p246, %p247
      %p249 = scmp.ne.s32.totalorder %s241, %s244
      %p250 = scmp.eq.s32.totalorder %s27, 0
      %p251 = por %p249, %p250
      %p252 = scmp.ne.s32.totalorder %s241, %s244
      %p253 = scmp.eq.s32.totalorder %s32, 1
      %p254 = por %p252, %p253
      %p255 = scmp.ne.s32.totalorder %s244, %s245
      %p256 = scmp.eq.s32.totalorder %s32, 0
      %p257 = por %p255, %p256
      %p258 = scmp.ne.s32.totalorder %s244, %s245
      %p259 = scmp.eq.s32.totalorder %s33, 1
      %p260 = por %p258, %p259
      %p262 = scmp.ne.s32.totalorder %s245, %s261
      %p263 = scmp.eq.s32.totalorder %s33, 0
      %p264 = por %p262, %p263
      %s265 = ssub.s32 %s27, %s34
      %p266 = scmp.eq.s32.totalorder %s265, 0
      %s268 = sadd.s32 %s267, 1
      %s269 = scalar_select %p266, %s267, %s268
      %p272 = pneg %p266
      %p273 = scmp.eq.s32.totalorder %s27, 1
      %p274 = por %p272, %p273
      %p275 = scmp.ne.s32.totalorder %s267, %s270
      %p276 = scmp.eq.s32.totalorder %s27, 0
      %p277 = por %p275, %p276
      %p278 = scmp.ne.s32.totalorder %s267, %s270
      %p279 = scmp.eq.s32.totalorder %s32, 1
      %p280 = por %p278, %p279
      %p281 = scmp.ne.s32.totalorder %s270, %s271
      %p282 = scmp.eq.s32.totalorder %s32, 0
      %p283 = por %p281, %p282
      %p284 = scmp.ne.s32.totalorder %s270, %s271
      %p285 = scmp.eq.s32.totalorder %s33, 1
      %p286 = por %p284, %p285
      %p288 = scmp.ne.s32.totalorder %s271, %s287
      %p289 = scmp.eq.s32.totalorder %s33, 0
      %p290 = por %p288, %p289
      %s291 = ssub.s32 %s27, %s34
      %p292 = scmp.eq.s32.totalorder %s291, 0
      %s294 = sadd.s32 %s293, 1
      %s295 = scalar_select %p292, %s293, %s294
      %p298 = pneg %p292
      %p299 = scmp.eq.s32.totalorder %s27, 1
      %p300 = por %p298, %p299
      %p301 = scmp.ne.s32.totalorder %s293, %s296
      %p302 = scmp.eq.s32.totalorder %s27, 0
      %p303 = por %p301, %p302
      %p304 = scmp.ne.s32.totalorder %s293, %s296
      %p305 = scmp.eq.s32.totalorder %s32, 1
      %p306 = por %p304, %p305
      %p307 = scmp.ne.s32.totalorder %s296, %s297
      %p308 = scmp.eq.s32.totalorder %s32, 0
      %p309 = por %p307, %p308
      %p310 = scmp.ne.s32.totalorder %s296, %s297
      %p311 = scmp.eq.s32.totalorder %s33, 1
      %p312 = por %p310, %p311
      %p314 = scmp.ne.s32.totalorder %s297, %s313
      %p315 = scmp.eq.s32.totalorder %s33, 0
      %p316 = por %p314, %p315
      %s317 = ssub.s32 %s27, %s34
      %p318 = scmp.eq.s32.totalorder %s317, 0
      %s320 = sadd.s32 %s319, 1
      %s321 = scalar_select %p318, %s319, %s320
      %p324 = pneg %p318
      %p325 = scmp.eq.s32.totalorder %s27, 1
      %p326 = por %p324, %p325
      %p327 = scmp.ne.s32.totalorder %s319, %s322
      %p328 = scmp.eq.s32.totalorder %s27, 0
      %p329 = por %p327, %p328
      %p330 = scmp.ne.s32.totalorder %s319, %s322
      %p331 = scmp.eq.s32.totalorder %s32, 1
      %p332 = por %p330, %p331
      %p333 = scmp.ne.s32.totalorder %s322, %s323
      %p334 = scmp.eq.s32.totalorder %s32, 0
      %p335 = por %p333, %p334
      %p336 = scmp.ne.s32.totalorder %s322, %s323
      %p337 = scmp.eq.s32.totalorder %s33, 1
      %p338 = por %p336, %p337
      %p340 = scmp.ne.s32.totalorder %s323, %s339
      %p341 = scmp.eq.s32.totalorder %s33, 0
      %p342 = por %p340, %p341
      %s343 = ssub.s32 %s27, %s34
      %p344 = scmp.eq.s32.totalorder %s343, 0
      %s346 = sadd.s32 %s345, 1
      %s347 = scalar_select %p344, %s345, %s346
      %p350 = pneg %p344
      %p351 = scmp.eq.s32.totalorder %s27, 1
      %p352 = por %p350, %p351
      %p353 = scmp.ne.s32.totalorder %s345, %s348
      %p354 = scmp.eq.s32.totalorder %s27, 0
      %p355 = por %p353, %p354
      %p356 = scmp.ne.s32.totalorder %s345, %s348
      %p357 = scmp.eq.s32.totalorder %s32, 1
      %p358 = por %p356, %p357
      %p359 = scmp.ne.s32.totalorder %s348, %s349
      %p360 = scmp.eq.s32.totalorder %s32, 0
      %p361 = por %p359, %p360
      %p362 = scmp.ne.s32.totalorder %s348, %s349
      %p363 = scmp.eq.s32.totalorder %s33, 1
      %p364 = por %p362, %p363
      %p366 = scmp.ne.s32.totalorder %s349, %s365
      %p367 = scmp.eq.s32.totalorder %s33, 0
      %p368 = por %p366, %p367
      %s369 = ssub.s32 %s27, %s34
      %p370 = scmp.eq.s32.totalorder %s369, 0
      %s372 = sadd.s32 %s371, 1
      %s373 = scalar_select %p370, %s371, %s372
      %p376 = pneg %p370
      %p377 = scmp.eq.s32.totalorder %s27, 1
      %p378 = por %p376, %p377
      %p379 = scmp.ne.s32.totalorder %s371, %s374
      %p380 = scmp.eq.s32.totalorder %s27, 0
      %p381 = por %p379, %p380
      %p382 = scmp.ne.s32.totalorder %s371, %s374
      %p383 = scmp.eq.s32.totalorder %s32, 1
      %p384 = por %p382, %p383
      %p385 = scmp.ne.s32.totalorder %s374, %s375
      %p386 = scmp.eq.s32.totalorder %s32, 0
      %p387 = por %p385, %p386
      %p388 = scmp.ne.s32.totalorder %s374, %s375
      %p389 = scmp.eq.s32.totalorder %s33, 1
      %p390 = por %p388, %p389
      %p392 = scmp.ne.s32.totalorder %s375, %s391
      %p393 = scmp.eq.s32.totalorder %s33, 0
      %p394 = por %p392, %p393
      %s395 = ssub.s32 %s27, %s34
      %p396 = scmp.eq.s32.totalorder %s395, 0
      %s398 = sadd.s32 %s397, 1
      %s399 = scalar_select %p396, %s397, %s398
      %p402 = pneg %p396
      %p403 = scmp.eq.s32.totalorder %s27, 1
      %p404 = por %p402, %p403
      %p405 = scmp.ne.s32.totalorder %s397, %s400
      %p406 = scmp.eq.s32.totalorder %s27, 0
      %p407 = por %p405, %p406
      %p408 = scmp.ne.s32.totalorder %s397, %s400
      %p409 = scmp.eq.s32.totalorder %s32, 1
      %p410 = por %p408, %p409
      %p411 = scmp.ne.s32.totalorder %s400, %s401
      %p412 = scmp.eq.s32.totalorder %s32, 0
      %p413 = por %p411, %p412
      %p414 = scmp.ne.s32.totalorder %s400, %s401
      %p415 = scmp.eq.s32.totalorder %s33, 1
      %p416 = por %p414, %p415
      %p418 = scmp.ne.s32.totalorder %s401, %s417
      %p419 = scmp.eq.s32.totalorder %s33, 0
      %p420 = por %p418, %p419
      %s421 = ssub.s32 %s27, %s34
      %p422 = scmp.eq.s32.totalorder %s421, 0
      %s424 = sadd.s32 %s423, 1
      %s425 = scalar_select %p422, %s423, %s424
      %p428 = pneg %p422
      %p429 = scmp.eq.s32.totalorder %s27, 1
      %p430 = por %p428, %p429
      %p431 = scmp.ne.s32.totalorder %s423, %s426
      %p432 = scmp.eq.s32.totalorder %s27, 0
      %p433 = por %p431, %p432
      %p434 = scmp.ne.s32.totalorder %s423, %s426
      %p435 = scmp.eq.s32.totalorder %s32, 1
      %p436 = por %p434, %p435
      %p437 = scmp.ne.s32.totalorder %s426, %s427
      %p438 = scmp.eq.s32.totalorder %s32, 0
      %p439 = por %p437, %p438
      %p440 = scmp.ne.s32.totalorder %s426, %s427
      %p441 = scmp.eq.s32.totalorder %s33, 1
      %p442 = por %p440, %p441
      %p444 = scmp.ne.s32.totalorder %s427, %s443
      %p445 = scmp.eq.s32.totalorder %s33, 0
      %p446 = por %p444, %p445
      %s447 = ssub.s32 %s27, %s34
      %p448 = scmp.eq.s32.totalorder %s447, 0
      %s450 = sadd.s32 %s449, 1
      %s451 = scalar_select %p448, %s449, %s450
      %p454 = pneg %p448
      %p455 = scmp.eq.s32.totalorder %s27, 1
      %p456 = por %p454, %p455
      %p457 = scmp.ne.s32.totalorder %s449, %s452
      %p458 = scmp.eq.s32.totalorder %s27, 0
      %p459 = por %p457, %p458
      %p460 = scmp.ne.s32.totalorder %s449, %s452
      %p461 = scmp.eq.s32.totalorder %s32, 1
      %p462 = por %p460, %p461
      %p463 = scmp.ne.s32.totalorder %s452, %s453
      %p464 = scmp.eq.s32.totalorder %s32, 0
      %p465 = por %p463, %p464
      %p466 = scmp.ne.s32.totalorder %s452, %s453
      %p467 = scmp.eq.s32.totalorder %s33, 1
      %p468 = por %p466, %p467
      %p470 = scmp.ne.s32.totalorder %s453, %s469
      %p471 = scmp.eq.s32.totalorder %s33, 0
      %p472 = por %p470, %p471
      %s474 = sadd.s32 %s473, 1
      %p477 = scmp.eq.s32.totalorder %s27, 1
      %p478 = scmp.ne.s32.totalorder %s473, %s475
      %p479 = scmp.eq.s32.totalorder %s27, 0
      %p480 = por %p478, %p479
      %p481 = scmp.ne.s32.totalorder %s473, %s475
      %p482 = scmp.eq.s32.totalorder %s32, 1
      %p483 = por %p481, %p482
      %p484 = scmp.ne.s32.totalorder %s475, %s476
      %p485 = scmp.eq.s32.totalorder %s32, 0
      %p486 = por %p484, %p485
      %p487 = scmp.ne.s32.totalorder %s475, %s476
      %p488 = scmp.eq.s32.totalorder %s33, 1
      %p489 = por %p487, %p488
      %p491 = scmp.ne.s32.totalorder %s476, %s490
      %p492 = scmp.eq.s32.totalorder %s33, 0
      %p493 = por %p491, %p492
      %p494 = scmp.le.s32.totalorder 1, %s27
      %p495 = scmp.lt.s32.totalorder %s27, 3
      %p496 = pnand %p494, %p495
      %p497 = pneg %p496
      // Predicated region
      $region9: #{tpu_custom_call.1} parent=5 // pred_check
        _
      $region10: #{tpu_custom_call.1} parent=5 // pred_check_branch
        %499 = sbr.rel (%p496) target = $region12
      $region11: #{tpu_custom_call.1} parent=5 // pred_region
        %s500 = ssub.s32 %s27, 1
        // Predicated region
        $region13: #{tpu_custom_call.1} parent=11 // pred_check
          %p501 = pneg %p48
        $region14: #{tpu_custom_call.1} parent=11 // pred_check_branch
          %503 = sbr.rel (%p501) target = $region16
        $region15: #{tpu_custom_call.1} parent=11 // pred_region
          _
        $region16: #{tpu_custom_call.1} parent=11 // pred_fallthru
          _
        // Predicated region
        $region17: #{tpu_custom_call.1} parent=11 // pred_check
          %p504 = pneg %p69
        $region18: #{tpu_custom_call.1} parent=11 // pred_check_branch
          %506 = sbr.rel (%p504) target = $region20
        $region19: #{tpu_custom_call.1} parent=11 // pred_region
          %s508 = ssub.s32 256, 256
          %509 = vsyncadd [#allocation3], %s508
          %s510 = sshll.u32 [#allocation2], 4
          %s511 = int_to_ptr.vmem [resolvable:$true] %s510
          %516 = dma.hbm_to_vmem [thread:$0]  %s1, 256, %s511, [#allocation3], 128, 128, 8
        $region20: #{tpu_custom_call.1} parent=11 // pred_fallthru
          _
        // Predicated region
        $region21: #{tpu_custom_call.1} parent=11 // pred_check
          %p517 = pneg %p90
        $region22: #{tpu_custom_call.1} parent=11 // pred_check_branch
          %519 = sbr.rel (%p517) target = $region24
        $region23: #{tpu_custom_call.1} parent=11 // pred_region
          %s521 = ssub.s32 16, 16
          %522 = vsyncadd [#allocation6], %s521
          %s524 = sshll.u32 [#allocation5], 4
          %s525 = int_to_ptr.vmem [resolvable:$true] %s524
          %527 = dma.hbm_to_vmem [thread:$0]  %s2, 16, %s525, [#allocation6]
        $region24: #{tpu_custom_call.1} parent=11 // pred_fallthru
          _
        // Predicated region
        $region25: #{tpu_custom_call.1} parent=11 // pred_check
          %p528 = pneg %p111
        $region26: #{tpu_custom_call.1} parent=11 // pred_check_branch
          %530 = sbr.rel (%p528) target = $region28
        $region27: #{tpu_custom_call.1} parent=11 // pred_region
          %s532 = ssub.s32 16, 16
          %533 = vsyncadd [#allocation6], %s532
          %s535 = sshll.u32 [#allocation7], 4
          %s536 = int_to_ptr.vmem [resolvable:$true] %s535
          %538 = dma.hbm_to_vmem [thread:$0]  %s3, 16, %s536, [#allocation6]
        $region28: #{tpu_custom_call.1} parent=11 // pred_fallthru
          _
        // Predicated region
        $region29: #{tpu_custom_call.1} parent=11 // pred_check
          %p539 = pneg %p132
        $region30: #{tpu_custom_call.1} parent=11 // pred_check_branch
          %541 = sbr.rel (%p539) target = $region32
        $region31: #{tpu_custom_call.1} parent=11 // pred_region
          _
        $region32: #{tpu_custom_call.1} parent=11 // pred_fallthru
          _
        // Predicated region
        $region33: #{tpu_custom_call.1} parent=11 // pred_check
          %p542 = pneg %p153
        $region34: #{tpu_custom_call.1} parent=11 // pred_check_branch
          %544 = sbr.rel (%p542) target = $region36
        $region35: #{tpu_custom_call.1} parent=11 // pred_region
          _
        $region36: #{tpu_custom_call.1} parent=11 // pred_fallthru
          _
      $region12: #{tpu_custom_call.1} parent=5 // pred_fallthru
        _
      %p545 = scmp.lt.s32.totalorder %s27, 2
      // Predicated region
      $region37: #{tpu_custom_call.1} parent=5 // pred_check
        %p546 = pneg %p545
      $region38: #{tpu_custom_call.1} parent=5 // pred_check_branch
        %548 = sbr.rel (%p546) target = $region40
      $region39: #{tpu_custom_call.1} parent=5 // pred_region
        // Predicated region
        $region41: #{tpu_custom_call.1} parent=39 // pred_check
          %p549 = pneg %p173
        $region42: #{tpu_custom_call.1} parent=39 // pred_check_branch
          %551 = sbr.rel (%p549) target = $region44
        $region43: #{tpu_custom_call.1} parent=39 // pred_region
          %p552 = scmp.lt.s32.totalorder %s27, 1
          %s553 = scalar_select %p552, %s27, 1
          %s554 = smul.addr %s553, 4
          %s555 = smul.addr %s554, 8
          %s556 = scalar_lea.vmem %s6, %s555
        $region44: #{tpu_custom_call.1} parent=39 // pred_fallthru
          _
        // Predicated region
        $region45: #{tpu_custom_call.1} parent=39 // pred_check
          %p557 = pneg %p199
        $region46: #{tpu_custom_call.1} parent=39 // pred_check_branch
          %559 = sbr.rel (%p557) target = $region48
        $region47: #{tpu_custom_call.1} parent=39 // pred_region
          %p560 = scmp.lt.s32.totalorder %s27, 1
          %s561 = scalar_select %p560, %s27, 1
          %s562 = scalar_lea.vmem %s7, %s561
        $region48: #{tpu_custom_call.1} parent=39 // pred_fallthru
          _
        // Predicated region
        $region49: #{tpu_custom_call.1} parent=39 // pred_check
          %p563 = pneg %p225
        $region50: #{tpu_custom_call.1} parent=39 // pred_check_branch
          %565 = sbr.rel (%p563) target = $region52
        $region51: #{tpu_custom_call.1} parent=39 // pred_region
          %p566 = scmp.lt.s32.totalorder %s27, 1
          %s567 = scalar_select %p566, %s27, 1
          %s568 = smul.addr %s567, 4
          %s569 = smul.addr %s568, 8
          %s570 = scalar_lea.vmem %s8, %s569
        $region52: #{tpu_custom_call.1} parent=39 // pred_fallthru
          _
        // Predicated region
        $region53: #{tpu_custom_call.1} parent=39 // pred_check
          %p571 = pneg %p251
        $region54: #{tpu_custom_call.1} parent=39 // pred_check_branch
          %573 = sbr.rel (%p571) target = $region56
        $region55: #{tpu_custom_call.1} parent=39 // pred_region
          %p574 = scmp.lt.s32.totalorder %s27, 1
          %s575 = scalar_select %p574, %s27, 1
          %s576 = scalar_lea.vmem %s9, %s575
        $region56: #{tpu_custom_call.1} parent=39 // pred_fallthru
          _
        // Predicated region
        $region57: #{tpu_custom_call.1} parent=39 // pred_check
          %p577 = pneg %p277
        $region58: #{tpu_custom_call.1} parent=39 // pred_check_branch
          %579 = sbr.rel (%p577) target = $region60
        $region59: #{tpu_custom_call.1} parent=39 // pred_region
          %p580 = scmp.lt.s32.totalorder %s27, 1
          %s581 = scalar_select %p580, %s27, 1
          %s582 = scalar_lea.vmem %s10, %s581
        $region60: #{tpu_custom_call.1} parent=39 // pred_fallthru
          _
        // Predicated region
        $region61: #{tpu_custom_call.1} parent=39 // pred_check
          %p583 = pneg %p303
        $region62: #{tpu_custom_call.1} parent=39 // pred_check_branch
          %585 = sbr.rel (%p583) target = $region64
        $region63: #{tpu_custom_call.1} parent=39 // pred_region
          %p586 = scmp.lt.s32.totalorder %s27, 1
          %s587 = scalar_select %p586, %s27, 1
          %s588 = scalar_lea.vmem %s11, %s587
        $region64: #{tpu_custom_call.1} parent=39 // pred_fallthru
          _
        // Predicated region
        $region65: #{tpu_custom_call.1} parent=39 // pred_check
          %p589 = pneg %p329
        $region66: #{tpu_custom_call.1} parent=39 // pred_check_branch
          %591 = sbr.rel (%p589) target = $region68
        $region67: #{tpu_custom_call.1} parent=39 // pred_region
          %p592 = scmp.lt.s32.totalorder %s27, 1
          %s593 = scalar_select %p592, %s27, 1
          %s594 = smul.addr %s593, 4
          %s595 = smul.addr %s594, 8
          %s596 = scalar_lea.vmem %s12, %s595
        $region68: #{tpu_custom_call.1} parent=39 // pred_fallthru
          _
        // Predicated region
        $region69: #{tpu_custom_call.1} parent=39 // pred_check
          %p597 = pneg %p355
        $region70: #{tpu_custom_call.1} parent=39 // pred_check_branch
          %599 = sbr.rel (%p597) target = $region72
        $region71: #{tpu_custom_call.1} parent=39 // pred_region
          %p600 = scmp.lt.s32.totalorder %s27, 1
          %s601 = scalar_select %p600, %s27, 1
          %s602 = scalar_lea.vmem %s13, %s601
        $region72: #{tpu_custom_call.1} parent=39 // pred_fallthru
          _
        // Predicated region
        $region73: #{tpu_custom_call.1} parent=39 // pred_check
          %p603 = pneg %p381
        $region74: #{tpu_custom_call.1} parent=39 // pred_check_branch
          %605 = sbr.rel (%p603) target = $region76
        $region75: #{tpu_custom_call.1} parent=39 // pred_region
          %p606 = scmp.lt.s32.totalorder %s27, 1
          %s607 = scalar_select %p606, %s27, 1
          %s608 = smul.addr %s607, 8
          %s609 = smul.addr %s608, 8
          %s610 = scalar_lea.vmem %s14, %s609
        $region76: #{tpu_custom_call.1} parent=39 // pred_fallthru
          _
        // Predicated region
        $region77: #{tpu_custom_call.1} parent=39 // pred_check
          %p611 = pneg %p407
        $region78: #{tpu_custom_call.1} parent=39 // pred_check_branch
          %613 = sbr.rel (%p611) target = $region80
        $region79: #{tpu_custom_call.1} parent=39 // pred_region
          %p614 = scmp.lt.s32.totalorder %s27, 1
          %s615 = scalar_select %p614, %s27, 1
          %s616 = scalar_lea.vmem %s15, %s615
        $region80: #{tpu_custom_call.1} parent=39 // pred_fallthru
          _
        // Predicated region
        $region81: #{tpu_custom_call.1} parent=39 // pred_check
          %p617 = pneg %p433
        $region82: #{tpu_custom_call.1} parent=39 // pred_check_branch
          %619 = sbr.rel (%p617) target = $region84
        $region83: #{tpu_custom_call.1} parent=39 // pred_region
          %p620 = scmp.lt.s32.totalorder %s27, 1
          %s621 = scalar_select %p620, %s27, 1
          %s622 = scalar_lea.vmem %s16, %s621
        $region84: #{tpu_custom_call.1} parent=39 // pred_fallthru
          _
        // Predicated region
        $region85: #{tpu_custom_call.1} parent=39 // pred_check
          %p623 = pneg %p459
        $region86: #{tpu_custom_call.1} parent=39 // pred_check_branch
          %625 = sbr.rel (%p623) target = $region88
        $region87: #{tpu_custom_call.1} parent=39 // pred_region
          %p626 = scmp.lt.s32.totalorder %s27, 1
          %s627 = scalar_select %p626, %s27, 1
          %s628 = scalar_lea.vmem %s17, %s627
        $region88: #{tpu_custom_call.1} parent=39 // pred_fallthru
          _
      $region40: #{tpu_custom_call.1} parent=5 // pred_fallthru
        _
      %p629 = scmp.le.s32.totalorder 1, %s27
      %p630 = scmp.lt.s32.totalorder %s27, 3
      %p631 = pnand %p629, %p630
      %p632 = pneg %p631
      // Predicated region
      $region89: #{tpu_custom_call.1} parent=5 // pred_check
        _
      $region90: #{tpu_custom_call.1} parent=5 // pred_check_branch
        %634 = sbr.rel (%p631) target = $region92
      $region91: #{tpu_custom_call.1} parent=5 // pred_region
        %s635 = ssub.s32 %s27, 1
        // Predicated region
        $region93: #{tpu_custom_call.1} parent=91 // pred_check
          %p636 = pneg %p69
        $region94: #{tpu_custom_call.1} parent=91 // pred_check_branch
          %638 = sbr.rel (%p636) target = $region96
        $region95: #{tpu_custom_call.1} parent=91 // pred_region
          %639 = dma.done [#allocation3], 256
        $region96: #{tpu_custom_call.1} parent=91 // pred_fallthru
          _
        // Predicated region
        $region97: #{tpu_custom_call.1} parent=91 // pred_check
          %p640 = pneg %p90
        $region98: #{tpu_custom_call.1} parent=91 // pred_check_branch
          %642 = sbr.rel (%p640) target = $region100
        $region99: #{tpu_custom_call.1} parent=91 // pred_region
          %643 = dma.done [#allocation6], 16
        $region100: #{tpu_custom_call.1} parent=91 // pred_fallthru
          _
        // Predicated region
        $region101: #{tpu_custom_call.1} parent=91 // pred_check
          %p644 = pneg %p111
        $region102: #{tpu_custom_call.1} parent=91 // pred_check_branch
          %646 = sbr.rel (%p644) target = $region104
        $region103: #{tpu_custom_call.1} parent=91 // pred_region
          %647 = dma.done [#allocation6], 16
        $region104: #{tpu_custom_call.1} parent=91 // pred_fallthru
          _
        %p648 = pneg %p48
        %p649 = pneg %p45
        %p650 = pneg %p69
        %p651 = pneg %p66
        %p652 = pneg %p90
        %p653 = pneg %p87
        %p654 = pneg %p111
        %p655 = pneg %p108
        %p656 = pneg %p132
        %p657 = pneg %p129
        %p658 = pneg %p153
        %p659 = pneg %p150
        %p660 = scmp.lt.s32.totalorder %s32, 1
        %s661 = scalar_select %p660, %s32, 1
        %s662 = smul.addr %s661, 4
        %s663 = smul.addr %s662, 8
        %s664 = scalar_lea.vmem %s6, %s663
        %p665 = pneg %p179
        %p666 = pneg %p176
        %p667 = scmp.lt.s32.totalorder %s32, 1
        %s668 = scalar_select %p667, %s32, 1
        %s669 = scalar_lea.vmem %s7, %s668
        %p670 = pneg %p205
        %p671 = pneg %p202
        %p672 = scmp.lt.s32.totalorder %s32, 1
        %s673 = scalar_select %p672, %s32, 1
        %s674 = smul.addr %s673, 4
        %s675 = smul.addr %s674, 8
        %s676 = scalar_lea.vmem %s8, %s675
        %p677 = pneg %p231
        %p678 = pneg %p228
        %p679 = scmp.lt.s32.totalorder %s32, 1
        %s680 = scalar_select %p679, %s32, 1
        %s681 = scalar_lea.vmem %s9, %s680
        %p682 = pneg %p257
        %p683 = pneg %p254
        %p684 = scmp.lt.s32.totalorder %s32, 1
        %s685 = scalar_select %p684, %s32, 1
        %s686 = scalar_lea.vmem %s10, %s685
        %p687 = pneg %p283
        %p688 = pneg %p280
        %p689 = scmp.lt.s32.totalorder %s32, 1
        %s690 = scalar_select %p689, %s32, 1
        %s691 = scalar_lea.vmem %s11, %s690
        %p692 = pneg %p309
        %p693 = pneg %p306
        %p694 = scmp.lt.s32.totalorder %s32, 1
        %s695 = scalar_select %p694, %s32, 1
        %s696 = smul.addr %s695, 4
        %s697 = smul.addr %s696, 8
        %s698 = scalar_lea.vmem %s12, %s697
        %p699 = pneg %p335
        %p700 = pneg %p332
        %p701 = scmp.lt.s32.totalorder %s32, 1
        %s702 = scalar_select %p701, %s32, 1
        %s703 = scalar_lea.vmem %s13, %s702
        %p704 = pneg %p361
        %p705 = pneg %p358
        %p706 = scmp.lt.s32.totalorder %s32, 1
        %s707 = scalar_select %p706, %s32, 1
        %s708 = smul.addr %s707, 8
        %s709 = smul.addr %s708, 8
        %s710 = scalar_lea.vmem %s14, %s709
        %p711 = pneg %p387
        %p712 = pneg %p384
        %p713 = scmp.lt.s32.totalorder %s32, 1
        %s714 = scalar_select %p713, %s32, 1
        %s715 = scalar_lea.vmem %s15, %s714
        %p716 = pneg %p413
        %p717 = pneg %p410
        %p718 = scmp.lt.s32.totalorder %s32, 1
        %s719 = scalar_select %p718, %s32, 1
        %s720 = scalar_lea.vmem %s16, %s719
        %p721 = pneg %p439
        %p722 = pneg %p436
        %p723 = scmp.lt.s32.totalorder %s32, 1
        %s724 = scalar_select %p723, %s32, 1
        %s725 = scalar_lea.vmem %s17, %s724
        %p726 = pneg %p465
        %p727 = pneg %p462
        %p728 = pneg %p486
        %p729 = pneg %p483
        %p730 = scmp.lt.s32.totalorder %s32, 1
        %s731 = scalar_select %p730, %s32, 1
        %s732 = smul.addr %s731, 4
        %s733 = smul.addr %s732, 8
        %s734 = scalar_lea.vmem %s6, %s733
        %p735 = scmp.lt.s32.totalorder %s32, 1
        %s736 = scalar_select %p735, %s32, 1
        %s737 = scalar_lea.vmem %s7, %s736
        %p738 = scmp.lt.s32.totalorder %s32, 1
        %s739 = scalar_select %p738, %s32, 1
        %s740 = smul.addr %s739, 4
        %s741 = smul.addr %s740, 8
        %s742 = scalar_lea.vmem %s8, %s741
        %p743 = scmp.lt.s32.totalorder %s32, 1
        %s744 = scalar_select %p743, %s32, 1
        %s745 = scalar_lea.vmem %s9, %s744
        %p746 = scmp.lt.s32.totalorder %s32, 1
        %s747 = scalar_select %p746, %s32, 1
        %s748 = scalar_lea.vmem %s10, %s747
        %p749 = scmp.lt.s32.totalorder %s32, 1
        %s750 = scalar_select %p749, %s32, 1
        %s751 = scalar_lea.vmem %s11, %s750
        %p752 = scmp.lt.s32.totalorder %s32, 1
        %s753 = scalar_select %p752, %s32, 1
        %s754 = smul.addr %s753, 4
        %s755 = smul.addr %s754, 8
        %s756 = scalar_lea.vmem %s12, %s755
        %p757 = scmp.lt.s32.totalorder %s32, 1
        %s758 = scalar_select %p757, %s32, 1
        %s759 = scalar_lea.vmem %s13, %s758
        %p760 = scmp.lt.s32.totalorder %s32, 1
        %s761 = scalar_select %p760, %s32, 1
        %s762 = smul.addr %s761, 8
        %s763 = smul.addr %s762, 8
        %s764 = scalar_lea.vmem %s14, %s763
        %p765 = scmp.lt.s32.totalorder %s32, 1
        %s766 = scalar_select %p765, %s32, 1
        %s767 = scalar_lea.vmem %s15, %s766
        %p768 = scmp.lt.s32.totalorder %s32, 1
        %s769 = scalar_select %p768, %s32, 1
        %s770 = scalar_lea.vmem %s16, %s769
        %p771 = scmp.lt.s32.totalorder %s32, 1
        %s772 = scalar_select %p771, %s32, 1
        %s773 = scalar_lea.vmem %s17, %s772
        %p774 = scmp.eq.s32.totalorder %s32, 0
        // Predicated region
        $region105: #{tpu_custom_call.1} parent=91 // pred_check
          %p775 = pneg %p774
        $region106: #{tpu_custom_call.1} parent=91 // pred_check_branch
          %777 = sbr.rel (%p775) target = $region108
        $region107: #{tpu_custom_call.1} parent=91 // pred_region
          %v778 = vld [vmem:[%s0] sm:$0xff]
          %v779 = vld [vmem:[%s0 + $0x8] sm:$0xff]
          %v780 = vld [vmem:[#allocation5] sm:$0x1]
          %v781 = vld [vmem:[#allocation7] sm:$0x1]
          %vm782 = vcmask 261120
          %v783 = vsel %vm782, %v778, 0.0
          %784 = vadd.xlane.f32.xlu0 %v783
          %v785 = vpop.xlane.xlu0 %784
          %v786 = vsel %vm782, %v779, 0.0
          %787 = vadd.xlane.f32.xlu0 %v786
          %v788 = vpop.xlane.xlu0 %787
          %v789 = vrcp.pop 32.0
          %v790 = vmul.f32 %v785, %v789
          %v791 = vmul.f32 %v788, %v789
          %v792 = vsub.f32 %v778, %v790
          %v793 = vsub.f32 %v779, %v791
          %v794 = vmul.f32 %v792, %v792
          %v795 = vmul.f32 %v793, %v793
          %v796 = vsel %vm782, %v794, 0.0
          %797 = vadd.xlane.f32.xlu0 %v796
          %v798 = vpop.xlane.xlu0 %797
          %v799 = vsel %vm782, %v795, 0.0
          %800 = vadd.xlane.f32.xlu0 %v799
          %v801 = vpop.xlane.xlu0 %800
          %v802 = vmul.f32 %v798, %v789
          %v803 = vmul.f32 %v801, %v789
          %v804 = vadd.f32 %v802, 1e-05
          %v805 = vadd.f32 %v803, 1e-05
          %v806 = vrsqrt.pop %v804
          %v807 = vrsqrt.pop %v805
          %v808 = vmul.f32 %v792, %v806
          %v809 = vmul.f32 %v793, %v807
          %v811 = vlaneseq
          %v812 = vshrl.u32 %v811, 7
          %v813 = vsub.s32 0, %v812
          %v814 = vrot.slane %v780, %v813
          %v816 = vmul.f32 %v808, %v814
          %v817 = vmul.f32 %v809, %v814
          %v819 = vlaneseq
          %v820 = vshrl.u32 %v819, 7
          %v821 = vsub.s32 0, %v820
          %v822 = vrot.slane %v781, %v821
          %v824 = vadd.f32 %v816, %v822
          %v825 = vadd.f32 %v817, %v822
          %v826 = vld [vmem:[#allocation2] sm:$0xff]
          %v827 = vld [vmem:[#allocation2 + $0x8] sm:$0xff]
          %v828 = vadd.f32 %v824, %v826
          %v829 = vadd.f32 %v825, %v827
          %830 = vst.msk [vmem:[#allocation8] sm:$0xff] %vm782, %v828
          %831 = vst.msk [vmem:[#allocation8 + $0x8] sm:$0xff] %vm782, %v829
        $region108: #{tpu_custom_call.1} parent=91 // pred_fallthru
          _
        %v832 = vld [vmem:[#allocation8] sm:$0xff]
        %v833 = vld [vmem:[#allocation8 + $0x8] sm:$0xff]
        %v834 = vld [vmem:[%s4] sm:$0x1]
        %v835 = vld [vmem:[%s4 + $0x1] sm:$0x1]
        %v836 = vld [vmem:[%s734] sm:$0xff]
        %v837 = vld [vmem:[%s734 + $0x8] sm:$0xff]
        %v838 = vld [vmem:[%s734 + $0x10] sm:$0xff]
        %v839 = vld [vmem:[%s734 + $0x18] sm:$0xff]
        %v840 = vld [vmem:[%s737] sm:$0x1]
        %v842 = vlaneseq
        %v843 = vshrl.u32 %v842, 7
        %v844 = vsub.s32 0, %v843
        %v845 = vrot.slane %v840, %v844
        %vm847 = vcmask 261120
        %v849 = vsel %vm847, %v832, 0
        %v852 = vsel %vm847, %v833, 0
        %854 = vmatprep.subr.mxu0 0.0
        %855 = vmatpush1.msra.mxu0 0.0
        %856 = vmatprep.subr.mxu0 0.0
        %857 = vmatpush1.msra.mxu0 0.0
        %858 = vmatprep.subr.mxu0 0.0
        %859 = vmatpush1.msra.mxu0 0.0
        %860 = vmatprep.subr.mxu0 0.0
        %861 = vmatpush1.msra.mxu0 0.0
        %862 = vmatprep.subr.mxu0 0.0
        %863 = vmatpush1.msra.mxu0 0.0
        %864 = vmatprep.subr.mxu0 0.0
        %865 = vmatpush1.msra.mxu0 0.0
        %866 = vmatprep.subr.mxu0 0.0
        %867 = vmatpush1.msra.mxu0 0.0
        %868 = vmatprep.subr.mxu0 0.0
        %869 = vmatpush1.msra.mxu0 0.0
        %870 = vmatprep.subr.mxu0 0.0
        %871 = vmatpush1.msra.mxu0 0.0
        %872 = vmatprep.subr.mxu0 0.0
        %873 = vmatpush1.msra.mxu0 0.0
        %874 = vmatprep.subr.mxu0 0.0
        %875 = vmatpush1.msra.mxu0 0.0
        %876 = vmatprep.subr.mxu0 0.0
        %877 = vmatpush1.msra.mxu0 0.0
        %878 = vmatprep.subr.mxu0 0.0
        %879 = vmatpush1.msra.mxu0 %v839
        %880 = vmatprep.subr.mxu0 0.0
        %881 = vmatpush1.msra.mxu0 %v838
        %882 = vmatprep.subr.mxu0 0.0
        %883 = vmatpush1.msra.mxu0 %v837
        %884 = vmatprep.subr.mxu0 0.0
        %885 = vmatpush1.msra.mxu0 %v836
        %886 = vmatprep.subr.mxu0 0.0
        %887 = vmatpush2.msra.mxu0 0.0
        %888 = vmatprep.subr.mxu0 0.0
        %889 = vmatpush2.msra.mxu0 0.0
        %890 = vmatprep.subr.mxu0 0.0
        %891 = vmatpush2.msra.mxu0 0.0
        %892 = vmatprep.subr.mxu0 0.0
        %893 = vmatpush2.msra.mxu0 0.0
        %894 = vmatprep.subr.mxu0 0.0
        %895 = vmatpush2.msra.mxu0 0.0
        %896 = vmatprep.subr.mxu0 0.0
        %897 = vmatpush2.msra.mxu0 0.0
        %898 = vmatprep.subr.mxu0 0.0
        %899 = vmatpush2.msra.mxu0 0.0
        %900 = vmatprep.subr.mxu0 0.0
        %901 = vmatpush2.msra.mxu0 0.0
        %902 = vmatprep.subr.mxu0 0.0
        %903 = vmatpush2.msra.mxu0 0.0
        %904 = vmatprep.subr.mxu0 0.0
        %905 = vmatpush2.msra.mxu0 0.0
        %906 = vmatprep.subr.mxu0 0.0
        %907 = vmatpush2.msra.mxu0 0.0
        %908 = vmatprep.subr.mxu0 0.0
        %909 = vmatpush2.msra.mxu0 0.0
        %910 = vmatprep.subr.mxu0 0.0
        %911 = vmatpush2.msra.mxu0 0.0
        %912 = vmatprep.subr.mxu0 0.0
        %913 = vmatpush2.msra.mxu0 0.0
        %914 = vmatprep.subr.mxu0 0.0
        %915 = vmatpush2.msra.mxu0 0.0
        %916 = vmatprep.subr.mxu0 0.0
        %917 = vmatpush2.msra.mxu0 0.0
        %918 = vmatprep.mubr.f32.mxu0 0.0
        %919 = vmatmul.mubr.f32.gmra.mxu0 %v849
        %v920 = vpop.f32.mrf.mxu0
        %v921 = vadd.f32 %v845, %v920
        %v922 = vpop.f32.mrf.mxu0
        %923 = vmatprep.mubr.f32.mxu0 0.0
        %924 = vmatmul.mubr.f32.gmra.mxu0 %v852
        %v925 = vpop.f32.mrf.mxu0
        %v926 = vadd.f32 %v845, %v925
        %v927 = vpop.f32.mrf.mxu0
        %928 = vdwg.mxu0
        %v929 = vld [vmem:[%s742] sm:$0xff]
        %v930 = vld [vmem:[%s742 + $0x8] sm:$0xff]
        %v931 = vld [vmem:[%s742 + $0x10] sm:$0xff]
        %v932 = vld [vmem:[%s742 + $0x18] sm:$0xff]
        %934 = vrot.lane.b32.xlu0 %v921, 96
        %v935 = vpop.permute.xlu0 %934
        %vm936 = vcmask 64512
        %v937 = vsel %vm936, %v921, 0
        %v939 = vsel %vm936, %v935, 0
        %941 = vmatprep.subr.mxu0 0.0
        %942 = vmatpush1.xpose.msra.mxu0 0.0
        %943 = vmatprep.subr.mxu0 0.0
        %944 = vmatpush1.xpose.msra.mxu0 0.0
        %945 = vmatprep.subr.mxu0 0.0
        %946 = vmatpush1.xpose.msra.mxu0 0.0
        %947 = vmatprep.subr.mxu0 0.0
        %948 = vmatpush1.xpose.msra.mxu0 0.0
        %949 = vmatprep.subr.mxu0 0.0
        %950 = vmatpush1.xpose.msra.mxu0 0.0
        %951 = vmatprep.subr.mxu0 0.0
        %952 = vmatpush1.xpose.msra.mxu0 0.0
        %953 = vmatprep.subr.mxu0 0.0
        %954 = vmatpush1.xpose.msra.mxu0 0.0
        %955 = vmatprep.subr.mxu0 0.0
        %956 = vmatpush1.xpose.msra.mxu0 0.0
        %957 = vmatprep.subr.mxu0 0.0
        %958 = vmatpush1.xpose.msra.mxu0 0.0
        %959 = vmatprep.subr.mxu0 0.0
        %960 = vmatpush1.xpose.msra.mxu0 0.0
        %961 = vmatprep.subr.mxu0 0.0
        %962 = vmatpush1.xpose.msra.mxu0 0.0
        %963 = vmatprep.subr.mxu0 0.0
        %964 = vmatpush1.xpose.msra.mxu0 0.0
        %965 = vmatprep.subr.mxu0 0.0
        %966 = vmatpush1.xpose.msra.mxu0 0.0
        %967 = vmatprep.subr.mxu0 0.0
        %968 = vmatpush1.xpose.msra.mxu0 0.0
        %969 = vmatprep.subr.mxu0 0.0
        %970 = vmatpush1.xpose.msra.mxu0 0.0
        %971 = vmatprep.subr.mxu0 0.0
        %972 = vmatpush1.xpose.msra.mxu0 %v939
        %973 = vmatprep.subr.mxu0 0.0
        %974 = vmatpush2.xpose.msra.mxu0 0.0
        %975 = vmatprep.subr.mxu0 0.0
        %976 = vmatpush2.xpose.msra.mxu0 0.0
        %977 = vmatprep.subr.mxu0 0.0
        %978 = vmatpush2.xpose.msra.mxu0 0.0
        %979 = vmatprep.subr.mxu0 0.0
        %980 = vmatpush2.xpose.msra.mxu0 0.0
        %981 = vmatprep.subr.mxu0 0.0
        %982 = vmatpush2.xpose.msra.mxu0 0.0
        %983 = vmatprep.subr.mxu0 0.0
        %984 = vmatpush2.xpose.msra.mxu0 0.0
        %985 = vmatprep.subr.mxu0 0.0
        %986 = vmatpush2.xpose.msra.mxu0 0.0
        %987 = vmatprep.subr.mxu0 0.0
        %988 = vmatpush2.xpose.msra.mxu0 0.0
        %989 = vmatprep.subr.mxu0 0.0
        %990 = vmatpush2.xpose.msra.mxu0 0.0
        %991 = vmatprep.subr.mxu0 0.0
        %992 = vmatpush2.xpose.msra.mxu0 0.0
        %993 = vmatprep.subr.mxu0 0.0
        %994 = vmatpush2.xpose.msra.mxu0 0.0
        %995 = vmatprep.subr.mxu0 0.0
        %996 = vmatpush2.xpose.msra.mxu0 0.0
        %997 = vmatprep.subr.mxu0 0.0
        %998 = vmatpush2.xpose.msra.mxu0 0.0
        %999 = vmatprep.subr.mxu0 0.0
        %1000 = vmatpush2.xpose.msra.mxu0 0.0
        %1001 = vmatprep.subr.mxu0 0.0
        %1002 = vmatpush2.xpose.msra.mxu0 0.0
        %1003 = vmatprep.subr.mxu0 0.0
        %1004 = vmatpush2.xpose.msra.mxu0 0.0
        %1005 = vmatprep.mubr.f32.mxu0 0.0
        %1006 = vmatmul.mubr.f32.gmra.mxu0 %v937
        %v1007 = vpop.f32.mrf.mxu0
        %v1008 = vadd.f32 0.0, %v1007
        %v1009 = vpop.f32.mrf.mxu0
        %1010 = vdwg.mxu0
        %1012 = vrot.lane.b32.xlu0 %v926, 96
        %v1013 = vpop.permute.xlu0 %1012
        %v1014 = vsel %vm936, %v926, 0
        %v1016 = vsel %vm936, %v1013, 0
        %1018 = vmatprep.subr.mxu0 0.0
        %1019 = vmatpush1.xpose.msra.mxu0 0.0
        %1020 = vmatprep.subr.mxu0 0.0
        %1021 = vmatpush1.xpose.msra.mxu0 0.0
        %1022 = vmatprep.subr.mxu0 0.0
        %1023 = vmatpush1.xpose.msra.mxu0 0.0
        %1024 = vmatprep.subr.mxu0 0.0
        %1025 = vmatpush1.xpose.msra.mxu0 0.0
        %1026 = vmatprep.subr.mxu0 0.0
        %1027 = vmatpush1.xpose.msra.mxu0 0.0
        %1028 = vmatprep.subr.mxu0 0.0
        %1029 = vmatpush1.xpose.msra.mxu0 0.0
        %1030 = vmatprep.subr.mxu0 0.0
        %1031 = vmatpush1.xpose.msra.mxu0 0.0
        %1032 = vmatprep.subr.mxu0 0.0
        %1033 = vmatpush1.xpose.msra.mxu0 0.0
        %1034 = vmatprep.subr.mxu0 0.0
        %1035 = vmatpush1.xpose.msra.mxu0 0.0
        %1036 = vmatprep.subr.mxu0 0.0
        %1037 = vmatpush1.xpose.msra.mxu0 0.0
        %1038 = vmatprep.subr.mxu0 0.0
        %1039 = vmatpush1.xpose.msra.mxu0 0.0
        %1040 = vmatprep.subr.mxu0 0.0
        %1041 = vmatpush1.xpose.msra.mxu0 0.0
        %1042 = vmatprep.subr.mxu0 0.0
        %1043 = vmatpush1.xpose.msra.mxu0 0.0
        %1044 = vmatprep.subr.mxu0 0.0
        %1045 = vmatpush1.xpose.msra.mxu0 0.0
        %1046 = vmatprep.subr.mxu0 0.0
        %1047 = vmatpush1.xpose.msra.mxu0 0.0
        %1048 = vmatprep.subr.mxu0 0.0
        %1049 = vmatpush1.xpose.msra.mxu0 %v1016
        %1050 = vmatprep.subr.mxu0 0.0
        %1051 = vmatpush2.xpose.msra.mxu0 0.0
        %1052 = vmatprep.subr.mxu0 0.0
        %1053 = vmatpush2.xpose.msra.mxu0 0.0
        %1054 = vmatprep.subr.mxu0 0.0
        %1055 = vmatpush2.xpose.msra.mxu0 0.0
        %1056 = vmatprep.subr.mxu0 0.0
        %1057 = vmatpush2.xpose.msra.mxu0 0.0
        %1058 = vmatprep.subr.mxu0 0.0
        %1059 = vmatpush2.xpose.msra.mxu0 0.0
        %1060 = vmatprep.subr.mxu0 0.0
        %1061 = vmatpush2.xpose.msra.mxu0 0.0
        %1062 = vmatprep.subr.mxu0 0.0
        %1063 = vmatpush2.xpose.msra.mxu0 0.0
        %1064 = vmatprep.subr.mxu0 0.0
        %1065 = vmatpush2.xpose.msra.mxu0 0.0
        %1066 = vmatprep.subr.mxu0 0.0
        %1067 = vmatpush2.xpose.msra.mxu0 0.0
        %1068 = vmatprep.subr.mxu0 0.0
        %1069 = vmatpush2.xpose.msra.mxu0 0.0
        %1070 = vmatprep.subr.mxu0 0.0
        %1071 = vmatpush2.xpose.msra.mxu0 0.0
        %1072 = vmatprep.subr.mxu0 0.0
        %1073 = vmatpush2.xpose.msra.mxu0 0.0
        %1074 = vmatprep.subr.mxu0 0.0
        %1075 = vmatpush2.xpose.msra.mxu0 0.0
        %1076 = vmatprep.subr.mxu0 0.0
        %1077 = vmatpush2.xpose.msra.mxu0 0.0
        %1078 = vmatprep.subr.mxu0 0.0
        %1079 = vmatpush2.xpose.msra.mxu0 0.0
        %1080 = vmatprep.subr.mxu0 0.0
        %1081 = vmatpush2.xpose.msra.mxu0 0.0
        %1082 = vmatprep.mubr.f32.mxu0 0.0
        %1083 = vmatmul.mubr.f32.gmra.mxu0 %v1014
        %v1084 = vpop.f32.mrf.mxu0
        %v1085 = vadd.f32 0.0, %v1084
        %v1086 = vpop.f32.mrf.mxu0
        %1087 = vdwg.mxu0
        %v1088 = vmul.f32 %v1008, 0.35355338
        %v1089 = vmul.f32 %v1085, 0.35355338
        %v1092 = vlaneseq
        %v1093 = vshrl.u32 %v1092, 7
        %v1094 = vsub.s32 0, %v1093
        %v1095 = vrot.slane %v834, %v1094
        %v1096 = vlaneseq
        %v1097 = vshrl.u32 %v1096, 7
        %v1098 = vsub.s32 0, %v1097
        %v1099 = vrot.slane %v835, %v1098
        %v1102 = vadd.f32 %v1088, %v1095
        %v1103 = vadd.f32 %v1089, %v1099
        %v1104 = vsel %vm936, %v1102, -inf
        %1105 = vmax.xlane.f32.xlu0 %v1104
        %v1106 = vpop.xlane.xlu0 %1105
        %v1107 = vsel %vm936, %v1103, -inf
        %1108 = vmax.xlane.f32.xlu0 %v1107
        %v1109 = vpop.xlane.xlu0 %1108
        %v1110 = vsub.f32 %v1102, %v1106
        %v1111 = vsub.f32 %v1103, %v1109
        %v1112 = vmul.f32 %v1110, 1.442695
        %v1113 = vpow.pop %v1112
        %v1114 = vmul.f32 %v1111, 1.442695
        %v1115 = vpow.pop %v1114
        %v1116 = vsel %vm936, %v1113, 0.0
        %1117 = vadd.xlane.f32.xlu0 %v1116
        %v1118 = vpop.xlane.xlu0 %1117
        %v1119 = vsel %vm936, %v1115, 0.0
        %1120 = vadd.xlane.f32.xlu0 %v1119
        %v1121 = vpop.xlane.xlu0 %1120
        %v1122 = vrcp.pop %v1118
        %v1123 = vrcp.pop %v1121
        %v1124 = vmul.f32 %v1113, %v1122
        %v1125 = vmul.f32 %v1115, %v1123
        %1126 = vrot.lane.b32.xlu0 %v921, 64
        %v1127 = vpop.permute.xlu0 %1126
        %v1130 = vsel %vm936, %v1124, 0
        %1132 = vmatprep.subr.mxu0 0.0
        %1133 = vmatpush1.msra.mxu0 0.0
        %1134 = vmatprep.subr.mxu0 0.0
        %1135 = vmatpush1.msra.mxu0 0.0
        %1136 = vmatprep.subr.mxu0 0.0
        %1137 = vmatpush1.msra.mxu0 0.0
        %1138 = vmatprep.subr.mxu0 0.0
        %1139 = vmatpush1.msra.mxu0 0.0
        %1140 = vmatprep.subr.mxu0 0.0
        %1141 = vmatpush1.msra.mxu0 0.0
        %1142 = vmatprep.subr.mxu0 0.0
        %1143 = vmatpush1.msra.mxu0 0.0
        %1144 = vmatprep.subr.mxu0 0.0
        %1145 = vmatpush1.msra.mxu0 0.0
        %1146 = vmatprep.subr.mxu0 0.0
        %1147 = vmatpush1.msra.mxu0 0.0
        %1148 = vmatprep.subr.mxu0 0.0
        %1149 = vmatpush1.msra.mxu0 0.0
        %1150 = vmatprep.subr.mxu0 0.0
        %1151 = vmatpush1.msra.mxu0 0.0
        %1152 = vmatprep.subr.mxu0 0.0
        %1153 = vmatpush1.msra.mxu0 0.0
        %1154 = vmatprep.subr.mxu0 0.0
        %1155 = vmatpush1.msra.mxu0 0.0
        %1156 = vmatprep.subr.mxu0 0.0
        %1157 = vmatpush1.msra.mxu0 0.0
        %1158 = vmatprep.subr.mxu0 0.0
        %1159 = vmatpush1.msra.mxu0 0.0
        %1160 = vmatprep.subr.mxu0 0.0
        %1161 = vmatpush1.msra.mxu0 0.0
        %1162 = vmatprep.subr.mxu0 0.0
        %1163 = vmatpush1.msra.mxu0 %v1127
        %1164 = vmatprep.subr.mxu0 0.0
        %1165 = vmatpush2.msra.mxu0 0.0
        %1166 = vmatprep.subr.mxu0 0.0
        %1167 = vmatpush2.msra.mxu0 0.0
        %1168 = vmatprep.subr.mxu0 0.0
        %1169 = vmatpush2.msra.mxu0 0.0
        %1170 = vmatprep.subr.mxu0 0.0
        %1171 = vmatpush2.msra.mxu0 0.0
        %1172 = vmatprep.subr.mxu0 0.0
        %1173 = vmatpush2.msra.mxu0 0.0
        %1174 = vmatprep.subr.mxu0 0.0
        %1175 = vmatpush2.msra.mxu0 0.0
        %1176 = vmatprep.subr.mxu0 0.0
        %1177 = vmatpush2.msra.mxu0 0.0
        %1178 = vmatprep.subr.mxu0 0.0
        %1179 = vmatpush2.msra.mxu0 0.0
        %1180 = vmatprep.subr.mxu0 0.0
        %1181 = vmatpush2.msra.mxu0 0.0
        %1182 = vmatprep.subr.mxu0 0.0
        %1183 = vmatpush2.msra.mxu0 0.0
        %1184 = vmatprep.subr.mxu0 0.0
        %1185 = vmatpush2.msra.mxu0 0.0
        %1186 = vmatprep.subr.mxu0 0.0
        %1187 = vmatpush2.msra.mxu0 0.0
        %1188 = vmatprep.subr.mxu0 0.0
        %1189 = vmatpush2.msra.mxu0 0.0
        %1190 = vmatprep.subr.mxu0 0.0
        %1191 = vmatpush2.msra.mxu0 0.0
        %1192 = vmatprep.subr.mxu0 0.0
        %1193 = vmatpush2.msra.mxu0 0.0
        %1194 = vmatprep.subr.mxu0 0.0
        %1195 = vmatpush2.msra.mxu0 0.0
        %1196 = vmatprep.mubr.f32.mxu0 0.0
        %1197 = vmatmul.mubr.f32.gmra.mxu0 %v1130
        %v1198 = vpop.f32.mrf.mxu0
        %v1199 = vadd.f32 0.0, %v1198
        %v1200 = vpop.f32.mrf.mxu0
        %1201 = vdwg.mxu0
        %1202 = vrot.lane.b32.xlu0 %v926, 64
        %v1203 = vpop.permute.xlu0 %1202
        %v1206 = vsel %vm936, %v1125, 0
        %1208 = vmatprep.subr.mxu0 0.0
        %1209 = vmatpush1.msra.mxu0 0.0
        %1210 = vmatprep.subr.mxu0 0.0
        %1211 = vmatpush1.msra.mxu0 0.0
        %1212 = vmatprep.subr.mxu0 0.0
        %1213 = vmatpush1.msra.mxu0 0.0
        %1214 = vmatprep.subr.mxu0 0.0
        %1215 = vmatpush1.msra.mxu0 0.0
        %1216 = vmatprep.subr.mxu0 0.0
        %1217 = vmatpush1.msra.mxu0 0.0
        %1218 = vmatprep.subr.mxu0 0.0
        %1219 = vmatpush1.msra.mxu0 0.0
        %1220 = vmatprep.subr.mxu0 0.0
        %1221 = vmatpush1.msra.mxu0 0.0
        %1222 = vmatprep.subr.mxu0 0.0
        %1223 = vmatpush1.msra.mxu0 0.0
        %1224 = vmatprep.subr.mxu0 0.0
        %1225 = vmatpush1.msra.mxu0 0.0
        %1226 = vmatprep.subr.mxu0 0.0
        %1227 = vmatpush1.msra.mxu0 0.0
        %1228 = vmatprep.subr.mxu0 0.0
        %1229 = vmatpush1.msra.mxu0 0.0
        %1230 = vmatprep.subr.mxu0 0.0
        %1231 = vmatpush1.msra.mxu0 0.0
        %1232 = vmatprep.subr.mxu0 0.0
        %1233 = vmatpush1.msra.mxu0 0.0
        %1234 = vmatprep.subr.mxu0 0.0
        %1235 = vmatpush1.msra.mxu0 0.0
        %1236 = vmatprep.subr.mxu0 0.0
        %1237 = vmatpush1.msra.mxu0 0.0
        %1238 = vmatprep.subr.mxu0 0.0
        %1239 = vmatpush1.msra.mxu0 %v1203
        %1240 = vmatprep.subr.mxu0 0.0
        %1241 = vmatpush2.msra.mxu0 0.0
        %1242 = vmatprep.subr.mxu0 0.0
        %1243 = vmatpush2.msra.mxu0 0.0
        %1244 = vmatprep.subr.mxu0 0.0
        %1245 = vmatpush2.msra.mxu0 0.0
        %1246 = vmatprep.subr.mxu0 0.0
        %1247 = vmatpush2.msra.mxu0 0.0
        %1248 = vmatprep.subr.mxu0 0.0
        %1249 = vmatpush2.msra.mxu0 0.0
        %1250 = vmatprep.subr.mxu0 0.0
        %1251 = vmatpush2.msra.mxu0 0.0
        %1252 = vmatprep.subr.mxu0 0.0
        %1253 = vmatpush2.msra.mxu0 0.0
        %1254 = vmatprep.subr.mxu0 0.0
        %1255 = vmatpush2.msra.mxu0 0.0
        %1256 = vmatprep.subr.mxu0 0.0
        %1257 = vmatpush2.msra.mxu0 0.0
        %1258 = vmatprep.subr.mxu0 0.0
        %1259 = vmatpush2.msra.mxu0 0.0
        %1260 = vmatprep.subr.mxu0 0.0
        %1261 = vmatpush2.msra.mxu0 0.0
        %1262 = vmatprep.subr.mxu0 0.0
        %1263 = vmatpush2.msra.mxu0 0.0
        %1264 = vmatprep.subr.mxu0 0.0
        %1265 = vmatpush2.msra.mxu0 0.0
        %1266 = vmatprep.subr.mxu0 0.0
        %1267 = vmatpush2.msra.mxu0 0.0
        %1268 = vmatprep.subr.mxu0 0.0
        %1269 = vmatpush2.msra.mxu0 0.0
        %1270 = vmatprep.subr.mxu0 0.0
        %1271 = vmatpush2.msra.mxu0 0.0
        %1272 = vmatprep.mubr.f32.mxu0 0.0
        %1273 = vmatmul.mubr.f32.gmra.mxu0 %v1206
        %v1274 = vpop.f32.mrf.mxu0
        %v1275 = vadd.f32 0.0, %v1274
        %v1276 = vpop.f32.mrf.mxu0
        %1277 = vdwg.mxu0
        %1278 = vrot.lane.b32.xlu0 %v921, 120
        %v1279 = vpop.permute.xlu0 %1278
        %1280 = vrot.lane.b32.xlu0 %v921, 88
        %v1281 = vpop.permute.xlu0 %1280
        %v1282 = vsel %vm936, %v1279, 0
        %v1284 = vsel %vm936, %v1281, 0
        %1286 = vmatprep.subr.mxu0 0.0
        %1287 = vmatpush1.xpose.msra.mxu0 0.0
        %1288 = vmatprep.subr.mxu0 0.0
        %1289 = vmatpush1.xpose.msra.mxu0 0.0
        %1290 = vmatprep.subr.mxu0 0.0
        %1291 = vmatpush1.xpose.msra.mxu0 0.0
        %1292 = vmatprep.subr.mxu0 0.0
        %1293 = vmatpush1.xpose.msra.mxu0 0.0
        %1294 = vmatprep.subr.mxu0 0.0
        %1295 = vmatpush1.xpose.msra.mxu0 0.0
        %1296 = vmatprep.subr.mxu0 0.0
        %1297 = vmatpush1.xpose.msra.mxu0 0.0
        %1298 = vmatprep.subr.mxu0 0.0
        %1299 = vmatpush1.xpose.msra.mxu0 0.0
        %1300 = vmatprep.subr.mxu0 0.0
        %1301 = vmatpush1.xpose.msra.mxu0 0.0
        %1302 = vmatprep.subr.mxu0 0.0
        %1303 = vmatpush1.xpose.msra.mxu0 0.0
        %1304 = vmatprep.subr.mxu0 0.0
        %1305 = vmatpush1.xpose.msra.mxu0 0.0
        %1306 = vmatprep.subr.mxu0 0.0
        %1307 = vmatpush1.xpose.msra.mxu0 0.0
        %1308 = vmatprep.subr.mxu0 0.0
        %1309 = vmatpush1.xpose.msra.mxu0 0.0
        %1310 = vmatprep.subr.mxu0 0.0
        %1311 = vmatpush1.xpose.msra.mxu0 0.0
        %1312 = vmatprep.subr.mxu0 0.0
        %1313 = vmatpush1.xpose.msra.mxu0 0.0
        %1314 = vmatprep.subr.mxu0 0.0
        %1315 = vmatpush1.xpose.msra.mxu0 0.0
        %1316 = vmatprep.subr.mxu0 0.0
        %1317 = vmatpush1.xpose.msra.mxu0 %v1284
        %1318 = vmatprep.subr.mxu0 0.0
        %1319 = vmatpush2.xpose.msra.mxu0 0.0
        %1320 = vmatprep.subr.mxu0 0.0
        %1321 = vmatpush2.xpose.msra.mxu0 0.0
        %1322 = vmatprep.subr.mxu0 0.0
        %1323 = vmatpush2.xpose.msra.mxu0 0.0
        %1324 = vmatprep.subr.mxu0 0.0
        %1325 = vmatpush2.xpose.msra.mxu0 0.0
        %1326 = vmatprep.subr.mxu0 0.0
        %1327 = vmatpush2.xpose.msra.mxu0 0.0
        %1328 = vmatprep.subr.mxu0 0.0
        %1329 = vmatpush2.xpose.msra.mxu0 0.0
        %1330 = vmatprep.subr.mxu0 0.0
        %1331 = vmatpush2.xpose.msra.mxu0 0.0
        %1332 = vmatprep.subr.mxu0 0.0
        %1333 = vmatpush2.xpose.msra.mxu0 0.0
        %1334 = vmatprep.subr.mxu0 0.0
        %1335 = vmatpush2.xpose.msra.mxu0 0.0
        %1336 = vmatprep.subr.mxu0 0.0
        %1337 = vmatpush2.xpose.msra.mxu0 0.0
        %1338 = vmatprep.subr.mxu0 0.0
        %1339 = vmatpush2.xpose.msra.mxu0 0.0
        %1340 = vmatprep.subr.mxu0 0.0
        %1341 = vmatpush2.xpose.msra.mxu0 0.0
        %1342 = vmatprep.subr.mxu0 0.0
        %1343 = vmatpush2.xpose.msra.mxu0 0.0
        %1344 = vmatprep.subr.mxu0 0.0
        %1345 = vmatpush2.xpose.msra.mxu0 0.0
        %1346 = vmatprep.subr.mxu0 0.0
        %1347 = vmatpush2.xpose.msra.mxu0 0.0
        %1348 = vmatprep.subr.mxu0 0.0
        %1349 = vmatpush2.xpose.msra.mxu0 0.0
        %1350 = vmatprep.mubr.f32.mxu0 0.0
        %1351 = vmatmul.mubr.f32.gmra.mxu0 %v1282
        %v1352 = vpop.f32.mrf.mxu0
        %v1353 = vadd.f32 0.0, %v1352
        %v1354 = vpop.f32.mrf.mxu0
        %1355 = vdwg.mxu0
        %1356 = vrot.lane.b32.xlu0 %v926, 120
        %v1357 = vpop.permute.xlu0 %1356
        %1358 = vrot.lane.b32.xlu0 %v926, 88
        %v1359 = vpop.permute.xlu0 %1358
        %v1360 = vsel %vm936, %v1357, 0
        %v1362 = vsel %vm936, %v1359, 0
        %1364 = vmatprep.subr.mxu0 0.0
        %1365 = vmatpush1.xpose.msra.mxu0 0.0
        %1366 = vmatprep.subr.mxu0 0.0
        %1367 = vmatpush1.xpose.msra.mxu0 0.0
        %1368 = vmatprep.subr.mxu0 0.0
        %1369 = vmatpush1.xpose.msra.mxu0 0.0
        %1370 = vmatprep.subr.mxu0 0.0
        %1371 = vmatpush1.xpose.msra.mxu0 0.0
        %1372 = vmatprep.subr.mxu0 0.0
        %1373 = vmatpush1.xpose.msra.mxu0 0.0
        %1374 = vmatprep.subr.mxu0 0.0
        %1375 = vmatpush1.xpose.msra.mxu0 0.0
        %1376 = vmatprep.subr.mxu0 0.0
        %1377 = vmatpush1.xpose.msra.mxu0 0.0
        %1378 = vmatprep.subr.mxu0 0.0
        %1379 = vmatpush1.xpose.msra.mxu0 0.0
        %1380 = vmatprep.subr.mxu0 0.0
        %1381 = vmatpush1.xpose.msra.mxu0 0.0
        %1382 = vmatprep.subr.mxu0 0.0
        %1383 = vmatpush1.xpose.msra.mxu0 0.0
        %1384 = vmatprep.subr.mxu0 0.0
        %1385 = vmatpush1.xpose.msra.mxu0 0.0
        %1386 = vmatprep.subr.mxu0 0.0
        %1387 = vmatpush1.xpose.msra.mxu0 0.0
        %1388 = vmatprep.subr.mxu0 0.0
        %1389 = vmatpush1.xpose.msra.mxu0 0.0
        %1390 = vmatprep.subr.mxu0 0.0
        %1391 = vmatpush1.xpose.msra.mxu0 0.0
        %1392 = vmatprep.subr.mxu0 0.0
        %1393 = vmatpush1.xpose.msra.mxu0 0.0
        %1394 = vmatprep.subr.mxu0 0.0
        %1395 = vmatpush1.xpose.msra.mxu0 %v1362
        %1396 = vmatprep.subr.mxu0 0.0
        %1397 = vmatpush2.xpose.msra.mxu0 0.0
        %1398 = vmatprep.subr.mxu0 0.0
        %1399 = vmatpush2.xpose.msra.mxu0 0.0
        %1400 = vmatprep.subr.mxu0 0.0
        %1401 = vmatpush2.xpose.msra.mxu0 0.0
        %1402 = vmatprep.subr.mxu0 0.0
        %1403 = vmatpush2.xpose.msra.mxu0 0.0
        %1404 = vmatprep.subr.mxu0 0.0
        %1405 = vmatpush2.xpose.msra.mxu0 0.0
        %1406 = vmatprep.subr.mxu0 0.0
        %1407 = vmatpush2.xpose.msra.mxu0 0.0
        %1408 = vmatprep.subr.mxu0 0.0
        %1409 = vmatpush2.xpose.msra.mxu0 0.0
        %1410 = vmatprep.subr.mxu0 0.0
        %1411 = vmatpush2.xpose.msra.mxu0 0.0
        %1412 = vmatprep.subr.mxu0 0.0
        %1413 = vmatpush2.xpose.msra.mxu0 0.0
        %1414 = vmatprep.subr.mxu0 0.0
        %1415 = vmatpush2.xpose.msra.mxu0 0.0
        %1416 = vmatprep.subr.mxu0 0.0
        %1417 = vmatpush2.xpose.msra.mxu0 0.0
        %1418 = vmatprep.subr.mxu0 0.0
        %1419 = vmatpush2.xpose.msra.mxu0 0.0
        %1420 = vmatprep.subr.mxu0 0.0
        %1421 = vmatpush2.xpose.msra.mxu0 0.0
        %1422 = vmatprep.subr.mxu0 0.0
        %1423 = vmatpush2.xpose.msra.mxu0 0.0
        %1424 = vmatprep.subr.mxu0 0.0
        %1425 = vmatpush2.xpose.msra.mxu0 0.0
        %1426 = vmatprep.subr.mxu0 0.0
        %1427 = vmatpush2.xpose.msra.mxu0 0.0
        %1428 = vmatprep.mubr.f32.mxu0 0.0
        %1429 = vmatmul.mubr.f32.gmra.mxu0 %v1360
        %v1430 = vpop.f32.mrf.mxu0
        %v1431 = vadd.f32 0.0, %v1430
        %v1432 = vpop.f32.mrf.mxu0
        %1433 = vdwg.mxu0
        %v1434 = vmul.f32 %v1353, 0.35355338
        %v1435 = vmul.f32 %v1431, 0.35355338
        %v1436 = vadd.f32 %v1434, %v1095
        %v1437 = vadd.f32 %v1435, %v1099
        %v1438 = vsel %vm936, %v1436, -inf
        %1439 = vmax.xlane.f32.xlu0 %v1438
        %v1440 = vpop.xlane.xlu0 %1439
        %v1441 = vsel %vm936, %v1437, -inf
        %1442 = vmax.xlane.f32.xlu0 %v1441
        %v1443 = vpop.xlane.xlu0 %1442
        %v1444 = vsub.f32 %v1436, %v1440
        %v1445 = vsub.f32 %v1437, %v1443
        %v1446 = vmul.f32 %v1444, 1.442695
        %v1447 = vpow.pop %v1446
        %v1448 = vmul.f32 %v1445, 1.442695
        %v1449 = vpow.pop %v1448
        %v1450 = vsel %vm936, %v1447, 0.0
        %1451 = vadd.xlane.f32.xlu0 %v1450
        %v1452 = vpop.xlane.xlu0 %1451
        %v1453 = vsel %vm936, %v1449, 0.0
        %1454 = vadd.xlane.f32.xlu0 %v1453
        %v1455 = vpop.xlane.xlu0 %1454
        %v1456 = vrcp.pop %v1452
        %v1457 = vrcp.pop %v1455
        %v1458 = vmul.f32 %v1447, %v1456
        %v1459 = vmul.f32 %v1449, %v1457
        %1460 = vrot.lane.b32.xlu0 %v921, 56
        %v1461 = vpop.permute.xlu0 %1460
        %v1464 = vsel %vm936, %v1458, 0
        %1466 = vmatprep.subr.mxu0 0.0
        %1467 = vmatpush1.msra.mxu0 0.0
        %1468 = vmatprep.subr.mxu0 0.0
        %1469 = vmatpush1.msra.mxu0 0.0
        %1470 = vmatprep.subr.mxu0 0.0
        %1471 = vmatpush1.msra.mxu0 0.0
        %1472 = vmatprep.subr.mxu0 0.0
        %1473 = vmatpush1.msra.mxu0 0.0
        %1474 = vmatprep.subr.mxu0 0.0
        %1475 = vmatpush1.msra.mxu0 0.0
        %1476 = vmatprep.subr.mxu0 0.0
        %1477 = vmatpush1.msra.mxu0 0.0
        %1478 = vmatprep.subr.mxu0 0.0
        %1479 = vmatpush1.msra.mxu0 0.0
        %1480 = vmatprep.subr.mxu0 0.0
        %1481 = vmatpush1.msra.mxu0 0.0
        %1482 = vmatprep.subr.mxu0 0.0
        %1483 = vmatpush1.msra.mxu0 0.0
        %1484 = vmatprep.subr.mxu0 0.0
        %1485 = vmatpush1.msra.mxu0 0.0
        %1486 = vmatprep.subr.mxu0 0.0
        %1487 = vmatpush1.msra.mxu0 0.0
        %1488 = vmatprep.subr.mxu0 0.0
        %1489 = vmatpush1.msra.mxu0 0.0
        %1490 = vmatprep.subr.mxu0 0.0
        %1491 = vmatpush1.msra.mxu0 0.0
        %1492 = vmatprep.subr.mxu0 0.0
        %1493 = vmatpush1.msra.mxu0 0.0
        %1494 = vmatprep.subr.mxu0 0.0
        %1495 = vmatpush1.msra.mxu0 0.0
        %1496 = vmatprep.subr.mxu0 0.0
        %1497 = vmatpush1.msra.mxu0 %v1461
        %1498 = vmatprep.subr.mxu0 0.0
        %1499 = vmatpush2.msra.mxu0 0.0
        %1500 = vmatprep.subr.mxu0 0.0
        %1501 = vmatpush2.msra.mxu0 0.0
        %1502 = vmatprep.subr.mxu0 0.0
        %1503 = vmatpush2.msra.mxu0 0.0
        %1504 = vmatprep.subr.mxu0 0.0
        %1505 = vmatpush2.msra.mxu0 0.0
        %1506 = vmatprep.subr.mxu0 0.0
        %1507 = vmatpush2.msra.mxu0 0.0
        %1508 = vmatprep.subr.mxu0 0.0
        %1509 = vmatpush2.msra.mxu0 0.0
        %1510 = vmatprep.subr.mxu0 0.0
        %1511 = vmatpush2.msra.mxu0 0.0
        %1512 = vmatprep.subr.mxu0 0.0
        %1513 = vmatpush2.msra.mxu0 0.0
        %1514 = vmatprep.subr.mxu0 0.0
        %1515 = vmatpush2.msra.mxu0 0.0
        %1516 = vmatprep.subr.mxu0 0.0
        %1517 = vmatpush2.msra.mxu0 0.0
        %1518 = vmatprep.subr.mxu0 0.0
        %1519 = vmatpush2.msra.mxu0 0.0
        %1520 = vmatprep.subr.mxu0 0.0
        %1521 = vmatpush2.msra.mxu0 0.0
        %1522 = vmatprep.subr.mxu0 0.0
        %1523 = vmatpush2.msra.mxu0 0.0
        %1524 = vmatprep.subr.mxu0 0.0
        %1525 = vmatpush2.msra.mxu0 0.0
        %1526 = vmatprep.subr.mxu0 0.0
        %1527 = vmatpush2.msra.mxu0 0.0
        %1528 = vmatprep.subr.mxu0 0.0
        %1529 = vmatpush2.msra.mxu0 0.0
        %1530 = vmatprep.mubr.f32.mxu0 0.0
        %1531 = vmatmul.mubr.f32.gmra.mxu0 %v1464
        %v1532 = vpop.f32.mrf.mxu0
        %v1533 = vadd.f32 0.0, %v1532
        %v1534 = vpop.f32.mrf.mxu0
        %1535 = vdwg.mxu0
        %1536 = vrot.lane.b32.xlu0 %v926, 56
        %v1537 = vpop.permute.xlu0 %1536
        %v1540 = vsel %vm936, %v1459, 0
        %1542 = vmatprep.subr.mxu0 0.0
        %1543 = vmatpush1.msra.mxu0 0.0
        %1544 = vmatprep.subr.mxu0 0.0
        %1545 = vmatpush1.msra.mxu0 0.0
        %1546 = vmatprep.subr.mxu0 0.0
        %1547 = vmatpush1.msra.mxu0 0.0
        %1548 = vmatprep.subr.mxu0 0.0
        %1549 = vmatpush1.msra.mxu0 0.0
        %1550 = vmatprep.subr.mxu0 0.0
        %1551 = vmatpush1.msra.mxu0 0.0
        %1552 = vmatprep.subr.mxu0 0.0
        %1553 = vmatpush1.msra.mxu0 0.0
        %1554 = vmatprep.subr.mxu0 0.0
        %1555 = vmatpush1.msra.mxu0 0.0
        %1556 = vmatprep.subr.mxu0 0.0
        %1557 = vmatpush1.msra.mxu0 0.0
        %1558 = vmatprep.subr.mxu0 0.0
        %1559 = vmatpush1.msra.mxu0 0.0
        %1560 = vmatprep.subr.mxu0 0.0
        %1561 = vmatpush1.msra.mxu0 0.0
        %1562 = vmatprep.subr.mxu0 0.0
        %1563 = vmatpush1.msra.mxu0 0.0
        %1564 = vmatprep.subr.mxu0 0.0
        %1565 = vmatpush1.msra.mxu0 0.0
        %1566 = vmatprep.subr.mxu0 0.0
        %1567 = vmatpush1.msra.mxu0 0.0
        %1568 = vmatprep.subr.mxu0 0.0
        %1569 = vmatpush1.msra.mxu0 0.0
        %1570 = vmatprep.subr.mxu0 0.0
        %1571 = vmatpush1.msra.mxu0 0.0
        %1572 = vmatprep.subr.mxu0 0.0
        %1573 = vmatpush1.msra.mxu0 %v1537
        %1574 = vmatprep.subr.mxu0 0.0
        %1575 = vmatpush2.msra.mxu0 0.0
        %1576 = vmatprep.subr.mxu0 0.0
        %1577 = vmatpush2.msra.mxu0 0.0
        %1578 = vmatprep.subr.mxu0 0.0
        %1579 = vmatpush2.msra.mxu0 0.0
        %1580 = vmatprep.subr.mxu0 0.0
        %1581 = vmatpush2.msra.mxu0 0.0
        %1582 = vmatprep.subr.mxu0 0.0
        %1583 = vmatpush2.msra.mxu0 0.0
        %1584 = vmatprep.subr.mxu0 0.0
        %1585 = vmatpush2.msra.mxu0 0.0
        %1586 = vmatprep.subr.mxu0 0.0
        %1587 = vmatpush2.msra.mxu0 0.0
        %1588 = vmatprep.subr.mxu0 0.0
        %1589 = vmatpush2.msra.mxu0 0.0
        %1590 = vmatprep.subr.mxu0 0.0
        %1591 = vmatpush2.msra.mxu0 0.0
        %1592 = vmatprep.subr.mxu0 0.0
        %1593 = vmatpush2.msra.mxu0 0.0
        %1594 = vmatprep.subr.mxu0 0.0
        %1595 = vmatpush2.msra.mxu0 0.0
        %1596 = vmatprep.subr.mxu0 0.0
        %1597 = vmatpush2.msra.mxu0 0.0
        %1598 = vmatprep.subr.mxu0 0.0
        %1599 = vmatpush2.msra.mxu0 0.0
        %1600 = vmatprep.subr.mxu0 0.0
        %1601 = vmatpush2.msra.mxu0 0.0
        %1602 = vmatprep.subr.mxu0 0.0
        %1603 = vmatpush2.msra.mxu0 0.0
        %1604 = vmatprep.subr.mxu0 0.0
        %1605 = vmatpush2.msra.mxu0 0.0
        %1606 = vmatprep.mubr.f32.mxu0 0.0
        %1607 = vmatmul.mubr.f32.gmra.mxu0 %v1540
        %v1608 = vpop.f32.mrf.mxu0
        %v1609 = vadd.f32 0.0, %v1608
        %v1610 = vpop.f32.mrf.mxu0
        %1611 = vdwg.mxu0
        %v1613 = vsel %vm936, %v1533, 0
        %v1616 = vsel %vm936, %v1609, 0
        %1618 = vmatprep.subr.mxu0 0.0
        %1619 = vmatpush1.msra.mxu0 0.0
        %1620 = vmatprep.subr.mxu0 0.0
        %1621 = vmatpush1.msra.mxu0 0.0
        %1622 = vmatprep.subr.mxu0 0.0
        %1623 = vmatpush1.msra.mxu0 0.0
        %1624 = vmatprep.subr.mxu0 0.0
        %1625 = vmatpush1.msra.mxu0 0.0
        %1626 = vmatprep.subr.mxu0 0.0
        %1627 = vmatpush1.msra.mxu0 0.0
        %1628 = vmatprep.subr.mxu0 0.0
        %1629 = vmatpush1.msra.mxu0 0.0
        %1630 = vmatprep.subr.mxu0 0.0
        %1631 = vmatpush1.msra.mxu0 0.0
        %1632 = vmatprep.subr.mxu0 0.0
        %1633 = vmatpush1.msra.mxu0 0.0
        %1634 = vmatprep.subr.mxu0 0.0
        %1635 = vmatpush1.msra.mxu0 0.0
        %1636 = vmatprep.subr.mxu0 0.0
        %1637 = vmatpush1.msra.mxu0 0.0
        %1638 = vmatprep.subr.mxu0 0.0
        %1639 = vmatpush1.msra.mxu0 0.0
        %1640 = vmatprep.subr.mxu0 0.0
        %1641 = vmatpush1.msra.mxu0 0.0
        %1642 = vmatprep.subr.mxu0 0.0
        %1643 = vmatpush1.msra.mxu0 0.0
        %1644 = vmatprep.subr.mxu0 0.0
        %1645 = vmatpush1.msra.mxu0 0.0
        %1646 = vmatprep.subr.mxu0 0.0
        %1647 = vmatpush1.msra.mxu0 0.0
        %1648 = vmatprep.subr.mxu0 0.0
        %1649 = vmatpush1.msra.mxu0 %v930
        %1650 = vmatprep.subr.mxu0 0.0
        %1651 = vmatpush2.msra.mxu0 0.0
        %1652 = vmatprep.subr.mxu0 0.0
        %1653 = vmatpush2.msra.mxu0 0.0
        %1654 = vmatprep.subr.mxu0 0.0
        %1655 = vmatpush2.msra.mxu0 0.0
        %1656 = vmatprep.subr.mxu0 0.0
        %1657 = vmatpush2.msra.mxu0 0.0
        %1658 = vmatprep.subr.mxu0 0.0
        %1659 = vmatpush2.msra.mxu0 0.0
        %1660 = vmatprep.subr.mxu0 0.0
        %1661 = vmatpush2.msra.mxu0 0.0
        %1662 = vmatprep.subr.mxu0 0.0
        %1663 = vmatpush2.msra.mxu0 0.0
        %1664 = vmatprep.subr.mxu0 0.0
        %1665 = vmatpush2.msra.mxu0 0.0
        %1666 = vmatprep.subr.mxu0 0.0
        %1667 = vmatpush2.msra.mxu0 0.0
        %1668 = vmatprep.subr.mxu0 0.0
        %1669 = vmatpush2.msra.mxu0 0.0
        %1670 = vmatprep.subr.mxu0 0.0
        %1671 = vmatpush2.msra.mxu0 0.0
        %1672 = vmatprep.subr.mxu0 0.0
        %1673 = vmatpush2.msra.mxu0 0.0
        %1674 = vmatprep.subr.mxu0 0.0
        %1675 = vmatpush2.msra.mxu0 0.0
        %1676 = vmatprep.subr.mxu0 0.0
        %1677 = vmatpush2.msra.mxu0 0.0
        %1678 = vmatprep.subr.mxu0 0.0
        %1679 = vmatpush2.msra.mxu0 0.0
        %1680 = vmatprep.subr.mxu0 0.0
        %1681 = vmatpush2.msra.mxu0 0.0
        %1682 = vmatprep.mubr.f32.mxu0 0.0
        %1683 = vmatmul.mubr.f32.gmra.mxu0 %v1613
        %v1684 = vpop.f32.mrf.mxu0
        %v1685 = vadd.f32 0.0, %v1684
        %v1686 = vpop.f32.mrf.mxu0
        %1687 = vmatprep.mubr.f32.mxu0 0.0
        %1688 = vmatmul.mubr.f32.gmra.mxu0 %v1616
        %v1689 = vpop.f32.mrf.mxu0
        %v1690 = vadd.f32 0.0, %v1689
        %v1691 = vpop.f32.mrf.mxu0
        %1692 = vdwg.mxu0
        %v1694 = vsel %vm936, %v1199, 0
        %v1697 = vsel %vm936, %v1275, 0
        %1699 = vmatprep.subr.mxu0 0.0
        %1700 = vmatpush1.msra.mxu0 0.0
        %1701 = vmatprep.subr.mxu0 0.0
        %1702 = vmatpush1.msra.mxu0 0.0
        %1703 = vmatprep.subr.mxu0 0.0
        %1704 = vmatpush1.msra.mxu0 0.0
        %1705 = vmatprep.subr.mxu0 0.0
        %1706 = vmatpush1.msra.mxu0 0.0
        %1707 = vmatprep.subr.mxu0 0.0
        %1708 = vmatpush1.msra.mxu0 0.0
        %1709 = vmatprep.subr.mxu0 0.0
        %1710 = vmatpush1.msra.mxu0 0.0
        %1711 = vmatprep.subr.mxu0 0.0
        %1712 = vmatpush1.msra.mxu0 0.0
        %1713 = vmatprep.subr.mxu0 0.0
        %1714 = vmatpush1.msra.mxu0 0.0
        %1715 = vmatprep.subr.mxu0 0.0
        %1716 = vmatpush1.msra.mxu0 0.0
        %1717 = vmatprep.subr.mxu0 0.0
        %1718 = vmatpush1.msra.mxu0 0.0
        %1719 = vmatprep.subr.mxu0 0.0
        %1720 = vmatpush1.msra.mxu0 0.0
        %1721 = vmatprep.subr.mxu0 0.0
        %1722 = vmatpush1.msra.mxu0 0.0
        %1723 = vmatprep.subr.mxu0 0.0
        %1724 = vmatpush1.msra.mxu0 0.0
        %1725 = vmatprep.subr.mxu0 0.0
        %1726 = vmatpush1.msra.mxu0 0.0
        %1727 = vmatprep.subr.mxu0 0.0
        %1728 = vmatpush1.msra.mxu0 0.0
        %1729 = vmatprep.subr.mxu0 0.0
        %1730 = vmatpush1.msra.mxu0 %v929
        %1731 = vmatprep.subr.mxu0 0.0
        %1732 = vmatpush2.msra.mxu0 0.0
        %1733 = vmatprep.subr.mxu0 0.0
        %1734 = vmatpush2.msra.mxu0 0.0
        %1735 = vmatprep.subr.mxu0 0.0
        %1736 = vmatpush2.msra.mxu0 0.0
        %1737 = vmatprep.subr.mxu0 0.0
        %1738 = vmatpush2.msra.mxu0 0.0
        %1739 = vmatprep.subr.mxu0 0.0
        %1740 = vmatpush2.msra.mxu0 0.0
        %1741 = vmatprep.subr.mxu0 0.0
        %1742 = vmatpush2.msra.mxu0 0.0
        %1743 = vmatprep.subr.mxu0 0.0
        %1744 = vmatpush2.msra.mxu0 0.0
        %1745 = vmatprep.subr.mxu0 0.0
        %1746 = vmatpush2.msra.mxu0 0.0
        %1747 = vmatprep.subr.mxu0 0.0
        %1748 = vmatpush2.msra.mxu0 0.0
        %1749 = vmatprep.subr.mxu0 0.0
        %1750 = vmatpush2.msra.mxu0 0.0
        %1751 = vmatprep.subr.mxu0 0.0
        %1752 = vmatpush2.msra.mxu0 0.0
        %1753 = vmatprep.subr.mxu0 0.0
        %1754 = vmatpush2.msra.mxu0 0.0
        %1755 = vmatprep.subr.mxu0 0.0
        %1756 = vmatpush2.msra.mxu0 0.0
        %1757 = vmatprep.subr.mxu0 0.0
        %1758 = vmatpush2.msra.mxu0 0.0
        %1759 = vmatprep.subr.mxu0 0.0
        %1760 = vmatpush2.msra.mxu0 0.0
        %1761 = vmatprep.subr.mxu0 0.0
        %1762 = vmatpush2.msra.mxu0 0.0
        %1763 = vmatprep.mubr.f32.mxu0 0.0
        %1764 = vmatmul.mubr.f32.gmra.mxu0 %v1694
        %v1765 = vpop.f32.mrf.mxu0
        %v1766 = vadd.f32 %v1685, %v1765
        %v1767 = vpop.f32.mrf.mxu0
        %1768 = vmatprep.mubr.f32.mxu0 0.0
        %1769 = vmatmul.mubr.f32.gmra.mxu0 %v1697
        %v1770 = vpop.f32.mrf.mxu0
        %v1771 = vadd.f32 %v1690, %v1770
        %v1772 = vpop.f32.mrf.mxu0
        %1773 = vdwg.mxu0
        %1774 = vrot.lane.b32.xlu0 %v921, 112
        %v1775 = vpop.permute.xlu0 %1774
        %1776 = vrot.lane.b32.xlu0 %v921, 80
        %v1777 = vpop.permute.xlu0 %1776
        %v1778 = vsel %vm936, %v1775, 0
        %v1780 = vsel %vm936, %v1777, 0
        %1782 = vmatprep.subr.mxu0 0.0
        %1783 = vmatpush1.xpose.msra.mxu0 0.0
        %1784 = vmatprep.subr.mxu0 0.0
        %1785 = vmatpush1.xpose.msra.mxu0 0.0
        %1786 = vmatprep.subr.mxu0 0.0
        %1787 = vmatpush1.xpose.msra.mxu0 0.0
        %1788 = vmatprep.subr.mxu0 0.0
        %1789 = vmatpush1.xpose.msra.mxu0 0.0
        %1790 = vmatprep.subr.mxu0 0.0
        %1791 = vmatpush1.xpose.msra.mxu0 0.0
        %1792 = vmatprep.subr.mxu0 0.0
        %1793 = vmatpush1.xpose.msra.mxu0 0.0
        %1794 = vmatprep.subr.mxu0 0.0
        %1795 = vmatpush1.xpose.msra.mxu0 0.0
        %1796 = vmatprep.subr.mxu0 0.0
        %1797 = vmatpush1.xpose.msra.mxu0 0.0
        %1798 = vmatprep.subr.mxu0 0.0
        %1799 = vmatpush1.xpose.msra.mxu0 0.0
        %1800 = vmatprep.subr.mxu0 0.0
        %1801 = vmatpush1.xpose.msra.mxu0 0.0
        %1802 = vmatprep.subr.mxu0 0.0
        %1803 = vmatpush1.xpose.msra.mxu0 0.0
        %1804 = vmatprep.subr.mxu0 0.0
        %1805 = vmatpush1.xpose.msra.mxu0 0.0
        %1806 = vmatprep.subr.mxu0 0.0
        %1807 = vmatpush1.xpose.msra.mxu0 0.0
        %1808 = vmatprep.subr.mxu0 0.0
        %1809 = vmatpush1.xpose.msra.mxu0 0.0
        %1810 = vmatprep.subr.mxu0 0.0
        %1811 = vmatpush1.xpose.msra.mxu0 0.0
        %1812 = vmatprep.subr.mxu0 0.0
        %1813 = vmatpush1.xpose.msra.mxu0 %v1780
        %1814 = vmatprep.subr.mxu0 0.0
        %1815 = vmatpush2.xpose.msra.mxu0 0.0
        %1816 = vmatprep.subr.mxu0 0.0
        %1817 = vmatpush2.xpose.msra.mxu0 0.0
        %1818 = vmatprep.subr.mxu0 0.0
        %1819 = vmatpush2.xpose.msra.mxu0 0.0
        %1820 = vmatprep.subr.mxu0 0.0
        %1821 = vmatpush2.xpose.msra.mxu0 0.0
        %1822 = vmatprep.subr.mxu0 0.0
        %1823 = vmatpush2.xpose.msra.mxu0 0.0
        %1824 = vmatprep.subr.mxu0 0.0
        %1825 = vmatpush2.xpose.msra.mxu0 0.0
        %1826 = vmatprep.subr.mxu0 0.0
        %1827 = vmatpush2.xpose.msra.mxu0 0.0
        %1828 = vmatprep.subr.mxu0 0.0
        %1829 = vmatpush2.xpose.msra.mxu0 0.0
        %1830 = vmatprep.subr.mxu0 0.0
        %1831 = vmatpush2.xpose.msra.mxu0 0.0
        %1832 = vmatprep.subr.mxu0 0.0
        %1833 = vmatpush2.xpose.msra.mxu0 0.0
        %1834 = vmatprep.subr.mxu0 0.0
        %1835 = vmatpush2.xpose.msra.mxu0 0.0
        %1836 = vmatprep.subr.mxu0 0.0
        %1837 = vmatpush2.xpose.msra.mxu0 0.0
        %1838 = vmatprep.subr.mxu0 0.0
        %1839 = vmatpush2.xpose.msra.mxu0 0.0
        %1840 = vmatprep.subr.mxu0 0.0
        %1841 = vmatpush2.xpose.msra.mxu0 0.0
        %1842 = vmatprep.subr.mxu0 0.0
        %1843 = vmatpush2.xpose.msra.mxu0 0.0
        %1844 = vmatprep.subr.mxu0 0.0
        %1845 = vmatpush2.xpose.msra.mxu0 0.0
        %1846 = vmatprep.mubr.f32.mxu0 0.0
        %1847 = vmatmul.mubr.f32.gmra.mxu0 %v1778
        %v1848 = vpop.f32.mrf.mxu0
        %v1849 = vadd.f32 0.0, %v1848
        %v1850 = vpop.f32.mrf.mxu0
        %1851 = vdwg.mxu0
        %1852 = vrot.lane.b32.xlu0 %v926, 112
        %v1853 = vpop.permute.xlu0 %1852
        %1854 = vrot.lane.b32.xlu0 %v926, 80
        %v1855 = vpop.permute.xlu0 %1854
        %v1856 = vsel %vm936, %v1853, 0
        %v1858 = vsel %vm936, %v1855, 0
        %1860 = vmatprep.subr.mxu0 0.0
        %1861 = vmatpush1.xpose.msra.mxu0 0.0
        %1862 = vmatprep.subr.mxu0 0.0
        %1863 = vmatpush1.xpose.msra.mxu0 0.0
        %1864 = vmatprep.subr.mxu0 0.0
        %1865 = vmatpush1.xpose.msra.mxu0 0.0
        %1866 = vmatprep.subr.mxu0 0.0
        %1867 = vmatpush1.xpose.msra.mxu0 0.0
        %1868 = vmatprep.subr.mxu0 0.0
        %1869 = vmatpush1.xpose.msra.mxu0 0.0
        %1870 = vmatprep.subr.mxu0 0.0
        %1871 = vmatpush1.xpose.msra.mxu0 0.0
        %1872 = vmatprep.subr.mxu0 0.0
        %1873 = vmatpush1.xpose.msra.mxu0 0.0
        %1874 = vmatprep.subr.mxu0 0.0
        %1875 = vmatpush1.xpose.msra.mxu0 0.0
        %1876 = vmatprep.subr.mxu0 0.0
        %1877 = vmatpush1.xpose.msra.mxu0 0.0
        %1878 = vmatprep.subr.mxu0 0.0
        %1879 = vmatpush1.xpose.msra.mxu0 0.0
        %1880 = vmatprep.subr.mxu0 0.0
        %1881 = vmatpush1.xpose.msra.mxu0 0.0
        %1882 = vmatprep.subr.mxu0 0.0
        %1883 = vmatpush1.xpose.msra.mxu0 0.0
        %1884 = vmatprep.subr.mxu0 0.0
        %1885 = vmatpush1.xpose.msra.mxu0 0.0
        %1886 = vmatprep.subr.mxu0 0.0
        %1887 = vmatpush1.xpose.msra.mxu0 0.0
        %1888 = vmatprep.subr.mxu0 0.0
        %1889 = vmatpush1.xpose.msra.mxu0 0.0
        %1890 = vmatprep.subr.mxu0 0.0
        %1891 = vmatpush1.xpose.msra.mxu0 %v1858
        %1892 = vmatprep.subr.mxu0 0.0
        %1893 = vmatpush2.xpose.msra.mxu0 0.0
        %1894 = vmatprep.subr.mxu0 0.0
        %1895 = vmatpush2.xpose.msra.mxu0 0.0
        %1896 = vmatprep.subr.mxu0 0.0
        %1897 = vmatpush2.xpose.msra.mxu0 0.0
        %1898 = vmatprep.subr.mxu0 0.0
        %1899 = vmatpush2.xpose.msra.mxu0 0.0
        %1900 = vmatprep.subr.mxu0 0.0
        %1901 = vmatpush2.xpose.msra.mxu0 0.0
        %1902 = vmatprep.subr.mxu0 0.0
        %1903 = vmatpush2.xpose.msra.mxu0 0.0
        %1904 = vmatprep.subr.mxu0 0.0
        %1905 = vmatpush2.xpose.msra.mxu0 0.0
        %1906 = vmatprep.subr.mxu0 0.0
        %1907 = vmatpush2.xpose.msra.mxu0 0.0
        %1908 = vmatprep.subr.mxu0 0.0
        %1909 = vmatpush2.xpose.msra.mxu0 0.0
        %1910 = vmatprep.subr.mxu0 0.0
        %1911 = vmatpush2.xpose.msra.mxu0 0.0
        %1912 = vmatprep.subr.mxu0 0.0
        %1913 = vmatpush2.xpose.msra.mxu0 0.0
        %1914 = vmatprep.subr.mxu0 0.0
        %1915 = vmatpush2.xpose.msra.mxu0 0.0
        %1916 = vmatprep.subr.mxu0 0.0
        %1917 = vmatpush2.xpose.msra.mxu0 0.0
        %1918 = vmatprep.subr.mxu0 0.0
        %1919 = vmatpush2.xpose.msra.mxu0 0.0
        %1920 = vmatprep.subr.mxu0 0.0
        %1921 = vmatpush2.xpose.msra.mxu0 0.0
        %1922 = vmatprep.subr.mxu0 0.0
        %1923 = vmatpush2.xpose.msra.mxu0 0.0
        %1924 = vmatprep.mubr.f32.mxu0 0.0
        %1925 = vmatmul.mubr.f32.gmra.mxu0 %v1856
        %v1926 = vpop.f32.mrf.mxu0
        %v1927 = vadd.f32 0.0, %v1926
        %v1928 = vpop.f32.mrf.mxu0
        %1929 = vdwg.mxu0
        %v1930 = vmul.f32 %v1849, 0.35355338
        %v1931 = vmul.f32 %v1927, 0.35355338
        %v1932 = vadd.f32 %v1930, %v1095
        %v1933 = vadd.f32 %v1931, %v1099
        %v1934 = vsel %vm936, %v1932, -inf
        %1935 = vmax.xlane.f32.xlu0 %v1934
        %v1936 = vpop.xlane.xlu0 %1935
        %v1937 = vsel %vm936, %v1933, -inf
        %1938 = vmax.xlane.f32.xlu0 %v1937
        %v1939 = vpop.xlane.xlu0 %1938
        %v1940 = vsub.f32 %v1932, %v1936
        %v1941 = vsub.f32 %v1933, %v1939
        %v1942 = vmul.f32 %v1940, 1.442695
        %v1943 = vpow.pop %v1942
        %v1944 = vmul.f32 %v1941, 1.442695
        %v1945 = vpow.pop %v1944
        %v1946 = vsel %vm936, %v1943, 0.0
        %1947 = vadd.xlane.f32.xlu0 %v1946
        %v1948 = vpop.xlane.xlu0 %1947
        %v1949 = vsel %vm936, %v1945, 0.0
        %1950 = vadd.xlane.f32.xlu0 %v1949
        %v1951 = vpop.xlane.xlu0 %1950
        %v1952 = vrcp.pop %v1948
        %v1953 = vrcp.pop %v1951
        %v1954 = vmul.f32 %v1943, %v1952
        %v1955 = vmul.f32 %v1945, %v1953
        %1956 = vrot.lane.b32.xlu0 %v921, 48
        %v1957 = vpop.permute.xlu0 %1956
        %v1960 = vsel %vm936, %v1954, 0
        %1962 = vmatprep.subr.mxu0 0.0
        %1963 = vmatpush1.msra.mxu0 0.0
        %1964 = vmatprep.subr.mxu0 0.0
        %1965 = vmatpush1.msra.mxu0 0.0
        %1966 = vmatprep.subr.mxu0 0.0
        %1967 = vmatpush1.msra.mxu0 0.0
        %1968 = vmatprep.subr.mxu0 0.0
        %1969 = vmatpush1.msra.mxu0 0.0
        %1970 = vmatprep.subr.mxu0 0.0
        %1971 = vmatpush1.msra.mxu0 0.0
        %1972 = vmatprep.subr.mxu0 0.0
        %1973 = vmatpush1.msra.mxu0 0.0
        %1974 = vmatprep.subr.mxu0 0.0
        %1975 = vmatpush1.msra.mxu0 0.0
        %1976 = vmatprep.subr.mxu0 0.0
        %1977 = vmatpush1.msra.mxu0 0.0
        %1978 = vmatprep.subr.mxu0 0.0
        %1979 = vmatpush1.msra.mxu0 0.0
        %1980 = vmatprep.subr.mxu0 0.0
        %1981 = vmatpush1.msra.mxu0 0.0
        %1982 = vmatprep.subr.mxu0 0.0
        %1983 = vmatpush1.msra.mxu0 0.0
        %1984 = vmatprep.subr.mxu0 0.0
        %1985 = vmatpush1.msra.mxu0 0.0
        %1986 = vmatprep.subr.mxu0 0.0
        %1987 = vmatpush1.msra.mxu0 0.0
        %1988 = vmatprep.subr.mxu0 0.0
        %1989 = vmatpush1.msra.mxu0 0.0
        %1990 = vmatprep.subr.mxu0 0.0
        %1991 = vmatpush1.msra.mxu0 0.0
        %1992 = vmatprep.subr.mxu0 0.0
        %1993 = vmatpush1.msra.mxu0 %v1957
        %1994 = vmatprep.subr.mxu0 0.0
        %1995 = vmatpush2.msra.mxu0 0.0
        %1996 = vmatprep.subr.mxu0 0.0
        %1997 = vmatpush2.msra.mxu0 0.0
        %1998 = vmatprep.subr.mxu0 0.0
        %1999 = vmatpush2.msra.mxu0 0.0
        %2000 = vmatprep.subr.mxu0 0.0
        %2001 = vmatpush2.msra.mxu0 0.0
        %2002 = vmatprep.subr.mxu0 0.0
        %2003 = vmatpush2.msra.mxu0 0.0
        %2004 = vmatprep.subr.mxu0 0.0
        %2005 = vmatpush2.msra.mxu0 0.0
        %2006 = vmatprep.subr.mxu0 0.0
        %2007 = vmatpush2.msra.mxu0 0.0
        %2008 = vmatprep.subr.mxu0 0.0
        %2009 = vmatpush2.msra.mxu0 0.0
        %2010 = vmatprep.subr.mxu0 0.0
        %2011 = vmatpush2.msra.mxu0 0.0
        %2012 = vmatprep.subr.mxu0 0.0
        %2013 = vmatpush2.msra.mxu0 0.0
        %2014 = vmatprep.subr.mxu0 0.0
        %2015 = vmatpush2.msra.mxu0 0.0
        %2016 = vmatprep.subr.mxu0 0.0
        %2017 = vmatpush2.msra.mxu0 0.0
        %2018 = vmatprep.subr.mxu0 0.0
        %2019 = vmatpush2.msra.mxu0 0.0
        %2020 = vmatprep.subr.mxu0 0.0
        %2021 = vmatpush2.msra.mxu0 0.0
        %2022 = vmatprep.subr.mxu0 0.0
        %2023 = vmatpush2.msra.mxu0 0.0
        %2024 = vmatprep.subr.mxu0 0.0
        %2025 = vmatpush2.msra.mxu0 0.0
        %2026 = vmatprep.mubr.f32.mxu0 0.0
        %2027 = vmatmul.mubr.f32.gmra.mxu0 %v1960
        %v2028 = vpop.f32.mrf.mxu0
        %v2029 = vadd.f32 0.0, %v2028
        %v2030 = vpop.f32.mrf.mxu0
        %2031 = vdwg.mxu0
        %2032 = vrot.lane.b32.xlu0 %v926, 48
        %v2033 = vpop.permute.xlu0 %2032
        %v2036 = vsel %vm936, %v1955, 0
        %2038 = vmatprep.subr.mxu0 0.0
        %2039 = vmatpush1.msra.mxu0 0.0
        %2040 = vmatprep.subr.mxu0 0.0
        %2041 = vmatpush1.msra.mxu0 0.0
        %2042 = vmatprep.subr.mxu0 0.0
        %2043 = vmatpush1.msra.mxu0 0.0
        %2044 = vmatprep.subr.mxu0 0.0
        %2045 = vmatpush1.msra.mxu0 0.0
        %2046 = vmatprep.subr.mxu0 0.0
        %2047 = vmatpush1.msra.mxu0 0.0
        %2048 = vmatprep.subr.mxu0 0.0
        %2049 = vmatpush1.msra.mxu0 0.0
        %2050 = vmatprep.subr.mxu0 0.0
        %2051 = vmatpush1.msra.mxu0 0.0
        %2052 = vmatprep.subr.mxu0 0.0
        %2053 = vmatpush1.msra.mxu0 0.0
        %2054 = vmatprep.subr.mxu0 0.0
        %2055 = vmatpush1.msra.mxu0 0.0
        %2056 = vmatprep.subr.mxu0 0.0
        %2057 = vmatpush1.msra.mxu0 0.0
        %2058 = vmatprep.subr.mxu0 0.0
        %2059 = vmatpush1.msra.mxu0 0.0
        %2060 = vmatprep.subr.mxu0 0.0
        %2061 = vmatpush1.msra.mxu0 0.0
        %2062 = vmatprep.subr.mxu0 0.0
        %2063 = vmatpush1.msra.mxu0 0.0
        %2064 = vmatprep.subr.mxu0 0.0
        %2065 = vmatpush1.msra.mxu0 0.0
        %2066 = vmatprep.subr.mxu0 0.0
        %2067 = vmatpush1.msra.mxu0 0.0
        %2068 = vmatprep.subr.mxu0 0.0
        %2069 = vmatpush1.msra.mxu0 %v2033
        %2070 = vmatprep.subr.mxu0 0.0
        %2071 = vmatpush2.msra.mxu0 0.0
        %2072 = vmatprep.subr.mxu0 0.0
        %2073 = vmatpush2.msra.mxu0 0.0
        %2074 = vmatprep.subr.mxu0 0.0
        %2075 = vmatpush2.msra.mxu0 0.0
        %2076 = vmatprep.subr.mxu0 0.0
        %2077 = vmatpush2.msra.mxu0 0.0
        %2078 = vmatprep.subr.mxu0 0.0
        %2079 = vmatpush2.msra.mxu0 0.0
        %2080 = vmatprep.subr.mxu0 0.0
        %2081 = vmatpush2.msra.mxu0 0.0
        %2082 = vmatprep.subr.mxu0 0.0
        %2083 = vmatpush2.msra.mxu0 0.0
        %2084 = vmatprep.subr.mxu0 0.0
        %2085 = vmatpush2.msra.mxu0 0.0
        %2086 = vmatprep.subr.mxu0 0.0
        %2087 = vmatpush2.msra.mxu0 0.0
        %2088 = vmatprep.subr.mxu0 0.0
        %2089 = vmatpush2.msra.mxu0 0.0
        %2090 = vmatprep.subr.mxu0 0.0
        %2091 = vmatpush2.msra.mxu0 0.0
        %2092 = vmatprep.subr.mxu0 0.0
        %2093 = vmatpush2.msra.mxu0 0.0
        %2094 = vmatprep.subr.mxu0 0.0
        %2095 = vmatpush2.msra.mxu0 0.0
        %2096 = vmatprep.subr.mxu0 0.0
        %2097 = vmatpush2.msra.mxu0 0.0
        %2098 = vmatprep.subr.mxu0 0.0
        %2099 = vmatpush2.msra.mxu0 0.0
        %2100 = vmatprep.subr.mxu0 0.0
        %2101 = vmatpush2.msra.mxu0 0.0
        %2102 = vmatprep.mubr.f32.mxu0 0.0
        %2103 = vmatmul.mubr.f32.gmra.mxu0 %v2036
        %v2104 = vpop.f32.mrf.mxu0
        %v2105 = vadd.f32 0.0, %v2104
        %v2106 = vpop.f32.mrf.mxu0
        %2107 = vdwg.mxu0
        %v2109 = vsel %vm936, %v2029, 0
        %v2112 = vsel %vm936, %v2105, 0
        %2114 = vmatprep.subr.mxu0 0.0
        %2115 = vmatpush1.msra.mxu0 0.0
        %2116 = vmatprep.subr.mxu0 0.0
        %2117 = vmatpush1.msra.mxu0 0.0
        %2118 = vmatprep.subr.mxu0 0.0
        %2119 = vmatpush1.msra.mxu0 0.0
        %2120 = vmatprep.subr.mxu0 0.0
        %2121 = vmatpush1.msra.mxu0 0.0
        %2122 = vmatprep.subr.mxu0 0.0
        %2123 = vmatpush1.msra.mxu0 0.0
        %2124 = vmatprep.subr.mxu0 0.0
        %2125 = vmatpush1.msra.mxu0 0.0
        %2126 = vmatprep.subr.mxu0 0.0
        %2127 = vmatpush1.msra.mxu0 0.0
        %2128 = vmatprep.subr.mxu0 0.0
        %2129 = vmatpush1.msra.mxu0 0.0
        %2130 = vmatprep.subr.mxu0 0.0
        %2131 = vmatpush1.msra.mxu0 0.0
        %2132 = vmatprep.subr.mxu0 0.0
        %2133 = vmatpush1.msra.mxu0 0.0
        %2134 = vmatprep.subr.mxu0 0.0
        %2135 = vmatpush1.msra.mxu0 0.0
        %2136 = vmatprep.subr.mxu0 0.0
        %2137 = vmatpush1.msra.mxu0 0.0
        %2138 = vmatprep.subr.mxu0 0.0
        %2139 = vmatpush1.msra.mxu0 0.0
        %2140 = vmatprep.subr.mxu0 0.0
        %2141 = vmatpush1.msra.mxu0 0.0
        %2142 = vmatprep.subr.mxu0 0.0
        %2143 = vmatpush1.msra.mxu0 0.0
        %2144 = vmatprep.subr.mxu0 0.0
        %2145 = vmatpush1.msra.mxu0 %v931
        %2146 = vmatprep.subr.mxu0 0.0
        %2147 = vmatpush2.msra.mxu0 0.0
        %2148 = vmatprep.subr.mxu0 0.0
        %2149 = vmatpush2.msra.mxu0 0.0
        %2150 = vmatprep.subr.mxu0 0.0
        %2151 = vmatpush2.msra.mxu0 0.0
        %2152 = vmatprep.subr.mxu0 0.0
        %2153 = vmatpush2.msra.mxu0 0.0
        %2154 = vmatprep.subr.mxu0 0.0
        %2155 = vmatpush2.msra.mxu0 0.0
        %2156 = vmatprep.subr.mxu0 0.0
        %2157 = vmatpush2.msra.mxu0 0.0
        %2158 = vmatprep.subr.mxu0 0.0
        %2159 = vmatpush2.msra.mxu0 0.0
        %2160 = vmatprep.subr.mxu0 0.0
        %2161 = vmatpush2.msra.mxu0 0.0
        %2162 = vmatprep.subr.mxu0 0.0
        %2163 = vmatpush2.msra.mxu0 0.0
        %2164 = vmatprep.subr.mxu0 0.0
        %2165 = vmatpush2.msra.mxu0 0.0
        %2166 = vmatprep.subr.mxu0 0.0
        %2167 = vmatpush2.msra.mxu0 0.0
        %2168 = vmatprep.subr.mxu0 0.0
        %2169 = vmatpush2.msra.mxu0 0.0
        %2170 = vmatprep.subr.mxu0 0.0
        %2171 = vmatpush2.msra.mxu0 0.0
        %2172 = vmatprep.subr.mxu0 0.0
        %2173 = vmatpush2.msra.mxu0 0.0
        %2174 = vmatprep.subr.mxu0 0.0
        %2175 = vmatpush2.msra.mxu0 0.0
        %2176 = vmatprep.subr.mxu0 0.0
        %2177 = vmatpush2.msra.mxu0 0.0
        %2178 = vmatprep.mubr.f32.mxu0 0.0
        %2179 = vmatmul.mubr.f32.gmra.mxu0 %v2109
        %v2180 = vpop.f32.mrf.mxu0
        %v2181 = vadd.f32 0.0, %v2180
        %v2182 = vpop.f32.mrf.mxu0
        %2183 = vmatprep.mubr.f32.mxu0 0.0
        %2184 = vmatmul.mubr.f32.gmra.mxu0 %v2112
        %v2185 = vpop.f32.mrf.mxu0
        %v2186 = vadd.f32 0.0, %v2185
        %v2187 = vpop.f32.mrf.mxu0
        %2188 = vdwg.mxu0
        %v2189 = vadd.f32 %v1766, %v2181
        %v2190 = vadd.f32 %v1771, %v2186
        %2191 = vrot.lane.b32.xlu0 %v921, 104
        %v2192 = vpop.permute.xlu0 %2191
        %2193 = vrot.lane.b32.xlu0 %v921, 72
        %v2194 = vpop.permute.xlu0 %2193
        %v2195 = vsel %vm936, %v2192, 0
        %v2197 = vsel %vm936, %v2194, 0
        %2199 = vmatprep.subr.mxu0 0.0
        %2200 = vmatpush1.xpose.msra.mxu0 0.0
        %2201 = vmatprep.subr.mxu0 0.0
        %2202 = vmatpush1.xpose.msra.mxu0 0.0
        %2203 = vmatprep.subr.mxu0 0.0
        %2204 = vmatpush1.xpose.msra.mxu0 0.0
        %2205 = vmatprep.subr.mxu0 0.0
        %2206 = vmatpush1.xpose.msra.mxu0 0.0
        %2207 = vmatprep.subr.mxu0 0.0
        %2208 = vmatpush1.xpose.msra.mxu0 0.0
        %2209 = vmatprep.subr.mxu0 0.0
        %2210 = vmatpush1.xpose.msra.mxu0 0.0
        %2211 = vmatprep.subr.mxu0 0.0
        %2212 = vmatpush1.xpose.msra.mxu0 0.0
        %2213 = vmatprep.subr.mxu0 0.0
        %2214 = vmatpush1.xpose.msra.mxu0 0.0
        %2215 = vmatprep.subr.mxu0 0.0
        %2216 = vmatpush1.xpose.msra.mxu0 0.0
        %2217 = vmatprep.subr.mxu0 0.0
        %2218 = vmatpush1.xpose.msra.mxu0 0.0
        %2219 = vmatprep.subr.mxu0 0.0
        %2220 = vmatpush1.xpose.msra.mxu0 0.0
        %2221 = vmatprep.subr.mxu0 0.0
        %2222 = vmatpush1.xpose.msra.mxu0 0.0
        %2223 = vmatprep.subr.mxu0 0.0
        %2224 = vmatpush1.xpose.msra.mxu0 0.0
        %2225 = vmatprep.subr.mxu0 0.0
        %2226 = vmatpush1.xpose.msra.mxu0 0.0
        %2227 = vmatprep.subr.mxu0 0.0
        %2228 = vmatpush1.xpose.msra.mxu0 0.0
        %2229 = vmatprep.subr.mxu0 0.0
        %2230 = vmatpush1.xpose.msra.mxu0 %v2197
        %2231 = vmatprep.subr.mxu0 0.0
        %2232 = vmatpush2.xpose.msra.mxu0 0.0
        %2233 = vmatprep.subr.mxu0 0.0
        %2234 = vmatpush2.xpose.msra.mxu0 0.0
        %2235 = vmatprep.subr.mxu0 0.0
        %2236 = vmatpush2.xpose.msra.mxu0 0.0
        %2237 = vmatprep.subr.mxu0 0.0
        %2238 = vmatpush2.xpose.msra.mxu0 0.0
        %2239 = vmatprep.subr.mxu0 0.0
        %2240 = vmatpush2.xpose.msra.mxu0 0.0
        %2241 = vmatprep.subr.mxu0 0.0
        %2242 = vmatpush2.xpose.msra.mxu0 0.0
        %2243 = vmatprep.subr.mxu0 0.0
        %2244 = vmatpush2.xpose.msra.mxu0 0.0
        %2245 = vmatprep.subr.mxu0 0.0
        %2246 = vmatpush2.xpose.msra.mxu0 0.0
        %2247 = vmatprep.subr.mxu0 0.0
        %2248 = vmatpush2.xpose.msra.mxu0 0.0
        %2249 = vmatprep.subr.mxu0 0.0
        %2250 = vmatpush2.xpose.msra.mxu0 0.0
        %2251 = vmatprep.subr.mxu0 0.0
        %2252 = vmatpush2.xpose.msra.mxu0 0.0
        %2253 = vmatprep.subr.mxu0 0.0
        %2254 = vmatpush2.xpose.msra.mxu0 0.0
        %2255 = vmatprep.subr.mxu0 0.0
        %2256 = vmatpush2.xpose.msra.mxu0 0.0
        %2257 = vmatprep.subr.mxu0 0.0
        %2258 = vmatpush2.xpose.msra.mxu0 0.0
        %2259 = vmatprep.subr.mxu0 0.0
        %2260 = vmatpush2.xpose.msra.mxu0 0.0
        %2261 = vmatprep.subr.mxu0 0.0
        %2262 = vmatpush2.xpose.msra.mxu0 0.0
        %2263 = vmatprep.mubr.f32.mxu0 0.0
        %2264 = vmatmul.mubr.f32.gmra.mxu0 %v2195
        %v2265 = vpop.f32.mrf.mxu0
        %v2266 = vadd.f32 0.0, %v2265
        %v2267 = vpop.f32.mrf.mxu0
        %2268 = vdwg.mxu0
        %2269 = vrot.lane.b32.xlu0 %v926, 104
        %v2270 = vpop.permute.xlu0 %2269
        %2271 = vrot.lane.b32.xlu0 %v926, 72
        %v2272 = vpop.permute.xlu0 %2271
        %v2273 = vsel %vm936, %v2270, 0
        %v2275 = vsel %vm936, %v2272, 0
        %2277 = vmatprep.subr.mxu0 0.0
        %2278 = vmatpush1.xpose.msra.mxu0 0.0
        %2279 = vmatprep.subr.mxu0 0.0
        %2280 = vmatpush1.xpose.msra.mxu0 0.0
        %2281 = vmatprep.subr.mxu0 0.0
        %2282 = vmatpush1.xpose.msra.mxu0 0.0
        %2283 = vmatprep.subr.mxu0 0.0
        %2284 = vmatpush1.xpose.msra.mxu0 0.0
        %2285 = vmatprep.subr.mxu0 0.0
        %2286 = vmatpush1.xpose.msra.mxu0 0.0
        %2287 = vmatprep.subr.mxu0 0.0
        %2288 = vmatpush1.xpose.msra.mxu0 0.0
        %2289 = vmatprep.subr.mxu0 0.0
        %2290 = vmatpush1.xpose.msra.mxu0 0.0
        %2291 = vmatprep.subr.mxu0 0.0
        %2292 = vmatpush1.xpose.msra.mxu0 0.0
        %2293 = vmatprep.subr.mxu0 0.0
        %2294 = vmatpush1.xpose.msra.mxu0 0.0
        %2295 = vmatprep.subr.mxu0 0.0
        %2296 = vmatpush1.xpose.msra.mxu0 0.0
        %2297 = vmatprep.subr.mxu0 0.0
        %2298 = vmatpush1.xpose.msra.mxu0 0.0
        %2299 = vmatprep.subr.mxu0 0.0
        %2300 = vmatpush1.xpose.msra.mxu0 0.0
        %2301 = vmatprep.subr.mxu0 0.0
        %2302 = vmatpush1.xpose.msra.mxu0 0.0
        %2303 = vmatprep.subr.mxu0 0.0
        %2304 = vmatpush1.xpose.msra.mxu0 0.0
        %2305 = vmatprep.subr.mxu0 0.0
        %2306 = vmatpush1.xpose.msra.mxu0 0.0
        %2307 = vmatprep.subr.mxu0 0.0
        %2308 = vmatpush1.xpose.msra.mxu0 %v2275
        %2309 = vmatprep.subr.mxu0 0.0
        %2310 = vmatpush2.xpose.msra.mxu0 0.0
        %2311 = vmatprep.subr.mxu0 0.0
        %2312 = vmatpush2.xpose.msra.mxu0 0.0
        %2313 = vmatprep.subr.mxu0 0.0
        %2314 = vmatpush2.xpose.msra.mxu0 0.0
        %2315 = vmatprep.subr.mxu0 0.0
        %2316 = vmatpush2.xpose.msra.mxu0 0.0
        %2317 = vmatprep.subr.mxu0 0.0
        %2318 = vmatpush2.xpose.msra.mxu0 0.0
        %2319 = vmatprep.subr.mxu0 0.0
        %2320 = vmatpush2.xpose.msra.mxu0 0.0
        %2321 = vmatprep.subr.mxu0 0.0
        %2322 = vmatpush2.xpose.msra.mxu0 0.0
        %2323 = vmatprep.subr.mxu0 0.0
        %2324 = vmatpush2.xpose.msra.mxu0 0.0
        %2325 = vmatprep.subr.mxu0 0.0
        %2326 = vmatpush2.xpose.msra.mxu0 0.0
        %2327 = vmatprep.subr.mxu0 0.0
        %2328 = vmatpush2.xpose.msra.mxu0 0.0
        %2329 = vmatprep.subr.mxu0 0.0
        %2330 = vmatpush2.xpose.msra.mxu0 0.0
        %2331 = vmatprep.subr.mxu0 0.0
        %2332 = vmatpush2.xpose.msra.mxu0 0.0
        %2333 = vmatprep.subr.mxu0 0.0
        %2334 = vmatpush2.xpose.msra.mxu0 0.0
        %2335 = vmatprep.subr.mxu0 0.0
        %2336 = vmatpush2.xpose.msra.mxu0 0.0
        %2337 = vmatprep.subr.mxu0 0.0
        %2338 = vmatpush2.xpose.msra.mxu0 0.0
        %2339 = vmatprep.subr.mxu0 0.0
        %2340 = vmatpush2.xpose.msra.mxu0 0.0
        %2341 = vmatprep.mubr.f32.mxu0 0.0
        %2342 = vmatmul.mubr.f32.gmra.mxu0 %v2273
        %v2343 = vpop.f32.mrf.mxu0
        %v2344 = vadd.f32 0.0, %v2343
        %v2345 = vpop.f32.mrf.mxu0
        %2346 = vdwg.mxu0
        %v2347 = vmul.f32 %v2266, 0.35355338
        %v2348 = vmul.f32 %v2344, 0.35355338
        %v2349 = vadd.f32 %v2347, %v1095
        %v2350 = vadd.f32 %v2348, %v1099
        %v2351 = vsel %vm936, %v2349, -inf
        %2352 = vmax.xlane.f32.xlu0 %v2351
        %v2353 = vpop.xlane.xlu0 %2352
        %v2354 = vsel %vm936, %v2350, -inf
        %2355 = vmax.xlane.f32.xlu0 %v2354
        %v2356 = vpop.xlane.xlu0 %2355
        %v2357 = vsub.f32 %v2349, %v2353
        %v2358 = vsub.f32 %v2350, %v2356
        %v2359 = vmul.f32 %v2357, 1.442695
        %v2360 = vpow.pop %v2359
        %v2361 = vmul.f32 %v2358, 1.442695
        %v2362 = vpow.pop %v2361
        %v2363 = vsel %vm936, %v2360, 0.0
        %2364 = vadd.xlane.f32.xlu0 %v2363
        %v2365 = vpop.xlane.xlu0 %2364
        %v2366 = vsel %vm936, %v2362, 0.0
        %2367 = vadd.xlane.f32.xlu0 %v2366
        %v2368 = vpop.xlane.xlu0 %2367
        %v2369 = vrcp.pop %v2365
        %v2370 = vrcp.pop %v2368
        %v2371 = vmul.f32 %v2360, %v2369
        %v2372 = vmul.f32 %v2362, %v2370
        %2373 = vrot.lane.b32.xlu0 %v921, 40
        %v2374 = vpop.permute.xlu0 %2373
        %v2377 = vsel %vm936, %v2371, 0
        %2379 = vmatprep.subr.mxu0 0.0
        %2380 = vmatpush1.msra.mxu0 0.0
        %2381 = vmatprep.subr.mxu0 0.0
        %2382 = vmatpush1.msra.mxu0 0.0
        %2383 = vmatprep.subr.mxu0 0.0
        %2384 = vmatpush1.msra.mxu0 0.0
        %2385 = vmatprep.subr.mxu0 0.0
        %2386 = vmatpush1.msra.mxu0 0.0
        %2387 = vmatprep.subr.mxu0 0.0
        %2388 = vmatpush1.msra.mxu0 0.0
        %2389 = vmatprep.subr.mxu0 0.0
        %2390 = vmatpush1.msra.mxu0 0.0
        %2391 = vmatprep.subr.mxu0 0.0
        %2392 = vmatpush1.msra.mxu0 0.0
        %2393 = vmatprep.subr.mxu0 0.0
        %2394 = vmatpush1.msra.mxu0 0.0
        %2395 = vmatprep.subr.mxu0 0.0
        %2396 = vmatpush1.msra.mxu0 0.0
        %2397 = vmatprep.subr.mxu0 0.0
        %2398 = vmatpush1.msra.mxu0 0.0
        %2399 = vmatprep.subr.mxu0 0.0
        %2400 = vmatpush1.msra.mxu0 0.0
        %2401 = vmatprep.subr.mxu0 0.0
        %2402 = vmatpush1.msra.mxu0 0.0
        %2403 = vmatprep.subr.mxu0 0.0
        %2404 = vmatpush1.msra.mxu0 0.0
        %2405 = vmatprep.subr.mxu0 0.0
        %2406 = vmatpush1.msra.mxu0 0.0
        %2407 = vmatprep.subr.mxu0 0.0
        %2408 = vmatpush1.msra.mxu0 0.0
        %2409 = vmatprep.subr.mxu0 0.0
        %2410 = vmatpush1.msra.mxu0 %v2374
        %2411 = vmatprep.subr.mxu0 0.0
        %2412 = vmatpush2.msra.mxu0 0.0
        %2413 = vmatprep.subr.mxu0 0.0
        %2414 = vmatpush2.msra.mxu0 0.0
        %2415 = vmatprep.subr.mxu0 0.0
        %2416 = vmatpush2.msra.mxu0 0.0
        %2417 = vmatprep.subr.mxu0 0.0
        %2418 = vmatpush2.msra.mxu0 0.0
        %2419 = vmatprep.subr.mxu0 0.0
        %2420 = vmatpush2.msra.mxu0 0.0
        %2421 = vmatprep.subr.mxu0 0.0
        %2422 = vmatpush2.msra.mxu0 0.0
        %2423 = vmatprep.subr.mxu0 0.0
        %2424 = vmatpush2.msra.mxu0 0.0
        %2425 = vmatprep.subr.mxu0 0.0
        %2426 = vmatpush2.msra.mxu0 0.0
        %2427 = vmatprep.subr.mxu0 0.0
        %2428 = vmatpush2.msra.mxu0 0.0
        %2429 = vmatprep.subr.mxu0 0.0
        %2430 = vmatpush2.msra.mxu0 0.0
        %2431 = vmatprep.subr.mxu0 0.0
        %2432 = vmatpush2.msra.mxu0 0.0
        %2433 = vmatprep.subr.mxu0 0.0
        %2434 = vmatpush2.msra.mxu0 0.0
        %2435 = vmatprep.subr.mxu0 0.0
        %2436 = vmatpush2.msra.mxu0 0.0
        %2437 = vmatprep.subr.mxu0 0.0
        %2438 = vmatpush2.msra.mxu0 0.0
        %2439 = vmatprep.subr.mxu0 0.0
        %2440 = vmatpush2.msra.mxu0 0.0
        %2441 = vmatprep.subr.mxu0 0.0
        %2442 = vmatpush2.msra.mxu0 0.0
        %2443 = vmatprep.mubr.f32.mxu0 0.0
        %2444 = vmatmul.mubr.f32.gmra.mxu0 %v2377
        %v2445 = vpop.f32.mrf.mxu0
        %v2446 = vadd.f32 0.0, %v2445
        %v2447 = vpop.f32.mrf.mxu0
        %2448 = vdwg.mxu0
        %2449 = vrot.lane.b32.xlu0 %v926, 40
        %v2450 = vpop.permute.xlu0 %2449
        %v2453 = vsel %vm936, %v2372, 0
        %2455 = vmatprep.subr.mxu0 0.0
        %2456 = vmatpush1.msra.mxu0 0.0
        %2457 = vmatprep.subr.mxu0 0.0
        %2458 = vmatpush1.msra.mxu0 0.0
        %2459 = vmatprep.subr.mxu0 0.0
        %2460 = vmatpush1.msra.mxu0 0.0
        %2461 = vmatprep.subr.mxu0 0.0
        %2462 = vmatpush1.msra.mxu0 0.0
        %2463 = vmatprep.subr.mxu0 0.0
        %2464 = vmatpush1.msra.mxu0 0.0
        %2465 = vmatprep.subr.mxu0 0.0
        %2466 = vmatpush1.msra.mxu0 0.0
        %2467 = vmatprep.subr.mxu0 0.0
        %2468 = vmatpush1.msra.mxu0 0.0
        %2469 = vmatprep.subr.mxu0 0.0
        %2470 = vmatpush1.msra.mxu0 0.0
        %2471 = vmatprep.subr.mxu0 0.0
        %2472 = vmatpush1.msra.mxu0 0.0
        %2473 = vmatprep.subr.mxu0 0.0
        %2474 = vmatpush1.msra.mxu0 0.0
        %2475 = vmatprep.subr.mxu0 0.0
        %2476 = vmatpush1.msra.mxu0 0.0
        %2477 = vmatprep.subr.mxu0 0.0
        %2478 = vmatpush1.msra.mxu0 0.0
        %2479 = vmatprep.subr.mxu0 0.0
        %2480 = vmatpush1.msra.mxu0 0.0
        %2481 = vmatprep.subr.mxu0 0.0
        %2482 = vmatpush1.msra.mxu0 0.0
        %2483 = vmatprep.subr.mxu0 0.0
        %2484 = vmatpush1.msra.mxu0 0.0
        %2485 = vmatprep.subr.mxu0 0.0
        %2486 = vmatpush1.msra.mxu0 %v2450
        %2487 = vmatprep.subr.mxu0 0.0
        %2488 = vmatpush2.msra.mxu0 0.0
        %2489 = vmatprep.subr.mxu0 0.0
        %2490 = vmatpush2.msra.mxu0 0.0
        %2491 = vmatprep.subr.mxu0 0.0
        %2492 = vmatpush2.msra.mxu0 0.0
        %2493 = vmatprep.subr.mxu0 0.0
        %2494 = vmatpush2.msra.mxu0 0.0
        %2495 = vmatprep.subr.mxu0 0.0
        %2496 = vmatpush2.msra.mxu0 0.0
        %2497 = vmatprep.subr.mxu0 0.0
        %2498 = vmatpush2.msra.mxu0 0.0
        %2499 = vmatprep.subr.mxu0 0.0
        %2500 = vmatpush2.msra.mxu0 0.0
        %2501 = vmatprep.subr.mxu0 0.0
        %2502 = vmatpush2.msra.mxu0 0.0
        %2503 = vmatprep.subr.mxu0 0.0
        %2504 = vmatpush2.msra.mxu0 0.0
        %2505 = vmatprep.subr.mxu0 0.0
        %2506 = vmatpush2.msra.mxu0 0.0
        %2507 = vmatprep.subr.mxu0 0.0
        %2508 = vmatpush2.msra.mxu0 0.0
        %2509 = vmatprep.subr.mxu0 0.0
        %2510 = vmatpush2.msra.mxu0 0.0
        %2511 = vmatprep.subr.mxu0 0.0
        %2512 = vmatpush2.msra.mxu0 0.0
        %2513 = vmatprep.subr.mxu0 0.0
        %2514 = vmatpush2.msra.mxu0 0.0
        %2515 = vmatprep.subr.mxu0 0.0
        %2516 = vmatpush2.msra.mxu0 0.0
        %2517 = vmatprep.subr.mxu0 0.0
        %2518 = vmatpush2.msra.mxu0 0.0
        %2519 = vmatprep.mubr.f32.mxu0 0.0
        %2520 = vmatmul.mubr.f32.gmra.mxu0 %v2453
        %v2521 = vpop.f32.mrf.mxu0
        %v2522 = vadd.f32 0.0, %v2521
        %v2523 = vpop.f32.mrf.mxu0
        %2524 = vdwg.mxu0
        %v2526 = vsel %vm936, %v2446, 0
        %v2529 = vsel %vm936, %v2522, 0
        %2531 = vmatprep.subr.mxu0 0.0
        %2532 = vmatpush1.msra.mxu0 0.0
        %2533 = vmatprep.subr.mxu0 0.0
        %2534 = vmatpush1.msra.mxu0 0.0
        %2535 = vmatprep.subr.mxu0 0.0
        %2536 = vmatpush1.msra.mxu0 0.0
        %2537 = vmatprep.subr.mxu0 0.0
        %2538 = vmatpush1.msra.mxu0 0.0
        %2539 = vmatprep.subr.mxu0 0.0
        %2540 = vmatpush1.msra.mxu0 0.0
        %2541 = vmatprep.subr.mxu0 0.0
        %2542 = vmatpush1.msra.mxu0 0.0
        %2543 = vmatprep.subr.mxu0 0.0
        %2544 = vmatpush1.msra.mxu0 0.0
        %2545 = vmatprep.subr.mxu0 0.0
        %2546 = vmatpush1.msra.mxu0 0.0
        %2547 = vmatprep.subr.mxu0 0.0
        %2548 = vmatpush1.msra.mxu0 0.0
        %2549 = vmatprep.subr.mxu0 0.0
        %2550 = vmatpush1.msra.mxu0 0.0
        %2551 = vmatprep.subr.mxu0 0.0
        %2552 = vmatpush1.msra.mxu0 0.0
        %2553 = vmatprep.subr.mxu0 0.0
        %2554 = vmatpush1.msra.mxu0 0.0
        %2555 = vmatprep.subr.mxu0 0.0
        %2556 = vmatpush1.msra.mxu0 0.0
        %2557 = vmatprep.subr.mxu0 0.0
        %2558 = vmatpush1.msra.mxu0 0.0
        %2559 = vmatprep.subr.mxu0 0.0
        %2560 = vmatpush1.msra.mxu0 0.0
        %2561 = vmatprep.subr.mxu0 0.0
        %2562 = vmatpush1.msra.mxu0 %v932
        %2563 = vmatprep.subr.mxu0 0.0
        %2564 = vmatpush2.msra.mxu0 0.0
        %2565 = vmatprep.subr.mxu0 0.0
        %2566 = vmatpush2.msra.mxu0 0.0
        %2567 = vmatprep.subr.mxu0 0.0
        %2568 = vmatpush2.msra.mxu0 0.0
        %2569 = vmatprep.subr.mxu0 0.0
        %2570 = vmatpush2.msra.mxu0 0.0
        %2571 = vmatprep.subr.mxu0 0.0
        %2572 = vmatpush2.msra.mxu0 0.0
        %2573 = vmatprep.subr.mxu0 0.0
        %2574 = vmatpush2.msra.mxu0 0.0
        %2575 = vmatprep.subr.mxu0 0.0
        %2576 = vmatpush2.msra.mxu0 0.0
        %2577 = vmatprep.subr.mxu0 0.0
        %2578 = vmatpush2.msra.mxu0 0.0
        %2579 = vmatprep.subr.mxu0 0.0
        %2580 = vmatpush2.msra.mxu0 0.0
        %2581 = vmatprep.subr.mxu0 0.0
        %2582 = vmatpush2.msra.mxu0 0.0
        %2583 = vmatprep.subr.mxu0 0.0
        %2584 = vmatpush2.msra.mxu0 0.0
        %2585 = vmatprep.subr.mxu0 0.0
        %2586 = vmatpush2.msra.mxu0 0.0
        %2587 = vmatprep.subr.mxu0 0.0
        %2588 = vmatpush2.msra.mxu0 0.0
        %2589 = vmatprep.subr.mxu0 0.0
        %2590 = vmatpush2.msra.mxu0 0.0
        %2591 = vmatprep.subr.mxu0 0.0
        %2592 = vmatpush2.msra.mxu0 0.0
        %2593 = vmatprep.subr.mxu0 0.0
        %2594 = vmatpush2.msra.mxu0 0.0
        %2595 = vmatprep.mubr.f32.mxu0 0.0
        %2596 = vmatmul.mubr.f32.gmra.mxu0 %v2526
        %v2597 = vpop.f32.mrf.mxu0
        %v2598 = vadd.f32 0.0, %v2597
        %v2599 = vpop.f32.mrf.mxu0
        %2600 = vmatprep.mubr.f32.mxu0 0.0
        %2601 = vmatmul.mubr.f32.gmra.mxu0 %v2529
        %v2602 = vpop.f32.mrf.mxu0
        %v2603 = vadd.f32 0.0, %v2602
        %v2604 = vpop.f32.mrf.mxu0
        %2605 = vdwg.mxu0
        %v2606 = vadd.f32 %v2189, %v2598
        %v2607 = vadd.f32 %v2190, %v2603
        %v2608 = vld [vmem:[%s745] sm:$0x1]
        %v2610 = vlaneseq
        %v2611 = vshrl.u32 %v2610, 7
        %v2612 = vsub.s32 0, %v2611
        %v2613 = vrot.slane %v2608, %v2612
        %v2615 = vadd.f32 %v2606, %v2613
        %v2616 = vadd.f32 %v2607, %v2613
        %v2617 = vadd.f32 %v832, %v2615
        %v2618 = vadd.f32 %v833, %v2616
        %v2619 = vld [vmem:[%s748] sm:$0x1]
        %v2620 = vld [vmem:[%s751] sm:$0x1]
        %v2621 = vsel %vm847, %v2617, 0.0
        %2622 = vadd.xlane.f32.xlu0 %v2621
        %v2623 = vpop.xlane.xlu0 %2622
        %v2624 = vsel %vm847, %v2618, 0.0
        %2625 = vadd.xlane.f32.xlu0 %v2624
        %v2626 = vpop.xlane.xlu0 %2625
        %v2627 = vrcp.pop 32.0
        %v2628 = vmul.f32 %v2623, %v2627
        %v2629 = vmul.f32 %v2626, %v2627
        %v2630 = vsub.f32 %v2617, %v2628
        %v2631 = vsub.f32 %v2618, %v2629
        %v2632 = vmul.f32 %v2630, %v2630
        %v2633 = vmul.f32 %v2631, %v2631
        %v2634 = vsel %vm847, %v2632, 0.0
        %2635 = vadd.xlane.f32.xlu0 %v2634
        %v2636 = vpop.xlane.xlu0 %2635
        %v2637 = vsel %vm847, %v2633, 0.0
        %2638 = vadd.xlane.f32.xlu0 %v2637
        %v2639 = vpop.xlane.xlu0 %2638
        %v2640 = vmul.f32 %v2636, %v2627
        %v2641 = vmul.f32 %v2639, %v2627
        %v2642 = vadd.f32 %v2640, 1e-05
        %v2643 = vadd.f32 %v2641, 1e-05
        %v2644 = vrsqrt.pop %v2642
        %v2645 = vrsqrt.pop %v2643
        %v2646 = vmul.f32 %v2630, %v2644
        %v2647 = vmul.f32 %v2631, %v2645
        %v2649 = vlaneseq
        %v2650 = vshrl.u32 %v2649, 7
        %v2651 = vsub.s32 0, %v2650
        %v2652 = vrot.slane %v2619, %v2651
        %v2654 = vmul.f32 %v2646, %v2652
        %v2655 = vmul.f32 %v2647, %v2652
        %v2657 = vlaneseq
        %v2658 = vshrl.u32 %v2657, 7
        %v2659 = vsub.s32 0, %v2658
        %v2660 = vrot.slane %v2620, %v2659
        %v2662 = vadd.f32 %v2654, %v2660
        %v2663 = vadd.f32 %v2655, %v2660
        %v2664 = vld [vmem:[%s756] sm:$0xff]
        %v2665 = vld [vmem:[%s756 + $0x8] sm:$0xff]
        %v2666 = vld [vmem:[%s756 + $0x10] sm:$0xff]
        %v2667 = vld [vmem:[%s756 + $0x18] sm:$0xff]
        %v2668 = vld [vmem:[%s759] sm:$0x1]
        %v2670 = vlaneseq
        %v2671 = vshrl.u32 %v2670, 7
        %v2672 = vsub.s32 0, %v2671
        %v2673 = vrot.slane %v2668, %v2672
        %v2676 = vsel %vm847, %v2662, 0
        %v2679 = vsel %vm847, %v2663, 0
        %2681 = vmatprep.subr.mxu0 0.0
        %2682 = vmatpush1.msra.mxu0 0.0
        %2683 = vmatprep.subr.mxu0 0.0
        %2684 = vmatpush1.msra.mxu0 0.0
        %2685 = vmatprep.subr.mxu0 0.0
        %2686 = vmatpush1.msra.mxu0 0.0
        %2687 = vmatprep.subr.mxu0 0.0
        %2688 = vmatpush1.msra.mxu0 0.0
        %2689 = vmatprep.subr.mxu0 0.0
        %2690 = vmatpush1.msra.mxu0 0.0
        %2691 = vmatprep.subr.mxu0 0.0
        %2692 = vmatpush1.msra.mxu0 0.0
        %2693 = vmatprep.subr.mxu0 0.0
        %2694 = vmatpush1.msra.mxu0 0.0
        %2695 = vmatprep.subr.mxu0 0.0
        %2696 = vmatpush1.msra.mxu0 0.0
        %2697 = vmatprep.subr.mxu0 0.0
        %2698 = vmatpush1.msra.mxu0 0.0
        %2699 = vmatprep.subr.mxu0 0.0
        %2700 = vmatpush1.msra.mxu0 0.0
        %2701 = vmatprep.subr.mxu0 0.0
        %2702 = vmatpush1.msra.mxu0 0.0
        %2703 = vmatprep.subr.mxu0 0.0
        %2704 = vmatpush1.msra.mxu0 0.0
        %2705 = vmatprep.subr.mxu0 0.0
        %2706 = vmatpush1.msra.mxu0 %v2667
        %2707 = vmatprep.subr.mxu0 0.0
        %2708 = vmatpush1.msra.mxu0 %v2666
        %2709 = vmatprep.subr.mxu0 0.0
        %2710 = vmatpush1.msra.mxu0 %v2665
        %2711 = vmatprep.subr.mxu0 0.0
        %2712 = vmatpush1.msra.mxu0 %v2664
        %2713 = vmatprep.subr.mxu0 0.0
        %2714 = vmatpush2.msra.mxu0 0.0
        %2715 = vmatprep.subr.mxu0 0.0
        %2716 = vmatpush2.msra.mxu0 0.0
        %2717 = vmatprep.subr.mxu0 0.0
        %2718 = vmatpush2.msra.mxu0 0.0
        %2719 = vmatprep.subr.mxu0 0.0
        %2720 = vmatpush2.msra.mxu0 0.0
        %2721 = vmatprep.subr.mxu0 0.0
        %2722 = vmatpush2.msra.mxu0 0.0
        %2723 = vmatprep.subr.mxu0 0.0
        %2724 = vmatpush2.msra.mxu0 0.0
        %2725 = vmatprep.subr.mxu0 0.0
        %2726 = vmatpush2.msra.mxu0 0.0
        %2727 = vmatprep.subr.mxu0 0.0
        %2728 = vmatpush2.msra.mxu0 0.0
        %2729 = vmatprep.subr.mxu0 0.0
        %2730 = vmatpush2.msra.mxu0 0.0
        %2731 = vmatprep.subr.mxu0 0.0
        %2732 = vmatpush2.msra.mxu0 0.0
        %2733 = vmatprep.subr.mxu0 0.0
        %2734 = vmatpush2.msra.mxu0 0.0
        %2735 = vmatprep.subr.mxu0 0.0
        %2736 = vmatpush2.msra.mxu0 0.0
        %2737 = vmatprep.subr.mxu0 0.0
        %2738 = vmatpush2.msra.mxu0 0.0
        %2739 = vmatprep.subr.mxu0 0.0
        %2740 = vmatpush2.msra.mxu0 0.0
        %2741 = vmatprep.subr.mxu0 0.0
        %2742 = vmatpush2.msra.mxu0 0.0
        %2743 = vmatprep.subr.mxu0 0.0
        %2744 = vmatpush2.msra.mxu0 0.0
        %2745 = vmatprep.mubr.f32.mxu0 0.0
        %2746 = vmatmul.mubr.f32.gmra.mxu0 %v2676
        %v2747 = vpop.f32.mrf.mxu0
        %v2748 = vadd.f32 %v2673, %v2747
        %v2749 = vpop.f32.mrf.mxu0
        %2750 = vmatprep.mubr.f32.mxu0 0.0
        %2751 = vmatmul.mubr.f32.gmra.mxu0 %v2679
        %v2752 = vpop.f32.mrf.mxu0
        %v2753 = vadd.f32 %v2673, %v2752
        %v2754 = vpop.f32.mrf.mxu0
        %2755 = vdwg.mxu0
        %v2756 = vmax.f32 %v2748, 0.0
        %v2757 = vmax.f32 %v2753, 0.0
        %v2758 = vld [vmem:[%s764] sm:$0xff]
        %v2759 = vld [vmem:[%s764 + $0x8] sm:$0xff]
        %v2760 = vld [vmem:[%s764 + $0x10] sm:$0xff]
        %v2761 = vld [vmem:[%s764 + $0x18] sm:$0xff]
        %v2762 = vld [vmem:[%s764 + $0x20] sm:$0xff]
        %v2763 = vld [vmem:[%s764 + $0x28] sm:$0xff]
        %v2764 = vld [vmem:[%s764 + $0x30] sm:$0xff]
        %v2765 = vld [vmem:[%s764 + $0x38] sm:$0xff]
        %v2766 = vld [vmem:[%s767] sm:$0x1]
        %v2768 = vlaneseq
        %v2769 = vshrl.u32 %v2768, 7
        %v2770 = vsub.s32 0, %v2769
        %v2771 = vrot.slane %v2766, %v2770
        %vm2773 = vcmask 523264
        %v2775 = vsel %vm2773, %v2756, 0
        %v2778 = vsel %vm2773, %v2757, 0
        %2780 = vmatprep.subr.mxu0 0.0
        %2781 = vmatpush1.msra.mxu0 0.0
        %2782 = vmatprep.subr.mxu0 0.0
        %2783 = vmatpush1.msra.mxu0 0.0
        %2784 = vmatprep.subr.mxu0 0.0
        %2785 = vmatpush1.msra.mxu0 0.0
        %2786 = vmatprep.subr.mxu0 0.0
        %2787 = vmatpush1.msra.mxu0 0.0
        %2788 = vmatprep.subr.mxu0 0.0
        %2789 = vmatpush1.msra.mxu0 0.0
        %2790 = vmatprep.subr.mxu0 0.0
        %2791 = vmatpush1.msra.mxu0 0.0
        %2792 = vmatprep.subr.mxu0 0.0
        %2793 = vmatpush1.msra.mxu0 0.0
        %2794 = vmatprep.subr.mxu0 0.0
        %2795 = vmatpush1.msra.mxu0 0.0
        %2796 = vmatprep.subr.mxu0 0.0
        %2797 = vmatpush1.msra.mxu0 %v2765
        %2798 = vmatprep.subr.mxu0 0.0
        %2799 = vmatpush1.msra.mxu0 %v2764
        %2800 = vmatprep.subr.mxu0 0.0
        %2801 = vmatpush1.msra.mxu0 %v2763
        %2802 = vmatprep.subr.mxu0 0.0
        %2803 = vmatpush1.msra.mxu0 %v2762
        %2804 = vmatprep.subr.mxu0 0.0
        %2805 = vmatpush1.msra.mxu0 %v2761
        %2806 = vmatprep.subr.mxu0 0.0
        %2807 = vmatpush1.msra.mxu0 %v2760
        %2808 = vmatprep.subr.mxu0 0.0
        %2809 = vmatpush1.msra.mxu0 %v2759
        %2810 = vmatprep.subr.mxu0 0.0
        %2811 = vmatpush1.msra.mxu0 %v2758
        %2812 = vmatprep.subr.mxu0 0.0
        %2813 = vmatpush2.msra.mxu0 0.0
        %2814 = vmatprep.subr.mxu0 0.0
        %2815 = vmatpush2.msra.mxu0 0.0
        %2816 = vmatprep.subr.mxu0 0.0
        %2817 = vmatpush2.msra.mxu0 0.0
        %2818 = vmatprep.subr.mxu0 0.0
        %2819 = vmatpush2.msra.mxu0 0.0
        %2820 = vmatprep.subr.mxu0 0.0
        %2821 = vmatpush2.msra.mxu0 0.0
        %2822 = vmatprep.subr.mxu0 0.0
        %2823 = vmatpush2.msra.mxu0 0.0
        %2824 = vmatprep.subr.mxu0 0.0
        %2825 = vmatpush2.msra.mxu0 0.0
        %2826 = vmatprep.subr.mxu0 0.0
        %2827 = vmatpush2.msra.mxu0 0.0
        %2828 = vmatprep.subr.mxu0 0.0
        %2829 = vmatpush2.msra.mxu0 0.0
        %2830 = vmatprep.subr.mxu0 0.0
        %2831 = vmatpush2.msra.mxu0 0.0
        %2832 = vmatprep.subr.mxu0 0.0
        %2833 = vmatpush2.msra.mxu0 0.0
        %2834 = vmatprep.subr.mxu0 0.0
        %2835 = vmatpush2.msra.mxu0 0.0
        %2836 = vmatprep.subr.mxu0 0.0
        %2837 = vmatpush2.msra.mxu0 0.0
        %2838 = vmatprep.subr.mxu0 0.0
        %2839 = vmatpush2.msra.mxu0 0.0
        %2840 = vmatprep.subr.mxu0 0.0
        %2841 = vmatpush2.msra.mxu0 0.0
        %2842 = vmatprep.subr.mxu0 0.0
        %2843 = vmatpush2.msra.mxu0 0.0
        %2844 = vmatprep.mubr.f32.mxu0 0.0
        %2845 = vmatmul.mubr.f32.gmra.mxu0 %v2775
        %v2846 = vpop.f32.mrf.mxu0
        %v2847 = vadd.f32 %v2771, %v2846
        %v2848 = vpop.f32.mrf.mxu0
        %2849 = vmatprep.mubr.f32.mxu0 0.0
        %2850 = vmatmul.mubr.f32.gmra.mxu0 %v2778
        %v2851 = vpop.f32.mrf.mxu0
        %v2852 = vadd.f32 %v2771, %v2851
        %v2853 = vpop.f32.mrf.mxu0
        %2854 = vdwg.mxu0
        %v2855 = vadd.f32 %v2662, %v2847
        %v2856 = vadd.f32 %v2663, %v2852
        %v2857 = vld [vmem:[%s770] sm:$0x1]
        %v2858 = vld [vmem:[%s773] sm:$0x1]
        %v2859 = vsel %vm847, %v2855, 0.0
        %2860 = vadd.xlane.f32.xlu0 %v2859
        %v2861 = vpop.xlane.xlu0 %2860
        %v2862 = vsel %vm847, %v2856, 0.0
        %2863 = vadd.xlane.f32.xlu0 %v2862
        %v2864 = vpop.xlane.xlu0 %2863
        %v2865 = vmul.f32 %v2861, %v2627
        %v2866 = vmul.f32 %v2864, %v2627
        %v2867 = vsub.f32 %v2855, %v2865
        %v2868 = vsub.f32 %v2856, %v2866
        %v2869 = vmul.f32 %v2867, %v2867
        %v2870 = vmul.f32 %v2868, %v2868
        %v2871 = vsel %vm847, %v2869, 0.0
        %2872 = vadd.xlane.f32.xlu0 %v2871
        %v2873 = vpop.xlane.xlu0 %2872
        %v2874 = vsel %vm847, %v2870, 0.0
        %2875 = vadd.xlane.f32.xlu0 %v2874
        %v2876 = vpop.xlane.xlu0 %2875
        %v2877 = vmul.f32 %v2873, %v2627
        %v2878 = vmul.f32 %v2876, %v2627
        %v2879 = vadd.f32 %v2877, 1e-05
        %v2880 = vadd.f32 %v2878, 1e-05
        %v2881 = vrsqrt.pop %v2879
        %v2882 = vrsqrt.pop %v2880
        %v2883 = vmul.f32 %v2867, %v2881
        %v2884 = vmul.f32 %v2868, %v2882
        %v2886 = vlaneseq
        %v2887 = vshrl.u32 %v2886, 7
        %v2888 = vsub.s32 0, %v2887
        %v2889 = vrot.slane %v2857, %v2888
        %v2891 = vmul.f32 %v2883, %v2889
        %v2892 = vmul.f32 %v2884, %v2889
        %v2894 = vlaneseq
        %v2895 = vshrl.u32 %v2894, 7
        %v2896 = vsub.s32 0, %v2895
        %v2897 = vrot.slane %v2858, %v2896
        %v2899 = vadd.f32 %v2891, %v2897
        %v2900 = vadd.f32 %v2892, %v2897
        %v2901 = vld [vmem:[%s5] sm:$0xff]
        %v2902 = vld [vmem:[%s5 + $0x8] sm:$0xff]
        %2904 = vset.pattern.permute.xlu0 0
        %2905 = vperm.xlu0 %2904, %v2901
        %v2906 = vpop.permute.xlu0 %2905
        %2909 = vset.pattern.permute.xlu0 0
        %2910 = vperm.xlu0 %2909, %v2902
        %v2911 = vpop.permute.xlu0 %2910
        %v2913 = vmul.f32 %v2899, %v2906
        %v2914 = vmul.f32 %v2900, %v2911
        %2915 = vst.msk [vmem:[#allocation8] sm:$0xff] %vm847, %v2913
        %2916 = vst.msk [vmem:[#allocation8 + $0x8] sm:$0xff] %vm847, %v2914
        // Predicated region
        $region109: #{tpu_custom_call.1} parent=91 // pred_check
          %p2917 = pneg %p483
        $region110: #{tpu_custom_call.1} parent=91 // pred_check_branch
          %2919 = sbr.rel (%p2917) target = $region112
        $region111: #{tpu_custom_call.1} parent=91 // pred_region
          %s2921 = ssub.s32 256, 256
          %2922 = vsyncadd [#allocation4], %s2921
          %s2923 = sshll.u32 [#allocation8], 4
          %s2924 = int_to_ptr.vmem [resolvable:$true] %s2923
          %2929 = dma.vmem_to_hbm [thread:$0]  %s2924, 256, %s18, [#allocation4], 128, 128, 8
        $region112: #{tpu_custom_call.1} parent=91 // pred_fallthru
          _
        // Predicated region
        $region113: #{tpu_custom_call.1} parent=91 // pred_check
          %p2930 = pneg %p483
        $region114: #{tpu_custom_call.1} parent=91 // pred_check_branch
          %2932 = sbr.rel (%p2930) target = $region116
        $region115: #{tpu_custom_call.1} parent=91 // pred_region
          %2933 = dma.done [#allocation4], 256
        $region116: #{tpu_custom_call.1} parent=91 // pred_fallthru
          _
      $region92: #{tpu_custom_call.1} parent=5 // pred_fallthru
        _
      %p2934 = scmp.le.s32.totalorder 2, %s27
      // Predicated region
      $region117: #{tpu_custom_call.1} parent=5 // pred_check
        %p2935 = pneg %p2934
      $region118: #{tpu_custom_call.1} parent=5 // pred_check_branch
        %2937 = sbr.rel (%p2935) target = $region120
      $region119: #{tpu_custom_call.1} parent=5 // pred_region
        %s2938 = ssub.s32 %s27, 2
      $region120: #{tpu_custom_call.1} parent=5 // pred_fallthru
        _
    $region6: #{tpu_custom_call.1} parent=1 // loop_footer
      %s31 = sadd.s32 1, %s27
    $region7: #{tpu_custom_call.1} parent=1 // loop_footer_branch
      %26 = sbr.rel target = $region3
    $region8: #{tpu_custom_call.1} parent=1 // loop_exit
      _
    %2939 = vsyncpa [#allocation3], 1
    %s2940 = scalar_lea.sflag [#allocation3], 1
    %2941 = vsyncpa %s2940, 1
    %2942 = vsyncpa [#allocation6], 1
    %2943 = vsyncpa [#allocation4], 1
    %s2944 = scalar_lea.sflag [#allocation4], 1
    %2945 = vsyncpa %s2944, 1

</llo_original>
